<compile_context>
chip_gen: v6e
topology: v6e:2x2x1
jax: 0.10.0
libtpu: 0.0.40
codegen_flags: <defaults>
</compile_context>

<pallas_src>
import jax
import jax.numpy as jnp
from jax.experimental import pallas as pl
from jax.experimental.pallas import tpu as pltpu


def encoder_kernel(x_ref,       # (T, B, D)
                   h0_ref,      # (B, H)
                   w_attn_ref,  # (2D + H, D)  rows: [attn2 (D) ; attn3 (D) ; attn1 (H)]
                   b_attn_ref,  # (2, D)       rows: [b1 + b2 ; b3]
                   w_gru_ref,   # (D + H, 4H)  rows: [[Wir|Wiz|Win|0] ; [Whr|Whz|0|Whn]]
                   b_gru_ref,   # (1, 4H)      [bir+bhr | biz+bhz | bin | bhn]
                   out_ref):    # (T, B, H)
    T, B, D = x_ref.shape
    H = h0_ref.shape[-1]

    # ---- hoisted, loop-invariant loads & bias broadcasts (traced once) ----
    w2 = w_attn_ref[0:D, :]            # (D, D)  attn2
    w3 = w_attn_ref[D:2 * D, :]        # (D, D)  attn3
    w1 = w_attn_ref[2 * D:, :]         # (H, D)  attn1
    b12 = jnp.broadcast_to(b_attn_ref[0:1, :], (B, D))   # b1 + b2
    b3 = jnp.broadcast_to(b_attn_ref[1:2, :], (B, D))
    wgi = w_gru_ref[0:D, :]            # (D, 4H)
    wgh = w_gru_ref[D:, :]             # (H, 4H)
    bg = jnp.broadcast_to(b_gru_ref[...], (B, 4 * H))

    h = h0_ref[...]                    # (B, H), carried in vregs across the loop

    # Time recurrence — fully unrolled at trace time (T static & small), so every
    # x_ref / out_ref access uses a static leading index.
    for t in range(T):
        xt = x_ref[t]                                          # (B, D)

        # --- input attention (attn1 + attn2 with fused bias, then attn3) ---
        pre = (jnp.dot(h, w1, preferred_element_type=jnp.float32)
               + jnp.dot(xt, w2, preferred_element_type=jnp.float32)
               + b12)
        v = jnp.dot(jnp.tanh(pre), w3, preferred_element_type=jnp.float32) + b3
        v = v - jnp.max(v, axis=1, keepdims=True)              # softmax over feature dim
        e = jnp.exp(v)
        # approx=True (EUP vrcp) would be cheaper, but its relative error would not
        # reliably hold the 1e-5 parity check below, so keep the exact reciprocal.
        alpha = e * pl.reciprocal(jnp.sum(e, axis=1, keepdims=True), approx=False)
        wx = xt * alpha                                        # (B, D)

        # --- GRU cell: all four gate blocks as one lane-dense (B, 4H=128) result,
        #     two MXU pushes (input-side + hidden-side).  Column blocks:
        #     [r_pre | z_pre | Win*wx + bin | Whn*h + bhn]
        gates = (jnp.dot(wx, wgi, preferred_element_type=jnp.float32)
                 + jnp.dot(h, wgh, preferred_element_type=jnp.float32)
                 + bg)                                         # (B, 4H)
        r = jax.nn.sigmoid(gates[:, 0 * H:1 * H])
        z = jax.nn.sigmoid(gates[:, 1 * H:2 * H])
        gin = gates[:, 2 * H:3 * H]
        ghn = gates[:, 3 * H:4 * H]
        n = jnp.tanh(gin + r * ghn)
        h = (1.0 - z) * n + z * h

        out_ref[t] = h


def pack_params(params, D, H):
    """Concatenate the 18 per-gate/per-layer arrays into 4 kernel operands."""
    (w1, b1, w2, b2, w3, b3,
     wir, wiz, win, whr, whz, whn,
     bir, biz, bin_, bhr, bhz, bhn) = params

    # Attention weights stacked along rows at 8-aligned offsets: [w2; w3; w1].
    w_attn = jnp.concatenate([w2, w3, w1], axis=0)                     # (2D + H, D)
    b_attn = jnp.concatenate([b1 + b2, b3], axis=0)                    # (2, D)

    # GRU: one (D+H, 4H) block.  Zero pads keep the n-gate input/hidden halves separate
    # (PyTorch applies r *inside* the hidden-side n term).
    zDH = jnp.zeros((D, H), jnp.float32)
    zHH = jnp.zeros((H, H), jnp.float32)
    w_gru = jnp.concatenate(
        [jnp.concatenate([wir, wiz, win, zDH], axis=1),                # (D, 4H)
         jnp.concatenate([whr, whz, zHH, whn], axis=1)],               # (H, 4H)
        axis=0)                                                        # (D + H, 4H)
    b_gru = jnp.concatenate([bir + bhr, biz + bhz, bin_, bhn], axis=1)  # (1, 4H)

    return w_attn, b_attn, w_gru, b_gru


@jax.jit
def encoder_forward(x, h0, params):
    """x: (B, T, D), h0: (B, H). Returns (B, T, H)."""
    B, T, D = x.shape
    H = h0.shape[-1]

    w_attn, b_attn, w_gru, b_gru = pack_params(params, D, H)
    x_tbd = jnp.transpose(x, (1, 0, 2))                 # time-major for the kernel

    out_tbh = pl.pallas_call(
        encoder_kernel,
        out_shape=jax.ShapeDtypeStruct((T, B, H), jnp.float32),
        # Everything (x, weights, output) is fully resident in VMEM; total footprint is
        # a few tens of KiB — far under the scoped limit on v5e/v6e/v7x.
        compiler_params=pltpu.CompilerParams(vmem_limit_bytes=32 * 1024 * 1024),
    )(x_tbd, h0, w_attn, b_attn, w_gru, b_gru)

    return jnp.transpose(out_tbh, (1, 0, 2))


def encoder_reference(x, h0, params):
    """Pure-JAX reference matching the PyTorch forward semantics (unfused)."""
    (w1, b1, w2, b2, w3, b3,
     wir, wiz, win, whr, whz, whn,
     bir, biz, bin_, bhr, bhz, bhn) = params

    def step_fn(h, xt):
        a1 = h @ w1 + b1
        a2 = xt @ w2 + b2
        v = jnp.tanh(a1 + a2) @ w3 + b3
        alpha = jax.nn.softmax(v, axis=1)
        wx = xt * alpha
        r = jax.nn.sigmoid(wx @ wir + bir + h @ whr + bhr)
        z = jax.nn.sigmoid(wx @ wiz + biz + h @ whz + bhz)
        n = jnp.tanh(wx @ win + bin_ + r * (h @ whn + bhn))
        h_new = (1.0 - z) * n + z * h
        return h_new, h_new

    _, outs = jax.lax.scan(step_fn, h0, jnp.transpose(x, (1, 0, 2)))
    return jnp.transpose(outs, (1, 0, 2))


def make_params(key, input_size, hidden_size):
    D, H = input_size, hidden_size
    ks = jax.random.split(key, 16)

    def lin(k, fan_in, fan_out):
        # torch.nn.Linear default init: U(-1/sqrt(fan_in), 1/sqrt(fan_in))
        bound = 1.0 / jnp.sqrt(fan_in)
        kw, kb = jax.random.split(k)
        w = jax.random.uniform(kw, (fan_in, fan_out), jnp.float32, -bound, bound)
        b = jax.random.uniform(kb, (1, fan_out), jnp.float32, -bound, bound)
        return w, b

    # attn1: Linear(H -> D), attn2: Linear(D -> D), attn3: Linear(D -> D)
    w1, b1 = lin(ks[0], H, D)
    w2, b2 = lin(ks[1], D, D)
    w3, b3 = lin(ks[2], D, D)

    # GRU weights (torch default init: U(-1/sqrt(H), 1/sqrt(H))), split per gate,
    # stored transposed so the kernel computes x @ W.
    gb = 1.0 / jnp.sqrt(H)

    def gw(k, fan_in):
        return jax.random.uniform(k, (fan_in, H), jnp.float32, -gb, gb)

    def gbias(k):
        return jax.random.uniform(k, (1, H), jnp.float32, -gb, gb)

    wir, wiz, win = gw(ks[3], D), gw(ks[4], D), gw(ks[5], D)
    whr, whz, whn = gw(ks[6], H), gw(ks[7], H), gw(ks[8], H)
    bir, biz, bin_ = gbias(ks[9]), gbias(ks[10]), gbias(ks[11])
    bhr, bhz, bhn = gbias(ks[12]), gbias(ks[13]), gbias(ks[14])

    return (w1, b1, w2, b2, w3, b3,
            wir, wiz, win, whr, whz, whn,
            bir, biz, bin_, bhr, bhz, bhn)


if __name__ == "__main__":
    # Small shapes consistent with the module: x is (batch, T=HISTORY_WINDOW, input_size)
    B, T, D, H = 4, 8, 8, 32

    key = jax.random.PRNGKey(0)
    kx, kh, kp = jax.random.split(key, 3)

    x = jax.random.normal(kx, (B, T, D), jnp.float32)

    # Deterministic stand-in for torch xavier_normal_ on shape (num_layers=1, B, H).
    fan_in, fan_out = B * H, H
    xavier_std = jnp.sqrt(2.0 / (fan_in + fan_out))
    h0 = xavier_std * jax.random.normal(kh, (B, H), jnp.float32)

    params = make_params(kp, D, H)

    out = encoder_forward(x, h0, params)
    out = jax.block_until_ready(out)

    ref = encoder_reference(x, h0, params)
    assert out.shape == (B, T, H)
    assert jnp.allclose(out, ref, atol=1e-5, rtol=1e-5), "mismatch vs reference"

    print("KERNEL_OK")
</pallas_src>

<mosaic_0001>
module attributes {stable_mosaic.version = 11 : i64} {
  func.func @encoder_kernel(%arg0: memref<8x4x8xf32, #tpu.memory_space<vmem>>, %arg1: memref<4x32xf32, #tpu.memory_space<vmem>>, %arg2: memref<48x8xf32, #tpu.memory_space<vmem>>, %arg3: memref<2x8xf32, #tpu.memory_space<vmem>>, %arg4: memref<40x128xf32, #tpu.memory_space<vmem>>, %arg5: memref<1x128xf32, #tpu.memory_space<vmem>>, %arg6: memref<8x4x32xf32, #tpu.memory_space<vmem>>) attributes {dimension_semantics = [], scalar_prefetch = 0 : i64, scratch_operands = 0 : i64, tpu.core_type = #tpu.core_type<tc>} {
    %c0 = arith.constant 0 : index
    %c0_0 = arith.constant 0 : index
    %0 = vector.load %arg2[%c0, %c0_0] : memref<48x8xf32, #tpu.memory_space<vmem>>, vector<8x8xf32>
    %c8 = arith.constant 8 : index
    %c0_1 = arith.constant 0 : index
    %1 = vector.load %arg2[%c8, %c0_1] : memref<48x8xf32, #tpu.memory_space<vmem>>, vector<8x8xf32>
    %c16 = arith.constant 16 : index
    %c0_2 = arith.constant 0 : index
    %2 = vector.load %arg2[%c16, %c0_2] : memref<48x8xf32, #tpu.memory_space<vmem>>, vector<32x8xf32>
    %c0_3 = arith.constant 0 : index
    %c0_4 = arith.constant 0 : index
    %3 = vector.load %arg3[%c0_3, %c0_4] : memref<2x8xf32, #tpu.memory_space<vmem>>, vector<1x8xf32>
    %4 = vector.shape_cast %3 : vector<1x8xf32> to vector<1x8xf32>
    %5 = vector.broadcast %4 : vector<1x8xf32> to vector<4x8xf32>
    %c1 = arith.constant 1 : index
    %c0_5 = arith.constant 0 : index
    %6 = vector.load %arg3[%c1, %c0_5] : memref<2x8xf32, #tpu.memory_space<vmem>>, vector<1x8xf32>
    %7 = vector.shape_cast %6 : vector<1x8xf32> to vector<1x8xf32>
    %8 = vector.broadcast %7 : vector<1x8xf32> to vector<4x8xf32>
    %c0_6 = arith.constant 0 : index
    %c0_7 = arith.constant 0 : index
    %9 = vector.load %arg4[%c0_6, %c0_7] : memref<40x128xf32, #tpu.memory_space<vmem>>, vector<8x128xf32>
    %c8_8 = arith.constant 8 : index
    %c0_9 = arith.constant 0 : index
    %10 = vector.load %arg4[%c8_8, %c0_9] : memref<40x128xf32, #tpu.memory_space<vmem>>, vector<32x128xf32>
    %c0_10 = arith.constant 0 : index
    %c0_11 = arith.constant 0 : index
    %11 = vector.load %arg5[%c0_10, %c0_11] : memref<1x128xf32, #tpu.memory_space<vmem>>, vector<1x128xf32>
    %12 = vector.shape_cast %11 : vector<1x128xf32> to vector<1x128xf32>
    %13 = vector.broadcast %12 : vector<1x128xf32> to vector<4x128xf32>
    %c0_12 = arith.constant 0 : index
    %c0_13 = arith.constant 0 : index
    %14 = vector.load %arg1[%c0_12, %c0_13] : memref<4x32xf32, #tpu.memory_space<vmem>>, vector<4x32xf32>
    %c0_14 = arith.constant 0 : index
    %c0_15 = arith.constant 0 : index
    %c0_16 = arith.constant 0 : index
    %15 = vector.load %arg0[%c0_14, %c0_15, %c0_16] : memref<8x4x8xf32, #tpu.memory_space<vmem>>, vector<1x4x8xf32>
    %16 = vector.shape_cast %15 : vector<1x4x8xf32> to vector<4x8xf32>
    %cst = arith.constant dense<0.000000e+00> : vector<4x8xf32>
    %17 = tpu.matmul %14, %2, %cst {dimension_numbers = #tpu.dot_dimension_numbers<[1], [0], [0], [1], [0, 0, 1, 1], [], []>} : vector<4x32xf32>, vector<32x8xf32>, vector<4x8xf32> -> vector<4x8xf32>
    %cst_17 = arith.constant dense<0.000000e+00> : vector<4x8xf32>
    %18 = tpu.matmul %16, %0, %cst_17 {dimension_numbers = #tpu.dot_dimension_numbers<[1], [0], [0], [1], [0, 0, 1, 1], [], []>} : vector<4x8xf32>, vector<8x8xf32>, vector<4x8xf32> -> vector<4x8xf32>
    %19 = arith.addf %17, %18 : vector<4x8xf32>
    %20 = arith.addf %19, %5 : vector<4x8xf32>
    %21 = math.tanh %20 : vector<4x8xf32>
    %cst_18 = arith.constant dense<0.000000e+00> : vector<4x8xf32>
    %22 = tpu.matmul %21, %1, %cst_18 {dimension_numbers = #tpu.dot_dimension_numbers<[1], [0], [0], [1], [0, 0, 1, 1], [], []>} : vector<4x8xf32>, vector<8x8xf32>, vector<4x8xf32> -> vector<4x8xf32>
    %23 = arith.addf %22, %8 : vector<4x8xf32>
    %cst_19 = arith.constant dense<0xFF800000> : vector<4xf32>
    %24 = vector.multi_reduction <maximumf>, %23, %cst_19 [1] : vector<4x8xf32> to vector<4xf32>
    %25 = vector.shape_cast %24 : vector<4xf32> to vector<4x1xf32>
    %26 = vector.broadcast %25 : vector<4x1xf32> to vector<4x8xf32>
    %27 = arith.subf %23, %26 : vector<4x8xf32>
    %28 = math.exp %27 : vector<4x8xf32>
    %cst_20 = arith.constant dense<0.000000e+00> : vector<4xf32>
    %29 = vector.multi_reduction <add>, %28, %cst_20 [1] : vector<4x8xf32> to vector<4xf32>
    %30 = vector.shape_cast %29 : vector<4xf32> to vector<4x1xf32>
    %31 = tpu.reciprocal %30 : vector<4x1xf32> -> vector<4x1xf32>
    %32 = vector.broadcast %31 : vector<4x1xf32> to vector<4x8xf32>
    %33 = arith.mulf %28, %32 : vector<4x8xf32>
    %34 = arith.mulf %16, %33 : vector<4x8xf32>
    %cst_21 = arith.constant dense<0.000000e+00> : vector<4x128xf32>
    %35 = tpu.matmul %34, %9, %cst_21 {dimension_numbers = #tpu.dot_dimension_numbers<[1], [0], [0], [1], [0, 0, 1, 1], [], []>} : vector<4x8xf32>, vector<8x128xf32>, vector<4x128xf32> -> vector<4x128xf32>
    %cst_22 = arith.constant dense<0.000000e+00> : vector<4x128xf32>
    %36 = tpu.matmul %14, %10, %cst_22 {dimension_numbers = #tpu.dot_dimension_numbers<[1], [0], [0], [1], [0, 0, 1, 1], [], []>} : vector<4x32xf32>, vector<32x128xf32>, vector<4x128xf32> -> vector<4x128xf32>
    %37 = arith.addf %35, %36 : vector<4x128xf32>
    %38 = arith.addf %37, %13 : vector<4x128xf32>
    %39 = vector.extract_strided_slice %38 {offsets = [0, 0], sizes = [4, 32], strides = [1, 1]} : vector<4x128xf32> to vector<4x32xf32>
    %40 = arith.negf %39 : vector<4x32xf32>
    %41 = math.exp %40 : vector<4x32xf32>
    %cst_23 = arith.constant 1.000000e+00 : f32
    %42 = vector.broadcast %cst_23 : f32 to vector<4x32xf32>
    %43 = arith.addf %42, %41 : vector<4x32xf32>
    %44 = arith.divf %42, %43 : vector<4x32xf32>
    %45 = vector.extract_strided_slice %38 {offsets = [0, 32], sizes = [4, 32], strides = [1, 1]} : vector<4x128xf32> to vector<4x32xf32>
    %46 = arith.negf %45 : vector<4x32xf32>
    %47 = math.exp %46 : vector<4x32xf32>
    %cst_24 = arith.constant 1.000000e+00 : f32
    %48 = vector.broadcast %cst_24 : f32 to vector<4x32xf32>
    %49 = arith.addf %48, %47 : vector<4x32xf32>
    %50 = arith.divf %48, %49 : vector<4x32xf32>
    %51 = vector.extract_strided_slice %38 {offsets = [0, 64], sizes = [4, 32], strides = [1, 1]} : vector<4x128xf32> to vector<4x32xf32>
    %52 = vector.extract_strided_slice %38 {offsets = [0, 96], sizes = [4, 32], strides = [1, 1]} : vector<4x128xf32> to vector<4x32xf32>
    %53 = arith.mulf %44, %52 : vector<4x32xf32>
    %54 = arith.addf %51, %53 : vector<4x32xf32>
    %55 = math.tanh %54 : vector<4x32xf32>
    %cst_25 = arith.constant 1.000000e+00 : f32
    %56 = vector.broadcast %cst_25 : f32 to vector<4x32xf32>
    %57 = arith.subf %56, %50 : vector<4x32xf32>
    %58 = arith.mulf %57, %55 : vector<4x32xf32>
    %59 = arith.mulf %50, %14 : vector<4x32xf32>
    %60 = arith.addf %58, %59 : vector<4x32xf32>
    %c0_26 = arith.constant 0 : index
    %c0_27 = arith.constant 0 : index
    %c0_28 = arith.constant 0 : index
    %61 = vector.load %arg6[%c0_26, %c0_27, %c0_28] : memref<8x4x32xf32, #tpu.memory_space<vmem>>, vector<1x4x32xf32>
    %62 = vector.shape_cast %61 : vector<1x4x32xf32> to vector<4x32xf32>
    %63 = vector.shape_cast %60 : vector<4x32xf32> to vector<1x4x32xf32>
    tpu.vector_store %arg6[%c0_26, %c0_27, %c0_28], %63 {strides = array<i32>} : memref<8x4x32xf32, #tpu.memory_space<vmem>>, vector<1x4x32xf32>,
    %c1_29 = arith.constant 1 : index
    %c0_30 = arith.constant 0 : index
    %c0_31 = arith.constant 0 : index
    %64 = vector.load %arg0[%c1_29, %c0_30, %c0_31] : memref<8x4x8xf32, #tpu.memory_space<vmem>>, vector<1x4x8xf32>
    %65 = vector.shape_cast %64 : vector<1x4x8xf32> to vector<4x8xf32>
    %cst_32 = arith.constant dense<0.000000e+00> : vector<4x8xf32>
    %66 = tpu.matmul %60, %2, %cst_32 {dimension_numbers = #tpu.dot_dimension_numbers<[1], [0], [0], [1], [0, 0, 1, 1], [], []>} : vector<4x32xf32>, vector<32x8xf32>, vector<4x8xf32> -> vector<4x8xf32>
    %cst_33 = arith.constant dense<0.000000e+00> : vector<4x8xf32>
    %67 = tpu.matmul %65, %0, %cst_33 {dimension_numbers = #tpu.dot_dimension_numbers<[1], [0], [0], [1], [0, 0, 1, 1], [], []>} : vector<4x8xf32>, vector<8x8xf32>, vector<4x8xf32> -> vector<4x8xf32>
    %68 = arith.addf %66, %67 : vector<4x8xf32>
    %69 = arith.addf %68, %5 : vector<4x8xf32>
    %70 = math.tanh %69 : vector<4x8xf32>
    %cst_34 = arith.constant dense<0.000000e+00> : vector<4x8xf32>
    %71 = tpu.matmul %70, %1, %cst_34 {dimension_numbers = #tpu.dot_dimension_numbers<[1], [0], [0], [1], [0, 0, 1, 1], [], []>} : vector<4x8xf32>, vector<8x8xf32>, vector<4x8xf32> -> vector<4x8xf32>
    %72 = arith.addf %71, %8 : vector<4x8xf32>
    %cst_35 = arith.constant dense<0xFF800000> : vector<4xf32>
    %73 = vector.multi_reduction <maximumf>, %72, %cst_35 [1] : vector<4x8xf32> to vector<4xf32>
    %74 = vector.shape_cast %73 : vector<4xf32> to vector<4x1xf32>
    %75 = vector.broadcast %74 : vector<4x1xf32> to vector<4x8xf32>
    %76 = arith.subf %72, %75 : vector<4x8xf32>
    %77 = math.exp %76 : vector<4x8xf32>
    %cst_36 = arith.constant dense<0.000000e+00> : vector<4xf32>
    %78 = vector.multi_reduction <add>, %77, %cst_36 [1] : vector<4x8xf32> to vector<4xf32>
    %79 = vector.shape_cast %78 : vector<4xf32> to vector<4x1xf32>
    %80 = tpu.reciprocal %79 : vector<4x1xf32> -> vector<4x1xf32>
    %81 = vector.broadcast %80 : vector<4x1xf32> to vector<4x8xf32>
    %82 = arith.mulf %77, %81 : vector<4x8xf32>
    %83 = arith.mulf %65, %82 : vector<4x8xf32>
    %cst_37 = arith.constant dense<0.000000e+00> : vector<4x128xf32>
    %84 = tpu.matmul %83, %9, %cst_37 {dimension_numbers = #tpu.dot_dimension_numbers<[1], [0], [0], [1], [0, 0, 1, 1], [], []>} : vector<4x8xf32>, vector<8x128xf32>, vector<4x128xf32> -> vector<4x128xf32>
    %cst_38 = arith.constant dense<0.000000e+00> : vector<4x128xf32>
    %85 = tpu.matmul %60, %10, %cst_38 {dimension_numbers = #tpu.dot_dimension_numbers<[1], [0], [0], [1], [0, 0, 1, 1], [], []>} : vector<4x32xf32>, vector<32x128xf32>, vector<4x128xf32> -> vector<4x128xf32>
    %86 = arith.addf %84, %85 : vector<4x128xf32>
    %87 = arith.addf %86, %13 : vector<4x128xf32>
    %88 = vector.extract_strided_slice %87 {offsets = [0, 0], sizes = [4, 32], strides = [1, 1]} : vector<4x128xf32> to vector<4x32xf32>
    %89 = arith.negf %88 : vector<4x32xf32>
    %90 = math.exp %89 : vector<4x32xf32>
    %cst_39 = arith.constant 1.000000e+00 : f32
    %91 = vector.broadcast %cst_39 : f32 to vector<4x32xf32>
    %92 = arith.addf %91, %90 : vector<4x32xf32>
    %93 = arith.divf %91, %92 : vector<4x32xf32>
    %94 = vector.extract_strided_slice %87 {offsets = [0, 32], sizes = [4, 32], strides = [1, 1]} : vector<4x128xf32> to vector<4x32xf32>
    %95 = arith.negf %94 : vector<4x32xf32>
    %96 = math.exp %95 : vector<4x32xf32>
    %cst_40 = arith.constant 1.000000e+00 : f32
    %97 = vector.broadcast %cst_40 : f32 to vector<4x32xf32>
    %98 = arith.addf %97, %96 : vector<4x32xf32>
    %99 = arith.divf %97, %98 : vector<4x32xf32>
    %100 = vector.extract_strided_slice %87 {offsets = [0, 64], sizes = [4, 32], strides = [1, 1]} : vector<4x128xf32> to vector<4x32xf32>
    %101 = vector.extract_strided_slice %87 {offsets = [0, 96], sizes = [4, 32], strides = [1, 1]} : vector<4x128xf32> to vector<4x32xf32>
    %102 = arith.mulf %93, %101 : vector<4x32xf32>
    %103 = arith.addf %100, %102 : vector<4x32xf32>
    %104 = math.tanh %103 : vector<4x32xf32>
    %cst_41 = arith.constant 1.000000e+00 : f32
    %105 = vector.broadcast %cst_41 : f32 to vector<4x32xf32>
    %106 = arith.subf %105, %99 : vector<4x32xf32>
    %107 = arith.mulf %106, %104 : vector<4x32xf32>
    %108 = arith.mulf %99, %60 : vector<4x32xf32>
    %109 = arith.addf %107, %108 : vector<4x32xf32>
    %c1_42 = arith.constant 1 : index
    %c0_43 = arith.constant 0 : index
    %c0_44 = arith.constant 0 : index
    %110 = vector.load %arg6[%c1_42, %c0_43, %c0_44] : memref<8x4x32xf32, #tpu.memory_space<vmem>>, vector<1x4x32xf32>
    %111 = vector.shape_cast %110 : vector<1x4x32xf32> to vector<4x32xf32>
    %112 = vector.shape_cast %109 : vector<4x32xf32> to vector<1x4x32xf32>
    tpu.vector_store %arg6[%c1_42, %c0_43, %c0_44], %112 {strides = array<i32>} : memref<8x4x32xf32, #tpu.memory_space<vmem>>, vector<1x4x32xf32>,
    %c2 = arith.constant 2 : index
    %c0_45 = arith.constant 0 : index
    %c0_46 = arith.constant 0 : index
    %113 = vector.load %arg0[%c2, %c0_45, %c0_46] : memref<8x4x8xf32, #tpu.memory_space<vmem>>, vector<1x4x8xf32>
    %114 = vector.shape_cast %113 : vector<1x4x8xf32> to vector<4x8xf32>
    %cst_47 = arith.constant dense<0.000000e+00> : vector<4x8xf32>
    %115 = tpu.matmul %109, %2, %cst_47 {dimension_numbers = #tpu.dot_dimension_numbers<[1], [0], [0], [1], [0, 0, 1, 1], [], []>} : vector<4x32xf32>, vector<32x8xf32>, vector<4x8xf32> -> vector<4x8xf32>
    %cst_48 = arith.constant dense<0.000000e+00> : vector<4x8xf32>
    %116 = tpu.matmul %114, %0, %cst_48 {dimension_numbers = #tpu.dot_dimension_numbers<[1], [0], [0], [1], [0, 0, 1, 1], [], []>} : vector<4x8xf32>, vector<8x8xf32>, vector<4x8xf32> -> vector<4x8xf32>
    %117 = arith.addf %115, %116 : vector<4x8xf32>
    %118 = arith.addf %117, %5 : vector<4x8xf32>
    %119 = math.tanh %118 : vector<4x8xf32>
    %cst_49 = arith.constant dense<0.000000e+00> : vector<4x8xf32>
    %120 = tpu.matmul %119, %1, %cst_49 {dimension_numbers = #tpu.dot_dimension_numbers<[1], [0], [0], [1], [0, 0, 1, 1], [], []>} : vector<4x8xf32>, vector<8x8xf32>, vector<4x8xf32> -> vector<4x8xf32>
    %121 = arith.addf %120, %8 : vector<4x8xf32>
    %cst_50 = arith.constant dense<0xFF800000> : vector<4xf32>
    %122 = vector.multi_reduction <maximumf>, %121, %cst_50 [1] : vector<4x8xf32> to vector<4xf32>
    %123 = vector.shape_cast %122 : vector<4xf32> to vector<4x1xf32>
    %124 = vector.broadcast %123 : vector<4x1xf32> to vector<4x8xf32>
    %125 = arith.subf %121, %124 : vector<4x8xf32>
    %126 = math.exp %125 : vector<4x8xf32>
    %cst_51 = arith.constant dense<0.000000e+00> : vector<4xf32>
    %127 = vector.multi_reduction <add>, %126, %cst_51 [1] : vector<4x8xf32> to vector<4xf32>
    %128 = vector.shape_cast %127 : vector<4xf32> to vector<4x1xf32>
    %129 = tpu.reciprocal %128 : vector<4x1xf32> -> vector<4x1xf32>
    %130 = vector.broadcast %129 : vector<4x1xf32> to vector<4x8xf32>
    %131 = arith.mulf %126, %130 : vector<4x8xf32>
    %132 = arith.mulf %114, %131 : vector<4x8xf32>
    %cst_52 = arith.constant dense<0.000000e+00> : vector<4x128xf32>
    %133 = tpu.matmul %132, %9, %cst_52 {dimension_numbers = #tpu.dot_dimension_numbers<[1], [0], [0], [1], [0, 0, 1, 1], [], []>} : vector<4x8xf32>, vector<8x128xf32>, vector<4x128xf32> -> vector<4x128xf32>
    %cst_53 = arith.constant dense<0.000000e+00> : vector<4x128xf32>
    %134 = tpu.matmul %109, %10, %cst_53 {dimension_numbers = #tpu.dot_dimension_numbers<[1], [0], [0], [1], [0, 0, 1, 1], [], []>} : vector<4x32xf32>, vector<32x128xf32>, vector<4x128xf32> -> vector<4x128xf32>
    %135 = arith.addf %133, %134 : vector<4x128xf32>
    %136 = arith.addf %135, %13 : vector<4x128xf32>
    %137 = vector.extract_strided_slice %136 {offsets = [0, 0], sizes = [4, 32], strides = [1, 1]} : vector<4x128xf32> to vector<4x32xf32>
    %138 = arith.negf %137 : vector<4x32xf32>
    %139 = math.exp %138 : vector<4x32xf32>
    %cst_54 = arith.constant 1.000000e+00 : f32
    %140 = vector.broadcast %cst_54 : f32 to vector<4x32xf32>
    %141 = arith.addf %140, %139 : vector<4x32xf32>
    %142 = arith.divf %140, %141 : vector<4x32xf32>
    %143 = vector.extract_strided_slice %136 {offsets = [0, 32], sizes = [4, 32], strides = [1, 1]} : vector<4x128xf32> to vector<4x32xf32>
    %144 = arith.negf %143 : vector<4x32xf32>
    %145 = math.exp %144 : vector<4x32xf32>
    %cst_55 = arith.constant 1.000000e+00 : f32
    %146 = vector.broadcast %cst_55 : f32 to vector<4x32xf32>
    %147 = arith.addf %146, %145 : vector<4x32xf32>
    %148 = arith.divf %146, %147 : vector<4x32xf32>
    %149 = vector.extract_strided_slice %136 {offsets = [0, 64], sizes = [4, 32], strides = [1, 1]} : vector<4x128xf32> to vector<4x32xf32>
    %150 = vector.extract_strided_slice %136 {offsets = [0, 96], sizes = [4, 32], strides = [1, 1]} : vector<4x128xf32> to vector<4x32xf32>
    %151 = arith.mulf %142, %150 : vector<4x32xf32>
    %152 = arith.addf %149, %151 : vector<4x32xf32>
    %153 = math.tanh %152 : vector<4x32xf32>
    %cst_56 = arith.constant 1.000000e+00 : f32
    %154 = vector.broadcast %cst_56 : f32 to vector<4x32xf32>
    %155 = arith.subf %154, %148 : vector<4x32xf32>
    %156 = arith.mulf %155, %153 : vector<4x32xf32>
    %157 = arith.mulf %148, %109 : vector<4x32xf32>
    %158 = arith.addf %156, %157 : vector<4x32xf32>
    %c2_57 = arith.constant 2 : index
    %c0_58 = arith.constant 0 : index
    %c0_59 = arith.constant 0 : index
    %159 = vector.load %arg6[%c2_57, %c0_58, %c0_59] : memref<8x4x32xf32, #tpu.memory_space<vmem>>, vector<1x4x32xf32>
    %160 = vector.shape_cast %159 : vector<1x4x32xf32> to vector<4x32xf32>
    %161 = vector.shape_cast %158 : vector<4x32xf32> to vector<1x4x32xf32>
    tpu.vector_store %arg6[%c2_57, %c0_58, %c0_59], %161 {strides = array<i32>} : memref<8x4x32xf32, #tpu.memory_space<vmem>>, vector<1x4x32xf32>,
    %c3 = arith.constant 3 : index
    %c0_60 = arith.constant 0 : index
    %c0_61 = arith.constant 0 : index
    %162 = vector.load %arg0[%c3, %c0_60, %c0_61] : memref<8x4x8xf32, #tpu.memory_space<vmem>>, vector<1x4x8xf32>
    %163 = vector.shape_cast %162 : vector<1x4x8xf32> to vector<4x8xf32>
    %cst_62 = arith.constant dense<0.000000e+00> : vector<4x8xf32>
    %164 = tpu.matmul %158, %2, %cst_62 {dimension_numbers = #tpu.dot_dimension_numbers<[1], [0], [0], [1], [0, 0, 1, 1], [], []>} : vector<4x32xf32>, vector<32x8xf32>, vector<4x8xf32> -> vector<4x8xf32>
    %cst_63 = arith.constant dense<0.000000e+00> : vector<4x8xf32>
    %165 = tpu.matmul %163, %0, %cst_63 {dimension_numbers = #tpu.dot_dimension_numbers<[1], [0], [0], [1], [0, 0, 1, 1], [], []>} : vector<4x8xf32>, vector<8x8xf32>, vector<4x8xf32> -> vector<4x8xf32>
    %166 = arith.addf %164, %165 : vector<4x8xf32>
    %167 = arith.addf %166, %5 : vector<4x8xf32>
    %168 = math.tanh %167 : vector<4x8xf32>
    %cst_64 = arith.constant dense<0.000000e+00> : vector<4x8xf32>
    %169 = tpu.matmul %168, %1, %cst_64 {dimension_numbers = #tpu.dot_dimension_numbers<[1], [0], [0], [1], [0, 0, 1, 1], [], []>} : vector<4x8xf32>, vector<8x8xf32>, vector<4x8xf32> -> vector<4x8xf32>
    %170 = arith.addf %169, %8 : vector<4x8xf32>
    %cst_65 = arith.constant dense<0xFF800000> : vector<4xf32>
    %171 = vector.multi_reduction <maximumf>, %170, %cst_65 [1] : vector<4x8xf32> to vector<4xf32>
    %172 = vector.shape_cast %171 : vector<4xf32> to vector<4x1xf32>
    %173 = vector.broadcast %172 : vector<4x1xf32> to vector<4x8xf32>
    %174 = arith.subf %170, %173 : vector<4x8xf32>
    %175 = math.exp %174 : vector<4x8xf32>
    %cst_66 = arith.constant dense<0.000000e+00> : vector<4xf32>
    %176 = vector.multi_reduction <add>, %175, %cst_66 [1] : vector<4x8xf32> to vector<4xf32>
    %177 = vector.shape_cast %176 : vector<4xf32> to vector<4x1xf32>
    %178 = tpu.reciprocal %177 : vector<4x1xf32> -> vector<4x1xf32>
    %179 = vector.broadcast %178 : vector<4x1xf32> to vector<4x8xf32>
    %180 = arith.mulf %175, %179 : vector<4x8xf32>
    %181 = arith.mulf %163, %180 : vector<4x8xf32>
    %cst_67 = arith.constant dense<0.000000e+00> : vector<4x128xf32>
    %182 = tpu.matmul %181, %9, %cst_67 {dimension_numbers = #tpu.dot_dimension_numbers<[1], [0], [0], [1], [0, 0, 1, 1], [], []>} : vector<4x8xf32>, vector<8x128xf32>, vector<4x128xf32> -> vector<4x128xf32>
    %cst_68 = arith.constant dense<0.000000e+00> : vector<4x128xf32>
    %183 = tpu.matmul %158, %10, %cst_68 {dimension_numbers = #tpu.dot_dimension_numbers<[1], [0], [0], [1], [0, 0, 1, 1], [], []>} : vector<4x32xf32>, vector<32x128xf32>, vector<4x128xf32> -> vector<4x128xf32>
    %184 = arith.addf %182, %183 : vector<4x128xf32>
    %185 = arith.addf %184, %13 : vector<4x128xf32>
    %186 = vector.extract_strided_slice %185 {offsets = [0, 0], sizes = [4, 32], strides = [1, 1]} : vector<4x128xf32> to vector<4x32xf32>
    %187 = arith.negf %186 : vector<4x32xf32>
    %188 = math.exp %187 : vector<4x32xf32>
    %cst_69 = arith.constant 1.000000e+00 : f32
    %189 = vector.broadcast %cst_69 : f32 to vector<4x32xf32>
    %190 = arith.addf %189, %188 : vector<4x32xf32>
    %191 = arith.divf %189, %190 : vector<4x32xf32>
    %192 = vector.extract_strided_slice %185 {offsets = [0, 32], sizes = [4, 32], strides = [1, 1]} : vector<4x128xf32> to vector<4x32xf32>
    %193 = arith.negf %192 : vector<4x32xf32>
    %194 = math.exp %193 : vector<4x32xf32>
    %cst_70 = arith.constant 1.000000e+00 : f32
    %195 = vector.broadcast %cst_70 : f32 to vector<4x32xf32>
    %196 = arith.addf %195, %194 : vector<4x32xf32>
    %197 = arith.divf %195, %196 : vector<4x32xf32>
    %198 = vector.extract_strided_slice %185 {offsets = [0, 64], sizes = [4, 32], strides = [1, 1]} : vector<4x128xf32> to vector<4x32xf32>
    %199 = vector.extract_strided_slice %185 {offsets = [0, 96], sizes = [4, 32], strides = [1, 1]} : vector<4x128xf32> to vector<4x32xf32>
    %200 = arith.mulf %191, %199 : vector<4x32xf32>
    %201 = arith.addf %198, %200 : vector<4x32xf32>
    %202 = math.tanh %201 : vector<4x32xf32>
    %cst_71 = arith.constant 1.000000e+00 : f32
    %203 = vector.broadcast %cst_71 : f32 to vector<4x32xf32>
    %204 = arith.subf %203, %197 : vector<4x32xf32>
    %205 = arith.mulf %204, %202 : vector<4x32xf32>
    %206 = arith.mulf %197, %158 : vector<4x32xf32>
    %207 = arith.addf %205, %206 : vector<4x32xf32>
    %c3_72 = arith.constant 3 : index
    %c0_73 = arith.constant 0 : index
    %c0_74 = arith.constant 0 : index
    %208 = vector.load %arg6[%c3_72, %c0_73, %c0_74] : memref<8x4x32xf32, #tpu.memory_space<vmem>>, vector<1x4x32xf32>
    %209 = vector.shape_cast %208 : vector<1x4x32xf32> to vector<4x32xf32>
    %210 = vector.shape_cast %207 : vector<4x32xf32> to vector<1x4x32xf32>
    tpu.vector_store %arg6[%c3_72, %c0_73, %c0_74], %210 {strides = array<i32>} : memref<8x4x32xf32, #tpu.memory_space<vmem>>, vector<1x4x32xf32>,
    %c4 = arith.constant 4 : index
    %c0_75 = arith.constant 0 : index
    %c0_76 = arith.constant 0 : index
    %211 = vector.load %arg0[%c4, %c0_75, %c0_76] : memref<8x4x8xf32, #tpu.memory_space<vmem>>, vector<1x4x8xf32>
    %212 = vector.shape_cast %211 : vector<1x4x8xf32> to vector<4x8xf32>
    %cst_77 = arith.constant dense<0.000000e+00> : vector<4x8xf32>
    %213 = tpu.matmul %207, %2, %cst_77 {dimension_numbers = #tpu.dot_dimension_numbers<[1], [0], [0], [1], [0, 0, 1, 1], [], []>} : vector<4x32xf32>, vector<32x8xf32>, vector<4x8xf32> -> vector<4x8xf32>
    %cst_78 = arith.constant dense<0.000000e+00> : vector<4x8xf32>
    %214 = tpu.matmul %212, %0, %cst_78 {dimension_numbers = #tpu.dot_dimension_numbers<[1], [0], [0], [1], [0, 0, 1, 1], [], []>} : vector<4x8xf32>, vector<8x8xf32>, vector<4x8xf32> -> vector<4x8xf32>
    %215 = arith.addf %213, %214 : vector<4x8xf32>
    %216 = arith.addf %215, %5 : vector<4x8xf32>
    %217 = math.tanh %216 : vector<4x8xf32>
    %cst_79 = arith.constant dense<0.000000e+00> : vector<4x8xf32>
    %218 = tpu.matmul %217, %1, %cst_79 {dimension_numbers = #tpu.dot_dimension_numbers<[1], [0], [0], [1], [0, 0, 1, 1], [], []>} : vector<4x8xf32>, vector<8x8xf32>, vector<4x8xf32> -> vector<4x8xf32>
    %219 = arith.addf %218, %8 : vector<4x8xf32>
    %cst_80 = arith.constant dense<0xFF800000> : vector<4xf32>
    %220 = vector.multi_reduction <maximumf>, %219, %cst_80 [1] : vector<4x8xf32> to vector<4xf32>
    %221 = vector.shape_cast %220 : vector<4xf32> to vector<4x1xf32>
    %222 = vector.broadcast %221 : vector<4x1xf32> to vector<4x8xf32>
    %223 = arith.subf %219, %222 : vector<4x8xf32>
    %224 = math.exp %223 : vector<4x8xf32>
    %cst_81 = arith.constant dense<0.000000e+00> : vector<4xf32>
    %225 = vector.multi_reduction <add>, %224, %cst_81 [1] : vector<4x8xf32> to vector<4xf32>
    %226 = vector.shape_cast %225 : vector<4xf32> to vector<4x1xf32>
    %227 = tpu.reciprocal %226 : vector<4x1xf32> -> vector<4x1xf32>
    %228 = vector.broadcast %227 : vector<4x1xf32> to vector<4x8xf32>
    %229 = arith.mulf %224, %228 : vector<4x8xf32>
    %230 = arith.mulf %212, %229 : vector<4x8xf32>
    %cst_82 = arith.constant dense<0.000000e+00> : vector<4x128xf32>
    %231 = tpu.matmul %230, %9, %cst_82 {dimension_numbers = #tpu.dot_dimension_numbers<[1], [0], [0], [1], [0, 0, 1, 1], [], []>} : vector<4x8xf32>, vector<8x128xf32>, vector<4x128xf32> -> vector<4x128xf32>
    %cst_83 = arith.constant dense<0.000000e+00> : vector<4x128xf32>
    %232 = tpu.matmul %207, %10, %cst_83 {dimension_numbers = #tpu.dot_dimension_numbers<[1], [0], [0], [1], [0, 0, 1, 1], [], []>} : vector<4x32xf32>, vector<32x128xf32>, vector<4x128xf32> -> vector<4x128xf32>
    %233 = arith.addf %231, %232 : vector<4x128xf32>
    %234 = arith.addf %233, %13 : vector<4x128xf32>
    %235 = vector.extract_strided_slice %234 {offsets = [0, 0], sizes = [4, 32], strides = [1, 1]} : vector<4x128xf32> to vector<4x32xf32>
    %236 = arith.negf %235 : vector<4x32xf32>
    %237 = math.exp %236 : vector<4x32xf32>
    %cst_84 = arith.constant 1.000000e+00 : f32
    %238 = vector.broadcast %cst_84 : f32 to vector<4x32xf32>
    %239 = arith.addf %238, %237 : vector<4x32xf32>
    %240 = arith.divf %238, %239 : vector<4x32xf32>
    %241 = vector.extract_strided_slice %234 {offsets = [0, 32], sizes = [4, 32], strides = [1, 1]} : vector<4x128xf32> to vector<4x32xf32>
    %242 = arith.negf %241 : vector<4x32xf32>
    %243 = math.exp %242 : vector<4x32xf32>
    %cst_85 = arith.constant 1.000000e+00 : f32
    %244 = vector.broadcast %cst_85 : f32 to vector<4x32xf32>
    %245 = arith.addf %244, %243 : vector<4x32xf32>
    %246 = arith.divf %244, %245 : vector<4x32xf32>
    %247 = vector.extract_strided_slice %234 {offsets = [0, 64], sizes = [4, 32], strides = [1, 1]} : vector<4x128xf32> to vector<4x32xf32>
    %248 = vector.extract_strided_slice %234 {offsets = [0, 96], sizes = [4, 32], strides = [1, 1]} : vector<4x128xf32> to vector<4x32xf32>
    %249 = arith.mulf %240, %248 : vector<4x32xf32>
    %250 = arith.addf %247, %249 : vector<4x32xf32>
    %251 = math.tanh %250 : vector<4x32xf32>
    %cst_86 = arith.constant 1.000000e+00 : f32
    %252 = vector.broadcast %cst_86 : f32 to vector<4x32xf32>
    %253 = arith.subf %252, %246 : vector<4x32xf32>
    %254 = arith.mulf %253, %251 : vector<4x32xf32>
    %255 = arith.mulf %246, %207 : vector<4x32xf32>
    %256 = arith.addf %254, %255 : vector<4x32xf32>
    %c4_87 = arith.constant 4 : index
    %c0_88 = arith.constant 0 : index
    %c0_89 = arith.constant 0 : index
    %257 = vector.load %arg6[%c4_87, %c0_88, %c0_89] : memref<8x4x32xf32, #tpu.memory_space<vmem>>, vector<1x4x32xf32>
    %258 = vector.shape_cast %257 : vector<1x4x32xf32> to vector<4x32xf32>
    %259 = vector.shape_cast %256 : vector<4x32xf32> to vector<1x4x32xf32>
    tpu.vector_store %arg6[%c4_87, %c0_88, %c0_89], %259 {strides = array<i32>} : memref<8x4x32xf32, #tpu.memory_space<vmem>>, vector<1x4x32xf32>,
    %c5 = arith.constant 5 : index
    %c0_90 = arith.constant 0 : index
    %c0_91 = arith.constant 0 : index
    %260 = vector.load %arg0[%c5, %c0_90, %c0_91] : memref<8x4x8xf32, #tpu.memory_space<vmem>>, vector<1x4x8xf32>
    %261 = vector.shape_cast %260 : vector<1x4x8xf32> to vector<4x8xf32>
    %cst_92 = arith.constant dense<0.000000e+00> : vector<4x8xf32>
    %262 = tpu.matmul %256, %2, %cst_92 {dimension_numbers = #tpu.dot_dimension_numbers<[1], [0], [0], [1], [0, 0, 1, 1], [], []>} : vector<4x32xf32>, vector<32x8xf32>, vector<4x8xf32> -> vector<4x8xf32>
    %cst_93 = arith.constant dense<0.000000e+00> : vector<4x8xf32>
    %263 = tpu.matmul %261, %0, %cst_93 {dimension_numbers = #tpu.dot_dimension_numbers<[1], [0], [0], [1], [0, 0, 1, 1], [], []>} : vector<4x8xf32>, vector<8x8xf32>, vector<4x8xf32> -> vector<4x8xf32>
    %264 = arith.addf %262, %263 : vector<4x8xf32>
    %265 = arith.addf %264, %5 : vector<4x8xf32>
    %266 = math.tanh %265 : vector<4x8xf32>
    %cst_94 = arith.constant dense<0.000000e+00> : vector<4x8xf32>
    %267 = tpu.matmul %266, %1, %cst_94 {dimension_numbers = #tpu.dot_dimension_numbers<[1], [0], [0], [1], [0, 0, 1, 1], [], []>} : vector<4x8xf32>, vector<8x8xf32>, vector<4x8xf32> -> vector<4x8xf32>
    %268 = arith.addf %267, %8 : vector<4x8xf32>
    %cst_95 = arith.constant dense<0xFF800000> : vector<4xf32>
    %269 = vector.multi_reduction <maximumf>, %268, %cst_95 [1] : vector<4x8xf32> to vector<4xf32>
    %270 = vector.shape_cast %269 : vector<4xf32> to vector<4x1xf32>
    %271 = vector.broadcast %270 : vector<4x1xf32> to vector<4x8xf32>
    %272 = arith.subf %268, %271 : vector<4x8xf32>
    %273 = math.exp %272 : vector<4x8xf32>
    %cst_96 = arith.constant dense<0.000000e+00> : vector<4xf32>
    %274 = vector.multi_reduction <add>, %273, %cst_96 [1] : vector<4x8xf32> to vector<4xf32>
    %275 = vector.shape_cast %274 : vector<4xf32> to vector<4x1xf32>
    %276 = tpu.reciprocal %275 : vector<4x1xf32> -> vector<4x1xf32>
    %277 = vector.broadcast %276 : vector<4x1xf32> to vector<4x8xf32>
    %278 = arith.mulf %273, %277 : vector<4x8xf32>
    %279 = arith.mulf %261, %278 : vector<4x8xf32>
    %cst_97 = arith.constant dense<0.000000e+00> : vector<4x128xf32>
    %280 = tpu.matmul %279, %9, %cst_97 {dimension_numbers = #tpu.dot_dimension_numbers<[1], [0], [0], [1], [0, 0, 1, 1], [], []>} : vector<4x8xf32>, vector<8x128xf32>, vector<4x128xf32> -> vector<4x128xf32>
    %cst_98 = arith.constant dense<0.000000e+00> : vector<4x128xf32>
    %281 = tpu.matmul %256, %10, %cst_98 {dimension_numbers = #tpu.dot_dimension_numbers<[1], [0], [0], [1], [0, 0, 1, 1], [], []>} : vector<4x32xf32>, vector<32x128xf32>, vector<4x128xf32> -> vector<4x128xf32>
    %282 = arith.addf %280, %281 : vector<4x128xf32>
    %283 = arith.addf %282, %13 : vector<4x128xf32>
    %284 = vector.extract_strided_slice %283 {offsets = [0, 0], sizes = [4, 32], strides = [1, 1]} : vector<4x128xf32> to vector<4x32xf32>
    %285 = arith.negf %284 : vector<4x32xf32>
    %286 = math.exp %285 : vector<4x32xf32>
    %cst_99 = arith.constant 1.000000e+00 : f32
    %287 = vector.broadcast %cst_99 : f32 to vector<4x32xf32>
    %288 = arith.addf %287, %286 : vector<4x32xf32>
    %289 = arith.divf %287, %288 : vector<4x32xf32>
    %290 = vector.extract_strided_slice %283 {offsets = [0, 32], sizes = [4, 32], strides = [1, 1]} : vector<4x128xf32> to vector<4x32xf32>
    %291 = arith.negf %290 : vector<4x32xf32>
    %292 = math.exp %291 : vector<4x32xf32>
    %cst_100 = arith.constant 1.000000e+00 : f32
    %293 = vector.broadcast %cst_100 : f32 to vector<4x32xf32>
    %294 = arith.addf %293, %292 : vector<4x32xf32>
    %295 = arith.divf %293, %294 : vector<4x32xf32>
    %296 = vector.extract_strided_slice %283 {offsets = [0, 64], sizes = [4, 32], strides = [1, 1]} : vector<4x128xf32> to vector<4x32xf32>
    %297 = vector.extract_strided_slice %283 {offsets = [0, 96], sizes = [4, 32], strides = [1, 1]} : vector<4x128xf32> to vector<4x32xf32>
    %298 = arith.mulf %289, %297 : vector<4x32xf32>
    %299 = arith.addf %296, %298 : vector<4x32xf32>
    %300 = math.tanh %299 : vector<4x32xf32>
    %cst_101 = arith.constant 1.000000e+00 : f32
    %301 = vector.broadcast %cst_101 : f32 to vector<4x32xf32>
    %302 = arith.subf %301, %295 : vector<4x32xf32>
    %303 = arith.mulf %302, %300 : vector<4x32xf32>
    %304 = arith.mulf %295, %256 : vector<4x32xf32>
    %305 = arith.addf %303, %304 : vector<4x32xf32>
    %c5_102 = arith.constant 5 : index
    %c0_103 = arith.constant 0 : index
    %c0_104 = arith.constant 0 : index
    %306 = vector.load %arg6[%c5_102, %c0_103, %c0_104] : memref<8x4x32xf32, #tpu.memory_space<vmem>>, vector<1x4x32xf32>
    %307 = vector.shape_cast %306 : vector<1x4x32xf32> to vector<4x32xf32>
    %308 = vector.shape_cast %305 : vector<4x32xf32> to vector<1x4x32xf32>
    tpu.vector_store %arg6[%c5_102, %c0_103, %c0_104], %308 {strides = array<i32>} : memref<8x4x32xf32, #tpu.memory_space<vmem>>, vector<1x4x32xf32>,
    %c6 = arith.constant 6 : index
    %c0_105 = arith.constant 0 : index
    %c0_106 = arith.constant 0 : index
    %309 = vector.load %arg0[%c6, %c0_105, %c0_106] : memref<8x4x8xf32, #tpu.memory_space<vmem>>, vector<1x4x8xf32>
    %310 = vector.shape_cast %309 : vector<1x4x8xf32> to vector<4x8xf32>
    %cst_107 = arith.constant dense<0.000000e+00> : vector<4x8xf32>
    %311 = tpu.matmul %305, %2, %cst_107 {dimension_numbers = #tpu.dot_dimension_numbers<[1], [0], [0], [1], [0, 0, 1, 1], [], []>} : vector<4x32xf32>, vector<32x8xf32>, vector<4x8xf32> -> vector<4x8xf32>
    %cst_108 = arith.constant dense<0.000000e+00> : vector<4x8xf32>
    %312 = tpu.matmul %310, %0, %cst_108 {dimension_numbers = #tpu.dot_dimension_numbers<[1], [0], [0], [1], [0, 0, 1, 1], [], []>} : vector<4x8xf32>, vector<8x8xf32>, vector<4x8xf32> -> vector<4x8xf32>
    %313 = arith.addf %311, %312 : vector<4x8xf32>
    %314 = arith.addf %313, %5 : vector<4x8xf32>
    %315 = math.tanh %314 : vector<4x8xf32>
    %cst_109 = arith.constant dense<0.000000e+00> : vector<4x8xf32>
    %316 = tpu.matmul %315, %1, %cst_109 {dimension_numbers = #tpu.dot_dimension_numbers<[1], [0], [0], [1], [0, 0, 1, 1], [], []>} : vector<4x8xf32>, vector<8x8xf32>, vector<4x8xf32> -> vector<4x8xf32>
    %317 = arith.addf %316, %8 : vector<4x8xf32>
    %cst_110 = arith.constant dense<0xFF800000> : vector<4xf32>
    %318 = vector.multi_reduction <maximumf>, %317, %cst_110 [1] : vector<4x8xf32> to vector<4xf32>
    %319 = vector.shape_cast %318 : vector<4xf32> to vector<4x1xf32>
    %320 = vector.broadcast %319 : vector<4x1xf32> to vector<4x8xf32>
    %321 = arith.subf %317, %320 : vector<4x8xf32>
    %322 = math.exp %321 : vector<4x8xf32>
    %cst_111 = arith.constant dense<0.000000e+00> : vector<4xf32>
    %323 = vector.multi_reduction <add>, %322, %cst_111 [1] : vector<4x8xf32> to vector<4xf32>
    %324 = vector.shape_cast %323 : vector<4xf32> to vector<4x1xf32>
    %325 = tpu.reciprocal %324 : vector<4x1xf32> -> vector<4x1xf32>
    %326 = vector.broadcast %325 : vector<4x1xf32> to vector<4x8xf32>
    %327 = arith.mulf %322, %326 : vector<4x8xf32>
    %328 = arith.mulf %310, %327 : vector<4x8xf32>
    %cst_112 = arith.constant dense<0.000000e+00> : vector<4x128xf32>
    %329 = tpu.matmul %328, %9, %cst_112 {dimension_numbers = #tpu.dot_dimension_numbers<[1], [0], [0], [1], [0, 0, 1, 1], [], []>} : vector<4x8xf32>, vector<8x128xf32>, vector<4x128xf32> -> vector<4x128xf32>
    %cst_113 = arith.constant dense<0.000000e+00> : vector<4x128xf32>
    %330 = tpu.matmul %305, %10, %cst_113 {dimension_numbers = #tpu.dot_dimension_numbers<[1], [0], [0], [1], [0, 0, 1, 1], [], []>} : vector<4x32xf32>, vector<32x128xf32>, vector<4x128xf32> -> vector<4x128xf32>
    %331 = arith.addf %329, %330 : vector<4x128xf32>
    %332 = arith.addf %331, %13 : vector<4x128xf32>
    %333 = vector.extract_strided_slice %332 {offsets = [0, 0], sizes = [4, 32], strides = [1, 1]} : vector<4x128xf32> to vector<4x32xf32>
    %334 = arith.negf %333 : vector<4x32xf32>
    %335 = math.exp %334 : vector<4x32xf32>
    %cst_114 = arith.constant 1.000000e+00 : f32
    %336 = vector.broadcast %cst_114 : f32 to vector<4x32xf32>
    %337 = arith.addf %336, %335 : vector<4x32xf32>
    %338 = arith.divf %336, %337 : vector<4x32xf32>
    %339 = vector.extract_strided_slice %332 {offsets = [0, 32], sizes = [4, 32], strides = [1, 1]} : vector<4x128xf32> to vector<4x32xf32>
    %340 = arith.negf %339 : vector<4x32xf32>
    %341 = math.exp %340 : vector<4x32xf32>
    %cst_115 = arith.constant 1.000000e+00 : f32
    %342 = vector.broadcast %cst_115 : f32 to vector<4x32xf32>
    %343 = arith.addf %342, %341 : vector<4x32xf32>
    %344 = arith.divf %342, %343 : vector<4x32xf32>
    %345 = vector.extract_strided_slice %332 {offsets = [0, 64], sizes = [4, 32], strides = [1, 1]} : vector<4x128xf32> to vector<4x32xf32>
    %346 = vector.extract_strided_slice %332 {offsets = [0, 96], sizes = [4, 32], strides = [1, 1]} : vector<4x128xf32> to vector<4x32xf32>
    %347 = arith.mulf %338, %346 : vector<4x32xf32>
    %348 = arith.addf %345, %347 : vector<4x32xf32>
    %349 = math.tanh %348 : vector<4x32xf32>
    %cst_116 = arith.constant 1.000000e+00 : f32
    %350 = vector.broadcast %cst_116 : f32 to vector<4x32xf32>
    %351 = arith.subf %350, %344 : vector<4x32xf32>
    %352 = arith.mulf %351, %349 : vector<4x32xf32>
    %353 = arith.mulf %344, %305 : vector<4x32xf32>
    %354 = arith.addf %352, %353 : vector<4x32xf32>
    %c6_117 = arith.constant 6 : index
    %c0_118 = arith.constant 0 : index
    %c0_119 = arith.constant 0 : index
    %355 = vector.load %arg6[%c6_117, %c0_118, %c0_119] : memref<8x4x32xf32, #tpu.memory_space<vmem>>, vector<1x4x32xf32>
    %356 = vector.shape_cast %355 : vector<1x4x32xf32> to vector<4x32xf32>
    %357 = vector.shape_cast %354 : vector<4x32xf32> to vector<1x4x32xf32>
    tpu.vector_store %arg6[%c6_117, %c0_118, %c0_119], %357 {strides = array<i32>} : memref<8x4x32xf32, #tpu.memory_space<vmem>>, vector<1x4x32xf32>,
    %c7 = arith.constant 7 : index
    %c0_120 = arith.constant 0 : index
    %c0_121 = arith.constant 0 : index
    %358 = vector.load %arg0[%c7, %c0_120, %c0_121] : memref<8x4x8xf32, #tpu.memory_space<vmem>>, vector<1x4x8xf32>
    %359 = vector.shape_cast %358 : vector<1x4x8xf32> to vector<4x8xf32>
    %cst_122 = arith.constant dense<0.000000e+00> : vector<4x8xf32>
    %360 = tpu.matmul %354, %2, %cst_122 {dimension_numbers = #tpu.dot_dimension_numbers<[1], [0], [0], [1], [0, 0, 1, 1], [], []>} : vector<4x32xf32>, vector<32x8xf32>, vector<4x8xf32> -> vector<4x8xf32>
    %cst_123 = arith.constant dense<0.000000e+00> : vector<4x8xf32>
    %361 = tpu.matmul %359, %0, %cst_123 {dimension_numbers = #tpu.dot_dimension_numbers<[1], [0], [0], [1], [0, 0, 1, 1], [], []>} : vector<4x8xf32>, vector<8x8xf32>, vector<4x8xf32> -> vector<4x8xf32>
    %362 = arith.addf %360, %361 : vector<4x8xf32>
    %363 = arith.addf %362, %5 : vector<4x8xf32>
    %364 = math.tanh %363 : vector<4x8xf32>
    %cst_124 = arith.constant dense<0.000000e+00> : vector<4x8xf32>
    %365 = tpu.matmul %364, %1, %cst_124 {dimension_numbers = #tpu.dot_dimension_numbers<[1], [0], [0], [1], [0, 0, 1, 1], [], []>} : vector<4x8xf32>, vector<8x8xf32>, vector<4x8xf32> -> vector<4x8xf32>
    %366 = arith.addf %365, %8 : vector<4x8xf32>
    %cst_125 = arith.constant dense<0xFF800000> : vector<4xf32>
    %367 = vector.multi_reduction <maximumf>, %366, %cst_125 [1] : vector<4x8xf32> to vector<4xf32>
    %368 = vector.shape_cast %367 : vector<4xf32> to vector<4x1xf32>
    %369 = vector.broadcast %368 : vector<4x1xf32> to vector<4x8xf32>
    %370 = arith.subf %366, %369 : vector<4x8xf32>
    %371 = math.exp %370 : vector<4x8xf32>
    %cst_126 = arith.constant dense<0.000000e+00> : vector<4xf32>
    %372 = vector.multi_reduction <add>, %371, %cst_126 [1] : vector<4x8xf32> to vector<4xf32>
    %373 = vector.shape_cast %372 : vector<4xf32> to vector<4x1xf32>
    %374 = tpu.reciprocal %373 : vector<4x1xf32> -> vector<4x1xf32>
    %375 = vector.broadcast %374 : vector<4x1xf32> to vector<4x8xf32>
    %376 = arith.mulf %371, %375 : vector<4x8xf32>
    %377 = arith.mulf %359, %376 : vector<4x8xf32>
    %cst_127 = arith.constant dense<0.000000e+00> : vector<4x128xf32>
    %378 = tpu.matmul %377, %9, %cst_127 {dimension_numbers = #tpu.dot_dimension_numbers<[1], [0], [0], [1], [0, 0, 1, 1], [], []>} : vector<4x8xf32>, vector<8x128xf32>, vector<4x128xf32> -> vector<4x128xf32>
    %cst_128 = arith.constant dense<0.000000e+00> : vector<4x128xf32>
    %379 = tpu.matmul %354, %10, %cst_128 {dimension_numbers = #tpu.dot_dimension_numbers<[1], [0], [0], [1], [0, 0, 1, 1], [], []>} : vector<4x32xf32>, vector<32x128xf32>, vector<4x128xf32> -> vector<4x128xf32>
    %380 = arith.addf %378, %379 : vector<4x128xf32>
    %381 = arith.addf %380, %13 : vector<4x128xf32>
    %382 = vector.extract_strided_slice %381 {offsets = [0, 0], sizes = [4, 32], strides = [1, 1]} : vector<4x128xf32> to vector<4x32xf32>
    %383 = arith.negf %382 : vector<4x32xf32>
    %384 = math.exp %383 : vector<4x32xf32>
    %cst_129 = arith.constant 1.000000e+00 : f32
    %385 = vector.broadcast %cst_129 : f32 to vector<4x32xf32>
    %386 = arith.addf %385, %384 : vector<4x32xf32>
    %387 = arith.divf %385, %386 : vector<4x32xf32>
    %388 = vector.extract_strided_slice %381 {offsets = [0, 32], sizes = [4, 32], strides = [1, 1]} : vector<4x128xf32> to vector<4x32xf32>
    %389 = arith.negf %388 : vector<4x32xf32>
    %390 = math.exp %389 : vector<4x32xf32>
    %cst_130 = arith.constant 1.000000e+00 : f32
    %391 = vector.broadcast %cst_130 : f32 to vector<4x32xf32>
    %392 = arith.addf %391, %390 : vector<4x32xf32>
    %393 = arith.divf %391, %392 : vector<4x32xf32>
    %394 = vector.extract_strided_slice %381 {offsets = [0, 64], sizes = [4, 32], strides = [1, 1]} : vector<4x128xf32> to vector<4x32xf32>
    %395 = vector.extract_strided_slice %381 {offsets = [0, 96], sizes = [4, 32], strides = [1, 1]} : vector<4x128xf32> to vector<4x32xf32>
    %396 = arith.mulf %387, %395 : vector<4x32xf32>
    %397 = arith.addf %394, %396 : vector<4x32xf32>
    %398 = math.tanh %397 : vector<4x32xf32>
    %cst_131 = arith.constant 1.000000e+00 : f32
    %399 = vector.broadcast %cst_131 : f32 to vector<4x32xf32>
    %400 = arith.subf %399, %393 : vector<4x32xf32>
    %401 = arith.mulf %400, %398 : vector<4x32xf32>
    %402 = arith.mulf %393, %354 : vector<4x32xf32>
    %403 = arith.addf %401, %402 : vector<4x32xf32>
    %c7_132 = arith.constant 7 : index
    %c0_133 = arith.constant 0 : index
    %c0_134 = arith.constant 0 : index
    %404 = vector.load %arg6[%c7_132, %c0_133, %c0_134] : memref<8x4x32xf32, #tpu.memory_space<vmem>>, vector<1x4x32xf32>
    %405 = vector.shape_cast %404 : vector<1x4x32xf32> to vector<4x32xf32>
    %406 = vector.shape_cast %403 : vector<4x32xf32> to vector<1x4x32xf32>
    tpu.vector_store %arg6[%c7_132, %c0_133, %c0_134], %406 {strides = array<i32>} : memref<8x4x32xf32, #tpu.memory_space<vmem>>, vector<1x4x32xf32>,
    return
  }
}

</mosaic_0001>

<llo_original>
// kernel: encoder_forward.1
$region0: #{encoder_forward.1}
  #allocation0 [shape = 'u32[]', space=smem, size = 0x4, offset = 0x4, fixed_abs, tag = 'smem constant byte address 0x4 - core index']
  #allocation1 [shape = 'u32[144,128]{1,0:T(1,128)}', space=vmem, size = 0x12000, scoped, tag = 'internal scratch']
  %s0 = inlined_call_operand.vmem [shape: f32[8,4,8], index: 0, kind: input, shape index: {}]
  %s1 = inlined_call_operand.vmem [shape: f32[4,32], index: 1, kind: input, shape index: {}]
  %s2 = inlined_call_operand.vmem [shape: f32[48,8], index: 2, kind: input, shape index: {}]
  %s3 = inlined_call_operand.vmem [shape: f32[2,8], index: 3, kind: input, shape index: {}]
  %s4 = inlined_call_operand.vmem [shape: f32[40,128], index: 4, kind: input, shape index: {}]
  %s5 = inlined_call_operand.vmem [shape: f32[1,128], index: 5, kind: input, shape index: {}]
  %s6 = inlined_call_operand.vmem [shape: f32[8,4,32], index: 6, kind: output, shape index: {}]
  %s7 = sld [smem:[#allocation0]]
  $region34: #{encoder_forward.1} parent=0
    _
  %s9 = ssub.s32 1, %s7
  %s10 = scalar_select 0, %s9, %s7
  // Predicated region
  $region2: #{encoder_forward.1} parent=0 // pred_check
    _
  $region3: #{encoder_forward.1} parent=0 // pred_check_branch
    %12 = sbr.rel (0) target = $region5
  $region4: #{encoder_forward.1} parent=0 // pred_region
    _
  $region5: #{encoder_forward.1} parent=0 // pred_fallthru
    _
  // Predicated region
  $region6: #{encoder_forward.1} parent=0 // pred_check
    _
  $region7: #{encoder_forward.1} parent=0 // pred_check_branch
    %14 = sbr.rel (0) target = $region9
  $region8: #{encoder_forward.1} parent=0 // pred_region
    _
  $region9: #{encoder_forward.1} parent=0 // pred_fallthru
    _
  // Predicated region
  $region10: #{encoder_forward.1} parent=0 // pred_check
    _
  $region11: #{encoder_forward.1} parent=0 // pred_check_branch
    %16 = sbr.rel (0) target = $region13
  $region12: #{encoder_forward.1} parent=0 // pred_region
    _
  $region13: #{encoder_forward.1} parent=0 // pred_fallthru
    _
  // Predicated region
  $region14: #{encoder_forward.1} parent=0 // pred_check
    _
  $region15: #{encoder_forward.1} parent=0 // pred_check_branch
    %18 = sbr.rel (0) target = $region17
  $region16: #{encoder_forward.1} parent=0 // pred_region
    _
  $region17: #{encoder_forward.1} parent=0 // pred_fallthru
    _
  // Predicated region
  $region18: #{encoder_forward.1} parent=0 // pred_check
    _
  $region19: #{encoder_forward.1} parent=0 // pred_check_branch
    %20 = sbr.rel (0) target = $region21
  $region20: #{encoder_forward.1} parent=0 // pred_region
    _
  $region21: #{encoder_forward.1} parent=0 // pred_fallthru
    _
  // Predicated region
  $region22: #{encoder_forward.1} parent=0 // pred_check
    _
  $region23: #{encoder_forward.1} parent=0 // pred_check_branch
    %22 = sbr.rel (0) target = $region25
  $region24: #{encoder_forward.1} parent=0 // pred_region
    _
  $region25: #{encoder_forward.1} parent=0 // pred_fallthru
    _
  %v23 = vld [vmem:[%s2] sm:$0xff]
  %v24 = vld [vmem:[%s2 + $0x8] sm:$0xff]
  %v25 = vld [vmem:[%s2 + $0x10] sm:$0xff]
  %v26 = vld [vmem:[%s2 + $0x18] sm:$0xff]
  %v27 = vld [vmem:[%s2 + $0x20] sm:$0xff]
  %v28 = vld [vmem:[%s2 + $0x28] sm:$0xff]
  %v29 = vld [vmem:[%s3] sm:$0x1]
  %v30 = vlaneseq
  %v31 = vshrl.u32 %v30, 7
  %v32 = vsub.s32 0, %v31
  %v33 = vrot.slane %v29, %v32
  %v34 = vld [vmem:[%s3 + $0x1] sm:$0x1]
  %v35 = vlaneseq
  %v36 = vshrl.u32 %v35, 7
  %v37 = vsub.s32 0, %v36
  %v38 = vrot.slane %v34, %v37
  %v39 = vld [vmem:[%s4] sm:$0xff]
  %v40 = vld [vmem:[%s4 + $0x8] sm:$0xff]
  %v41 = vld [vmem:[%s4 + $0x10] sm:$0xff]
  %v42 = vld [vmem:[%s4 + $0x18] sm:$0xff]
  %v43 = vld [vmem:[%s4 + $0x20] sm:$0xff]
  %v44 = vld [vmem:[%s5] sm:$0x1]
  %v46 = vlaneseq
  %v47 = vshrl.u32 %v46, 7
  %v48 = vsub.s32 0, %v47
  %v49 = vrot.slane %v44, %v48
  %v51 = vld [vmem:[%s1] sm:$0xf]
  %v52 = vld [vmem:[%s0] sm:$0xf]
  %vm53 = vcmask 64512
  %v55 = vsel %vm53, %v52, 0
  %57 = vmatprep.subr.mxu0 0.0
  %58 = vmatpush1.msra.mxu0 0.0
  %59 = vmatprep.subr.mxu0 0.0
  %60 = vmatpush1.msra.mxu0 0.0
  %61 = vmatprep.subr.mxu0 0.0
  %62 = vmatpush1.msra.mxu0 0.0
  %63 = vmatprep.subr.mxu0 0.0
  %64 = vmatpush1.msra.mxu0 0.0
  %65 = vmatprep.subr.mxu0 0.0
  %66 = vmatpush1.msra.mxu0 0.0
  %67 = vmatprep.subr.mxu0 0.0
  %68 = vmatpush1.msra.mxu0 0.0
  %69 = vmatprep.subr.mxu0 0.0
  %70 = vmatpush1.msra.mxu0 0.0
  %71 = vmatprep.subr.mxu0 0.0
  %72 = vmatpush1.msra.mxu0 0.0
  %73 = vmatprep.subr.mxu0 0.0
  %74 = vmatpush1.msra.mxu0 0.0
  %75 = vmatprep.subr.mxu0 0.0
  %76 = vmatpush1.msra.mxu0 0.0
  %77 = vmatprep.subr.mxu0 0.0
  %78 = vmatpush1.msra.mxu0 0.0
  %79 = vmatprep.subr.mxu0 0.0
  %80 = vmatpush1.msra.mxu0 0.0
  %81 = vmatprep.subr.mxu0 0.0
  %82 = vmatpush1.msra.mxu0 0.0
  %83 = vmatprep.subr.mxu0 0.0
  %84 = vmatpush1.msra.mxu0 0.0
  %85 = vmatprep.subr.mxu0 0.0
  %86 = vmatpush1.msra.mxu0 0.0
  %87 = vmatprep.subr.mxu0 0.0
  %88 = vmatpush1.msra.mxu0 %v23
  %89 = vmatprep.subr.mxu0 0.0
  %90 = vmatpush2.msra.mxu0 0.0
  %91 = vmatprep.subr.mxu0 0.0
  %92 = vmatpush2.msra.mxu0 0.0
  %93 = vmatprep.subr.mxu0 0.0
  %94 = vmatpush2.msra.mxu0 0.0
  %95 = vmatprep.subr.mxu0 0.0
  %96 = vmatpush2.msra.mxu0 0.0
  %97 = vmatprep.subr.mxu0 0.0
  %98 = vmatpush2.msra.mxu0 0.0
  %99 = vmatprep.subr.mxu0 0.0
  %100 = vmatpush2.msra.mxu0 0.0
  %101 = vmatprep.subr.mxu0 0.0
  %102 = vmatpush2.msra.mxu0 0.0
  %103 = vmatprep.subr.mxu0 0.0
  %104 = vmatpush2.msra.mxu0 0.0
  %105 = vmatprep.subr.mxu0 0.0
  %106 = vmatpush2.msra.mxu0 0.0
  %107 = vmatprep.subr.mxu0 0.0
  %108 = vmatpush2.msra.mxu0 0.0
  %109 = vmatprep.subr.mxu0 0.0
  %110 = vmatpush2.msra.mxu0 0.0
  %111 = vmatprep.subr.mxu0 0.0
  %112 = vmatpush2.msra.mxu0 0.0
  %113 = vmatprep.subr.mxu0 0.0
  %114 = vmatpush2.msra.mxu0 0.0
  %115 = vmatprep.subr.mxu0 0.0
  %116 = vmatpush2.msra.mxu0 0.0
  %117 = vmatprep.subr.mxu0 0.0
  %118 = vmatpush2.msra.mxu0 0.0
  %119 = vmatprep.subr.mxu0 0.0
  %120 = vmatpush2.msra.mxu0 0.0
  %121 = vmatprep.mubr.f32.mxu0 0.0
  %122 = vmatmul.mubr.f32.gmra.mxu0 %v55
  %v123 = vpop.f32.mrf.mxu0
  %v124 = vadd.f32 0.0, %v123
  %v125 = vpop.f32.mrf.mxu0
  %126 = vdwg.mxu0
  %vm127 = vcmask 261120
  %v129 = vsel %vm127, %v51, 0
  %131 = vmatprep.subr.mxu0 0.0
  %132 = vmatpush1.msra.mxu0 0.0
  %133 = vmatprep.subr.mxu0 0.0
  %134 = vmatpush1.msra.mxu0 0.0
  %135 = vmatprep.subr.mxu0 0.0
  %136 = vmatpush1.msra.mxu0 0.0
  %137 = vmatprep.subr.mxu0 0.0
  %138 = vmatpush1.msra.mxu0 0.0
  %139 = vmatprep.subr.mxu0 0.0
  %140 = vmatpush1.msra.mxu0 0.0
  %141 = vmatprep.subr.mxu0 0.0
  %142 = vmatpush1.msra.mxu0 0.0
  %143 = vmatprep.subr.mxu0 0.0
  %144 = vmatpush1.msra.mxu0 0.0
  %145 = vmatprep.subr.mxu0 0.0
  %146 = vmatpush1.msra.mxu0 0.0
  %147 = vmatprep.subr.mxu0 0.0
  %148 = vmatpush1.msra.mxu0 0.0
  %149 = vmatprep.subr.mxu0 0.0
  %150 = vmatpush1.msra.mxu0 0.0
  %151 = vmatprep.subr.mxu0 0.0
  %152 = vmatpush1.msra.mxu0 0.0
  %153 = vmatprep.subr.mxu0 0.0
  %154 = vmatpush1.msra.mxu0 0.0
  %155 = vmatprep.subr.mxu0 0.0
  %156 = vmatpush1.msra.mxu0 %v28
  %157 = vmatprep.subr.mxu0 0.0
  %158 = vmatpush1.msra.mxu0 %v27
  %159 = vmatprep.subr.mxu0 0.0
  %160 = vmatpush1.msra.mxu0 %v26
  %161 = vmatprep.subr.mxu0 0.0
  %162 = vmatpush1.msra.mxu0 %v25
  %163 = vmatprep.subr.mxu0 0.0
  %164 = vmatpush2.msra.mxu0 0.0
  %165 = vmatprep.subr.mxu0 0.0
  %166 = vmatpush2.msra.mxu0 0.0
  %167 = vmatprep.subr.mxu0 0.0
  %168 = vmatpush2.msra.mxu0 0.0
  %169 = vmatprep.subr.mxu0 0.0
  %170 = vmatpush2.msra.mxu0 0.0
  %171 = vmatprep.subr.mxu0 0.0
  %172 = vmatpush2.msra.mxu0 0.0
  %173 = vmatprep.subr.mxu0 0.0
  %174 = vmatpush2.msra.mxu0 0.0
  %175 = vmatprep.subr.mxu0 0.0
  %176 = vmatpush2.msra.mxu0 0.0
  %177 = vmatprep.subr.mxu0 0.0
  %178 = vmatpush2.msra.mxu0 0.0
  %179 = vmatprep.subr.mxu0 0.0
  %180 = vmatpush2.msra.mxu0 0.0
  %181 = vmatprep.subr.mxu0 0.0
  %182 = vmatpush2.msra.mxu0 0.0
  %183 = vmatprep.subr.mxu0 0.0
  %184 = vmatpush2.msra.mxu0 0.0
  %185 = vmatprep.subr.mxu0 0.0
  %186 = vmatpush2.msra.mxu0 0.0
  %187 = vmatprep.subr.mxu0 0.0
  %188 = vmatpush2.msra.mxu0 0.0
  %189 = vmatprep.subr.mxu0 0.0
  %190 = vmatpush2.msra.mxu0 0.0
  %191 = vmatprep.subr.mxu0 0.0
  %192 = vmatpush2.msra.mxu0 0.0
  %193 = vmatprep.subr.mxu0 0.0
  %194 = vmatpush2.msra.mxu0 0.0
  %195 = vmatprep.mubr.f32.mxu0 0.0
  %196 = vmatmul.mubr.f32.gmra.mxu0 %v129
  %v197 = vpop.f32.mrf.mxu0
  %v198 = vadd.f32 %v124, %v197
  %v199 = vpop.f32.mrf.mxu0
  %200 = vdwg.mxu0
  %v201 = vadd.f32 %v198, %v33
  %v202 = vtanh.pop %v201
  %v204 = vsel %vm53, %v202, 0
  %206 = vmatprep.subr.mxu0 0.0
  %207 = vmatpush1.msra.mxu0 0.0
  %208 = vmatprep.subr.mxu0 0.0
  %209 = vmatpush1.msra.mxu0 0.0
  %210 = vmatprep.subr.mxu0 0.0
  %211 = vmatpush1.msra.mxu0 0.0
  %212 = vmatprep.subr.mxu0 0.0
  %213 = vmatpush1.msra.mxu0 0.0
  %214 = vmatprep.subr.mxu0 0.0
  %215 = vmatpush1.msra.mxu0 0.0
  %216 = vmatprep.subr.mxu0 0.0
  %217 = vmatpush1.msra.mxu0 0.0
  %218 = vmatprep.subr.mxu0 0.0
  %219 = vmatpush1.msra.mxu0 0.0
  %220 = vmatprep.subr.mxu0 0.0
  %221 = vmatpush1.msra.mxu0 0.0
  %222 = vmatprep.subr.mxu0 0.0
  %223 = vmatpush1.msra.mxu0 0.0
  %224 = vmatprep.subr.mxu0 0.0
  %225 = vmatpush1.msra.mxu0 0.0
  %226 = vmatprep.subr.mxu0 0.0
  %227 = vmatpush1.msra.mxu0 0.0
  %228 = vmatprep.subr.mxu0 0.0
  %229 = vmatpush1.msra.mxu0 0.0
  %230 = vmatprep.subr.mxu0 0.0
  %231 = vmatpush1.msra.mxu0 0.0
  %232 = vmatprep.subr.mxu0 0.0
  %233 = vmatpush1.msra.mxu0 0.0
  %234 = vmatprep.subr.mxu0 0.0
  %235 = vmatpush1.msra.mxu0 0.0
  %236 = vmatprep.subr.mxu0 0.0
  %237 = vmatpush1.msra.mxu0 %v24
  %238 = vmatprep.subr.mxu0 0.0
  %239 = vmatpush2.msra.mxu0 0.0
  %240 = vmatprep.subr.mxu0 0.0
  %241 = vmatpush2.msra.mxu0 0.0
  %242 = vmatprep.subr.mxu0 0.0
  %243 = vmatpush2.msra.mxu0 0.0
  %244 = vmatprep.subr.mxu0 0.0
  %245 = vmatpush2.msra.mxu0 0.0
  %246 = vmatprep.subr.mxu0 0.0
  %247 = vmatpush2.msra.mxu0 0.0
  %248 = vmatprep.subr.mxu0 0.0
  %249 = vmatpush2.msra.mxu0 0.0
  %250 = vmatprep.subr.mxu0 0.0
  %251 = vmatpush2.msra.mxu0 0.0
  %252 = vmatprep.subr.mxu0 0.0
  %253 = vmatpush2.msra.mxu0 0.0
  %254 = vmatprep.subr.mxu0 0.0
  %255 = vmatpush2.msra.mxu0 0.0
  %256 = vmatprep.subr.mxu0 0.0
  %257 = vmatpush2.msra.mxu0 0.0
  %258 = vmatprep.subr.mxu0 0.0
  %259 = vmatpush2.msra.mxu0 0.0
  %260 = vmatprep.subr.mxu0 0.0
  %261 = vmatpush2.msra.mxu0 0.0
  %262 = vmatprep.subr.mxu0 0.0
  %263 = vmatpush2.msra.mxu0 0.0
  %264 = vmatprep.subr.mxu0 0.0
  %265 = vmatpush2.msra.mxu0 0.0
  %266 = vmatprep.subr.mxu0 0.0
  %267 = vmatpush2.msra.mxu0 0.0
  %268 = vmatprep.subr.mxu0 0.0
  %269 = vmatpush2.msra.mxu0 0.0
  %270 = vmatprep.mubr.f32.mxu0 0.0
  %271 = vmatmul.mubr.f32.gmra.mxu0 %v204
  %v272 = vpop.f32.mrf.mxu0
  %v273 = vadd.f32 %v38, %v272
  %v274 = vpop.f32.mrf.mxu0
  %275 = vdwg.mxu0
  %vm276 = vcmask 60416
  %v277 = vsel %vm276, %v273, -inf
  %278 = vmax.xlane.f32.xlu0 %v277
  %v279 = vpop.xlane.xlu0 %278
  %v280 = vsub.f32 %v273, %v279
  %v281 = vmul.f32 %v280, 1.442695
  %v282 = vpow.pop %v281
  %v283 = vsel %vm276, %v282, 0.0
  %284 = vadd.xlane.f32.xlu0 %v283
  %v285 = vpop.xlane.xlu0 %284
  %v286 = vrcp.pop %v285
  %v287 = vmul.f32 %v282, %v286
  %v288 = vmul.f32 %v52, %v287
  %289 = vmatprep.subr.mxu0 0.0
  %290 = vmatpush1.msra.mxu0 0.0
  %291 = vmatprep.subr.mxu0 0.0
  %292 = vmatpush1.msra.mxu0 0.0
  %293 = vmatprep.subr.mxu0 0.0
  %294 = vmatpush1.msra.mxu0 0.0
  %295 = vmatprep.subr.mxu0 0.0
  %296 = vmatpush1.msra.mxu0 0.0
  %297 = vmatprep.subr.mxu0 0.0
  %298 = vmatpush1.msra.mxu0 0.0
  %299 = vmatprep.subr.mxu0 0.0
  %300 = vmatpush1.msra.mxu0 0.0
  %301 = vmatprep.subr.mxu0 0.0
  %302 = vmatpush1.msra.mxu0 0.0
  %303 = vmatprep.subr.mxu0 0.0
  %304 = vmatpush1.msra.mxu0 0.0
  %305 = vmatprep.subr.mxu0 0.0
  %306 = vmatpush1.msra.mxu0 0.0
  %307 = vmatprep.subr.mxu0 0.0
  %308 = vmatpush1.msra.mxu0 0.0
  %309 = vmatprep.subr.mxu0 0.0
  %310 = vmatpush1.msra.mxu0 0.0
  %311 = vmatprep.subr.mxu0 0.0
  %312 = vmatpush1.msra.mxu0 0.0
  %313 = vmatprep.subr.mxu0 0.0
  %314 = vmatpush1.msra.mxu0 %v43
  %315 = vmatprep.subr.mxu0 0.0
  %316 = vmatpush1.msra.mxu0 %v42
  %317 = vmatprep.subr.mxu0 0.0
  %318 = vmatpush1.msra.mxu0 %v41
  %319 = vmatprep.subr.mxu0 0.0
  %320 = vmatpush1.msra.mxu0 %v40
  %321 = vmatprep.subr.mxu0 0.0
  %322 = vmatpush2.msra.mxu0 0.0
  %323 = vmatprep.subr.mxu0 0.0
  %324 = vmatpush2.msra.mxu0 0.0
  %325 = vmatprep.subr.mxu0 0.0
  %326 = vmatpush2.msra.mxu0 0.0
  %327 = vmatprep.subr.mxu0 0.0
  %328 = vmatpush2.msra.mxu0 0.0
  %329 = vmatprep.subr.mxu0 0.0
  %330 = vmatpush2.msra.mxu0 0.0
  %331 = vmatprep.subr.mxu0 0.0
  %332 = vmatpush2.msra.mxu0 0.0
  %333 = vmatprep.subr.mxu0 0.0
  %334 = vmatpush2.msra.mxu0 0.0
  %335 = vmatprep.subr.mxu0 0.0
  %336 = vmatpush2.msra.mxu0 0.0
  %337 = vmatprep.subr.mxu0 0.0
  %338 = vmatpush2.msra.mxu0 0.0
  %339 = vmatprep.subr.mxu0 0.0
  %340 = vmatpush2.msra.mxu0 0.0
  %341 = vmatprep.subr.mxu0 0.0
  %342 = vmatpush2.msra.mxu0 0.0
  %343 = vmatprep.subr.mxu0 0.0
  %344 = vmatpush2.msra.mxu0 0.0
  %345 = vmatprep.subr.mxu0 0.0
  %346 = vmatpush2.msra.mxu0 0.0
  %347 = vmatprep.subr.mxu0 0.0
  %348 = vmatpush2.msra.mxu0 0.0
  %349 = vmatprep.subr.mxu0 0.0
  %350 = vmatpush2.msra.mxu0 0.0
  %351 = vmatprep.subr.mxu0 0.0
  %352 = vmatpush2.msra.mxu0 0.0
  %353 = vmatprep.mubr.f32.mxu0 0.0
  %354 = vmatmul.mubr.f32.gmra.mxu0 %v129
  %v355 = vpop.f32.mrf.mxu0
  %v356 = vadd.f32 0.0, %v355
  %v357 = vpop.f32.mrf.mxu0
  %358 = vdwg.mxu0
  %v360 = vsel %vm53, %v288, 0
  %362 = vmatprep.subr.mxu0 0.0
  %363 = vmatpush1.msra.mxu0 0.0
  %364 = vmatprep.subr.mxu0 0.0
  %365 = vmatpush1.msra.mxu0 0.0
  %366 = vmatprep.subr.mxu0 0.0
  %367 = vmatpush1.msra.mxu0 0.0
  %368 = vmatprep.subr.mxu0 0.0
  %369 = vmatpush1.msra.mxu0 0.0
  %370 = vmatprep.subr.mxu0 0.0
  %371 = vmatpush1.msra.mxu0 0.0
  %372 = vmatprep.subr.mxu0 0.0
  %373 = vmatpush1.msra.mxu0 0.0
  %374 = vmatprep.subr.mxu0 0.0
  %375 = vmatpush1.msra.mxu0 0.0
  %376 = vmatprep.subr.mxu0 0.0
  %377 = vmatpush1.msra.mxu0 0.0
  %378 = vmatprep.subr.mxu0 0.0
  %379 = vmatpush1.msra.mxu0 0.0
  %380 = vmatprep.subr.mxu0 0.0
  %381 = vmatpush1.msra.mxu0 0.0
  %382 = vmatprep.subr.mxu0 0.0
  %383 = vmatpush1.msra.mxu0 0.0
  %384 = vmatprep.subr.mxu0 0.0
  %385 = vmatpush1.msra.mxu0 0.0
  %386 = vmatprep.subr.mxu0 0.0
  %387 = vmatpush1.msra.mxu0 0.0
  %388 = vmatprep.subr.mxu0 0.0
  %389 = vmatpush1.msra.mxu0 0.0
  %390 = vmatprep.subr.mxu0 0.0
  %391 = vmatpush1.msra.mxu0 0.0
  %392 = vmatprep.subr.mxu0 0.0
  %393 = vmatpush1.msra.mxu0 %v39
  %394 = vmatprep.subr.mxu0 0.0
  %395 = vmatpush2.msra.mxu0 0.0
  %396 = vmatprep.subr.mxu0 0.0
  %397 = vmatpush2.msra.mxu0 0.0
  %398 = vmatprep.subr.mxu0 0.0
  %399 = vmatpush2.msra.mxu0 0.0
  %400 = vmatprep.subr.mxu0 0.0
  %401 = vmatpush2.msra.mxu0 0.0
  %402 = vmatprep.subr.mxu0 0.0
  %403 = vmatpush2.msra.mxu0 0.0
  %404 = vmatprep.subr.mxu0 0.0
  %405 = vmatpush2.msra.mxu0 0.0
  %406 = vmatprep.subr.mxu0 0.0
  %407 = vmatpush2.msra.mxu0 0.0
  %408 = vmatprep.subr.mxu0 0.0
  %409 = vmatpush2.msra.mxu0 0.0
  %410 = vmatprep.subr.mxu0 0.0
  %411 = vmatpush2.msra.mxu0 0.0
  %412 = vmatprep.subr.mxu0 0.0
  %413 = vmatpush2.msra.mxu0 0.0
  %414 = vmatprep.subr.mxu0 0.0
  %415 = vmatpush2.msra.mxu0 0.0
  %416 = vmatprep.subr.mxu0 0.0
  %417 = vmatpush2.msra.mxu0 0.0
  %418 = vmatprep.subr.mxu0 0.0
  %419 = vmatpush2.msra.mxu0 0.0
  %420 = vmatprep.subr.mxu0 0.0
  %421 = vmatpush2.msra.mxu0 0.0
  %422 = vmatprep.subr.mxu0 0.0
  %423 = vmatpush2.msra.mxu0 0.0
  %424 = vmatprep.subr.mxu0 0.0
  %425 = vmatpush2.msra.mxu0 0.0
  %426 = vmatprep.mubr.f32.mxu0 0.0
  %427 = vmatmul.mubr.f32.gmra.mxu0 %v360
  %v428 = vpop.f32.mrf.mxu0
  %v429 = vadd.f32 %v356, %v428
  %v430 = vpop.f32.mrf.mxu0
  %431 = vdwg.mxu0
  %v432 = vadd.f32 %v429, %v49
  %v433 = vxor.u32 %v432, 2147483648
  %v434 = vmul.f32 %v433, 1.442695
  %v435 = vpow.pop %v434
  %v436 = vadd.f32 %v435, 1.0
  %v437 = vrcp.pop %v436
  %v438 = vmul.f32 1.0, %v437
  %440 = vrot.lane.b32.xlu0 %v432, 32
  %v441 = vpop.permute.xlu0 %440
  %v443 = vmul.f32 %v438, %v441
  %445 = vrot.lane.b32.xlu0 %v443, 64
  %v446 = vpop.permute.xlu0 %445
  %v448 = vadd.f32 %v432, %v446
  %v449 = vtanh.pop %v448
  %v450 = vsub.f32 1.0, %v438
  %452 = vrot.lane.b32.xlu0 %v449, 96
  %v453 = vpop.permute.xlu0 %452
  %v455 = vmul.f32 %v450, %v453
  %456 = vrot.lane.b32.xlu0 %v51, 32
  %v457 = vpop.permute.xlu0 %456
  %v459 = vmul.f32 %v438, %v457
  %v460 = vadd.f32 %v455, %v459
  %462 = vrot.lane.b32.xlu0 %v460, 96
  %v463 = vpop.permute.xlu0 %462
  %vm465 = vcmask 257024
  %466 = vst.msk [vmem:[%s6] sm:$0xf] %vm465, %v463
  %s467 = scalar_lea.vmem %s0, 4
  %v468 = vld [vmem:[%s467] sm:$0xf]
  %v470 = vsel %vm53, %v468, 0
  %472 = vmatprep.subr.mxu0 0.0
  %473 = vmatpush1.msra.mxu0 0.0
  %474 = vmatprep.subr.mxu0 0.0
  %475 = vmatpush1.msra.mxu0 0.0
  %476 = vmatprep.subr.mxu0 0.0
  %477 = vmatpush1.msra.mxu0 0.0
  %478 = vmatprep.subr.mxu0 0.0
  %479 = vmatpush1.msra.mxu0 0.0
  %480 = vmatprep.subr.mxu0 0.0
  %481 = vmatpush1.msra.mxu0 0.0
  %482 = vmatprep.subr.mxu0 0.0
  %483 = vmatpush1.msra.mxu0 0.0
  %484 = vmatprep.subr.mxu0 0.0
  %485 = vmatpush1.msra.mxu0 0.0
  %486 = vmatprep.subr.mxu0 0.0
  %487 = vmatpush1.msra.mxu0 0.0
  %488 = vmatprep.subr.mxu0 0.0
  %489 = vmatpush1.msra.mxu0 0.0
  %490 = vmatprep.subr.mxu0 0.0
  %491 = vmatpush1.msra.mxu0 0.0
  %492 = vmatprep.subr.mxu0 0.0
  %493 = vmatpush1.msra.mxu0 0.0
  %494 = vmatprep.subr.mxu0 0.0
  %495 = vmatpush1.msra.mxu0 0.0
  %496 = vmatprep.subr.mxu0 0.0
  %497 = vmatpush1.msra.mxu0 0.0
  %498 = vmatprep.subr.mxu0 0.0
  %499 = vmatpush1.msra.mxu0 0.0
  %500 = vmatprep.subr.mxu0 0.0
  %501 = vmatpush1.msra.mxu0 0.0
  %502 = vmatprep.subr.mxu0 0.0
  %503 = vmatpush1.msra.mxu0 %v23
  %504 = vmatprep.subr.mxu0 0.0
  %505 = vmatpush2.msra.mxu0 0.0
  %506 = vmatprep.subr.mxu0 0.0
  %507 = vmatpush2.msra.mxu0 0.0
  %508 = vmatprep.subr.mxu0 0.0
  %509 = vmatpush2.msra.mxu0 0.0
  %510 = vmatprep.subr.mxu0 0.0
  %511 = vmatpush2.msra.mxu0 0.0
  %512 = vmatprep.subr.mxu0 0.0
  %513 = vmatpush2.msra.mxu0 0.0
  %514 = vmatprep.subr.mxu0 0.0
  %515 = vmatpush2.msra.mxu0 0.0
  %516 = vmatprep.subr.mxu0 0.0
  %517 = vmatpush2.msra.mxu0 0.0
  %518 = vmatprep.subr.mxu0 0.0
  %519 = vmatpush2.msra.mxu0 0.0
  %520 = vmatprep.subr.mxu0 0.0
  %521 = vmatpush2.msra.mxu0 0.0
  %522 = vmatprep.subr.mxu0 0.0
  %523 = vmatpush2.msra.mxu0 0.0
  %524 = vmatprep.subr.mxu0 0.0
  %525 = vmatpush2.msra.mxu0 0.0
  %526 = vmatprep.subr.mxu0 0.0
  %527 = vmatpush2.msra.mxu0 0.0
  %528 = vmatprep.subr.mxu0 0.0
  %529 = vmatpush2.msra.mxu0 0.0
  %530 = vmatprep.subr.mxu0 0.0
  %531 = vmatpush2.msra.mxu0 0.0
  %532 = vmatprep.subr.mxu0 0.0
  %533 = vmatpush2.msra.mxu0 0.0
  %534 = vmatprep.subr.mxu0 0.0
  %535 = vmatpush2.msra.mxu0 0.0
  %536 = vmatprep.mubr.f32.mxu0 0.0
  %537 = vmatmul.mubr.f32.gmra.mxu0 %v470
  %v538 = vpop.f32.mrf.mxu0
  %v539 = vadd.f32 0.0, %v538
  %v540 = vpop.f32.mrf.mxu0
  %541 = vdwg.mxu0
  %v542 = vsel %vm127, %v463, 0
  %544 = vmatprep.subr.mxu0 0.0
  %545 = vmatpush1.msra.mxu0 0.0
  %546 = vmatprep.subr.mxu0 0.0
  %547 = vmatpush1.msra.mxu0 0.0
  %548 = vmatprep.subr.mxu0 0.0
  %549 = vmatpush1.msra.mxu0 0.0
  %550 = vmatprep.subr.mxu0 0.0
  %551 = vmatpush1.msra.mxu0 0.0
  %552 = vmatprep.subr.mxu0 0.0
  %553 = vmatpush1.msra.mxu0 0.0
  %554 = vmatprep.subr.mxu0 0.0
  %555 = vmatpush1.msra.mxu0 0.0
  %556 = vmatprep.subr.mxu0 0.0
  %557 = vmatpush1.msra.mxu0 0.0
  %558 = vmatprep.subr.mxu0 0.0
  %559 = vmatpush1.msra.mxu0 0.0
  %560 = vmatprep.subr.mxu0 0.0
  %561 = vmatpush1.msra.mxu0 0.0
  %562 = vmatprep.subr.mxu0 0.0
  %563 = vmatpush1.msra.mxu0 0.0
  %564 = vmatprep.subr.mxu0 0.0
  %565 = vmatpush1.msra.mxu0 0.0
  %566 = vmatprep.subr.mxu0 0.0
  %567 = vmatpush1.msra.mxu0 0.0
  %568 = vmatprep.subr.mxu0 0.0
  %569 = vmatpush1.msra.mxu0 %v28
  %570 = vmatprep.subr.mxu0 0.0
  %571 = vmatpush1.msra.mxu0 %v27
  %572 = vmatprep.subr.mxu0 0.0
  %573 = vmatpush1.msra.mxu0 %v26
  %574 = vmatprep.subr.mxu0 0.0
  %575 = vmatpush1.msra.mxu0 %v25
  %576 = vmatprep.subr.mxu0 0.0
  %577 = vmatpush2.msra.mxu0 0.0
  %578 = vmatprep.subr.mxu0 0.0
  %579 = vmatpush2.msra.mxu0 0.0
  %580 = vmatprep.subr.mxu0 0.0
  %581 = vmatpush2.msra.mxu0 0.0
  %582 = vmatprep.subr.mxu0 0.0
  %583 = vmatpush2.msra.mxu0 0.0
  %584 = vmatprep.subr.mxu0 0.0
  %585 = vmatpush2.msra.mxu0 0.0
  %586 = vmatprep.subr.mxu0 0.0
  %587 = vmatpush2.msra.mxu0 0.0
  %588 = vmatprep.subr.mxu0 0.0
  %589 = vmatpush2.msra.mxu0 0.0
  %590 = vmatprep.subr.mxu0 0.0
  %591 = vmatpush2.msra.mxu0 0.0
  %592 = vmatprep.subr.mxu0 0.0
  %593 = vmatpush2.msra.mxu0 0.0
  %594 = vmatprep.subr.mxu0 0.0
  %595 = vmatpush2.msra.mxu0 0.0
  %596 = vmatprep.subr.mxu0 0.0
  %597 = vmatpush2.msra.mxu0 0.0
  %598 = vmatprep.subr.mxu0 0.0
  %599 = vmatpush2.msra.mxu0 0.0
  %600 = vmatprep.subr.mxu0 0.0
  %601 = vmatpush2.msra.mxu0 0.0
  %602 = vmatprep.subr.mxu0 0.0
  %603 = vmatpush2.msra.mxu0 0.0
  %604 = vmatprep.subr.mxu0 0.0
  %605 = vmatpush2.msra.mxu0 0.0
  %606 = vmatprep.subr.mxu0 0.0
  %607 = vmatpush2.msra.mxu0 0.0
  %608 = vmatprep.mubr.f32.mxu0 0.0
  %609 = vmatmul.mubr.f32.gmra.mxu0 %v542
  %v610 = vpop.f32.mrf.mxu0
  %v611 = vadd.f32 %v539, %v610
  %v612 = vpop.f32.mrf.mxu0
  %613 = vdwg.mxu0
  %v614 = vadd.f32 %v611, %v33
  %v615 = vtanh.pop %v614
  %v617 = vsel %vm53, %v615, 0
  %619 = vmatprep.subr.mxu0 0.0
  %620 = vmatpush1.msra.mxu0 0.0
  %621 = vmatprep.subr.mxu0 0.0
  %622 = vmatpush1.msra.mxu0 0.0
  %623 = vmatprep.subr.mxu0 0.0
  %624 = vmatpush1.msra.mxu0 0.0
  %625 = vmatprep.subr.mxu0 0.0
  %626 = vmatpush1.msra.mxu0 0.0
  %627 = vmatprep.subr.mxu0 0.0
  %628 = vmatpush1.msra.mxu0 0.0
  %629 = vmatprep.subr.mxu0 0.0
  %630 = vmatpush1.msra.mxu0 0.0
  %631 = vmatprep.subr.mxu0 0.0
  %632 = vmatpush1.msra.mxu0 0.0
  %633 = vmatprep.subr.mxu0 0.0
  %634 = vmatpush1.msra.mxu0 0.0
  %635 = vmatprep.subr.mxu0 0.0
  %636 = vmatpush1.msra.mxu0 0.0
  %637 = vmatprep.subr.mxu0 0.0
  %638 = vmatpush1.msra.mxu0 0.0
  %639 = vmatprep.subr.mxu0 0.0
  %640 = vmatpush1.msra.mxu0 0.0
  %641 = vmatprep.subr.mxu0 0.0
  %642 = vmatpush1.msra.mxu0 0.0
  %643 = vmatprep.subr.mxu0 0.0
  %644 = vmatpush1.msra.mxu0 0.0
  %645 = vmatprep.subr.mxu0 0.0
  %646 = vmatpush1.msra.mxu0 0.0
  %647 = vmatprep.subr.mxu0 0.0
  %648 = vmatpush1.msra.mxu0 0.0
  %649 = vmatprep.subr.mxu0 0.0
  %650 = vmatpush1.msra.mxu0 %v24
  %651 = vmatprep.subr.mxu0 0.0
  %652 = vmatpush2.msra.mxu0 0.0
  %653 = vmatprep.subr.mxu0 0.0
  %654 = vmatpush2.msra.mxu0 0.0
  %655 = vmatprep.subr.mxu0 0.0
  %656 = vmatpush2.msra.mxu0 0.0
  %657 = vmatprep.subr.mxu0 0.0
  %658 = vmatpush2.msra.mxu0 0.0
  %659 = vmatprep.subr.mxu0 0.0
  %660 = vmatpush2.msra.mxu0 0.0
  %661 = vmatprep.subr.mxu0 0.0
  %662 = vmatpush2.msra.mxu0 0.0
  %663 = vmatprep.subr.mxu0 0.0
  %664 = vmatpush2.msra.mxu0 0.0
  %665 = vmatprep.subr.mxu0 0.0
  %666 = vmatpush2.msra.mxu0 0.0
  %667 = vmatprep.subr.mxu0 0.0
  %668 = vmatpush2.msra.mxu0 0.0
  %669 = vmatprep.subr.mxu0 0.0
  %670 = vmatpush2.msra.mxu0 0.0
  %671 = vmatprep.subr.mxu0 0.0
  %672 = vmatpush2.msra.mxu0 0.0
  %673 = vmatprep.subr.mxu0 0.0
  %674 = vmatpush2.msra.mxu0 0.0
  %675 = vmatprep.subr.mxu0 0.0
  %676 = vmatpush2.msra.mxu0 0.0
  %677 = vmatprep.subr.mxu0 0.0
  %678 = vmatpush2.msra.mxu0 0.0
  %679 = vmatprep.subr.mxu0 0.0
  %680 = vmatpush2.msra.mxu0 0.0
  %681 = vmatprep.subr.mxu0 0.0
  %682 = vmatpush2.msra.mxu0 0.0
  %683 = vmatprep.mubr.f32.mxu0 0.0
  %684 = vmatmul.mubr.f32.gmra.mxu0 %v617
  %v685 = vpop.f32.mrf.mxu0
  %v686 = vadd.f32 %v38, %v685
  %v687 = vpop.f32.mrf.mxu0
  %688 = vdwg.mxu0
  %v689 = vsel %vm276, %v686, -inf
  %690 = vmax.xlane.f32.xlu0 %v689
  %v691 = vpop.xlane.xlu0 %690
  %v692 = vsub.f32 %v686, %v691
  %v693 = vmul.f32 %v692, 1.442695
  %v694 = vpow.pop %v693
  %v695 = vsel %vm276, %v694, 0.0
  %696 = vadd.xlane.f32.xlu0 %v695
  %v697 = vpop.xlane.xlu0 %696
  %v698 = vrcp.pop %v697
  %v699 = vmul.f32 %v694, %v698
  %v700 = vmul.f32 %v468, %v699
  %701 = vmatprep.subr.mxu0 0.0
  %702 = vmatpush1.msra.mxu0 0.0
  %703 = vmatprep.subr.mxu0 0.0
  %704 = vmatpush1.msra.mxu0 0.0
  %705 = vmatprep.subr.mxu0 0.0
  %706 = vmatpush1.msra.mxu0 0.0
  %707 = vmatprep.subr.mxu0 0.0
  %708 = vmatpush1.msra.mxu0 0.0
  %709 = vmatprep.subr.mxu0 0.0
  %710 = vmatpush1.msra.mxu0 0.0
  %711 = vmatprep.subr.mxu0 0.0
  %712 = vmatpush1.msra.mxu0 0.0
  %713 = vmatprep.subr.mxu0 0.0
  %714 = vmatpush1.msra.mxu0 0.0
  %715 = vmatprep.subr.mxu0 0.0
  %716 = vmatpush1.msra.mxu0 0.0
  %717 = vmatprep.subr.mxu0 0.0
  %718 = vmatpush1.msra.mxu0 0.0
  %719 = vmatprep.subr.mxu0 0.0
  %720 = vmatpush1.msra.mxu0 0.0
  %721 = vmatprep.subr.mxu0 0.0
  %722 = vmatpush1.msra.mxu0 0.0
  %723 = vmatprep.subr.mxu0 0.0
  %724 = vmatpush1.msra.mxu0 0.0
  %725 = vmatprep.subr.mxu0 0.0
  %726 = vmatpush1.msra.mxu0 %v43
  %727 = vmatprep.subr.mxu0 0.0
  %728 = vmatpush1.msra.mxu0 %v42
  %729 = vmatprep.subr.mxu0 0.0
  %730 = vmatpush1.msra.mxu0 %v41
  %731 = vmatprep.subr.mxu0 0.0
  %732 = vmatpush1.msra.mxu0 %v40
  %733 = vmatprep.subr.mxu0 0.0
  %734 = vmatpush2.msra.mxu0 0.0
  %735 = vmatprep.subr.mxu0 0.0
  %736 = vmatpush2.msra.mxu0 0.0
  %737 = vmatprep.subr.mxu0 0.0
  %738 = vmatpush2.msra.mxu0 0.0
  %739 = vmatprep.subr.mxu0 0.0
  %740 = vmatpush2.msra.mxu0 0.0
  %741 = vmatprep.subr.mxu0 0.0
  %742 = vmatpush2.msra.mxu0 0.0
  %743 = vmatprep.subr.mxu0 0.0
  %744 = vmatpush2.msra.mxu0 0.0
  %745 = vmatprep.subr.mxu0 0.0
  %746 = vmatpush2.msra.mxu0 0.0
  %747 = vmatprep.subr.mxu0 0.0
  %748 = vmatpush2.msra.mxu0 0.0
  %749 = vmatprep.subr.mxu0 0.0
  %750 = vmatpush2.msra.mxu0 0.0
  %751 = vmatprep.subr.mxu0 0.0
  %752 = vmatpush2.msra.mxu0 0.0
  %753 = vmatprep.subr.mxu0 0.0
  %754 = vmatpush2.msra.mxu0 0.0
  %755 = vmatprep.subr.mxu0 0.0
  %756 = vmatpush2.msra.mxu0 0.0
  %757 = vmatprep.subr.mxu0 0.0
  %758 = vmatpush2.msra.mxu0 0.0
  %759 = vmatprep.subr.mxu0 0.0
  %760 = vmatpush2.msra.mxu0 0.0
  %761 = vmatprep.subr.mxu0 0.0
  %762 = vmatpush2.msra.mxu0 0.0
  %763 = vmatprep.subr.mxu0 0.0
  %764 = vmatpush2.msra.mxu0 0.0
  %765 = vmatprep.mubr.f32.mxu0 0.0
  %766 = vmatmul.mubr.f32.gmra.mxu0 %v542
  %v767 = vpop.f32.mrf.mxu0
  %v768 = vadd.f32 0.0, %v767
  %v769 = vpop.f32.mrf.mxu0
  %770 = vdwg.mxu0
  %v772 = vsel %vm53, %v700, 0
  %774 = vmatprep.subr.mxu0 0.0
  %775 = vmatpush1.msra.mxu0 0.0
  %776 = vmatprep.subr.mxu0 0.0
  %777 = vmatpush1.msra.mxu0 0.0
  %778 = vmatprep.subr.mxu0 0.0
  %779 = vmatpush1.msra.mxu0 0.0
  %780 = vmatprep.subr.mxu0 0.0
  %781 = vmatpush1.msra.mxu0 0.0
  %782 = vmatprep.subr.mxu0 0.0
  %783 = vmatpush1.msra.mxu0 0.0
  %784 = vmatprep.subr.mxu0 0.0
  %785 = vmatpush1.msra.mxu0 0.0
  %786 = vmatprep.subr.mxu0 0.0
  %787 = vmatpush1.msra.mxu0 0.0
  %788 = vmatprep.subr.mxu0 0.0
  %789 = vmatpush1.msra.mxu0 0.0
  %790 = vmatprep.subr.mxu0 0.0
  %791 = vmatpush1.msra.mxu0 0.0
  %792 = vmatprep.subr.mxu0 0.0
  %793 = vmatpush1.msra.mxu0 0.0
  %794 = vmatprep.subr.mxu0 0.0
  %795 = vmatpush1.msra.mxu0 0.0
  %796 = vmatprep.subr.mxu0 0.0
  %797 = vmatpush1.msra.mxu0 0.0
  %798 = vmatprep.subr.mxu0 0.0
  %799 = vmatpush1.msra.mxu0 0.0
  %800 = vmatprep.subr.mxu0 0.0
  %801 = vmatpush1.msra.mxu0 0.0
  %802 = vmatprep.subr.mxu0 0.0
  %803 = vmatpush1.msra.mxu0 0.0
  %804 = vmatprep.subr.mxu0 0.0
  %805 = vmatpush1.msra.mxu0 %v39
  %806 = vmatprep.subr.mxu0 0.0
  %807 = vmatpush2.msra.mxu0 0.0
  %808 = vmatprep.subr.mxu0 0.0
  %809 = vmatpush2.msra.mxu0 0.0
  %810 = vmatprep.subr.mxu0 0.0
  %811 = vmatpush2.msra.mxu0 0.0
  %812 = vmatprep.subr.mxu0 0.0
  %813 = vmatpush2.msra.mxu0 0.0
  %814 = vmatprep.subr.mxu0 0.0
  %815 = vmatpush2.msra.mxu0 0.0
  %816 = vmatprep.subr.mxu0 0.0
  %817 = vmatpush2.msra.mxu0 0.0
  %818 = vmatprep.subr.mxu0 0.0
  %819 = vmatpush2.msra.mxu0 0.0
  %820 = vmatprep.subr.mxu0 0.0
  %821 = vmatpush2.msra.mxu0 0.0
  %822 = vmatprep.subr.mxu0 0.0
  %823 = vmatpush2.msra.mxu0 0.0
  %824 = vmatprep.subr.mxu0 0.0
  %825 = vmatpush2.msra.mxu0 0.0
  %826 = vmatprep.subr.mxu0 0.0
  %827 = vmatpush2.msra.mxu0 0.0
  %828 = vmatprep.subr.mxu0 0.0
  %829 = vmatpush2.msra.mxu0 0.0
  %830 = vmatprep.subr.mxu0 0.0
  %831 = vmatpush2.msra.mxu0 0.0
  %832 = vmatprep.subr.mxu0 0.0
  %833 = vmatpush2.msra.mxu0 0.0
  %834 = vmatprep.subr.mxu0 0.0
  %835 = vmatpush2.msra.mxu0 0.0
  %836 = vmatprep.subr.mxu0 0.0
  %837 = vmatpush2.msra.mxu0 0.0
  %838 = vmatprep.mubr.f32.mxu0 0.0
  %839 = vmatmul.mubr.f32.gmra.mxu0 %v772
  %v840 = vpop.f32.mrf.mxu0
  %v841 = vadd.f32 %v768, %v840
  %v842 = vpop.f32.mrf.mxu0
  %843 = vdwg.mxu0
  %v844 = vadd.f32 %v841, %v49
  %v845 = vxor.u32 %v844, 2147483648
  %v846 = vmul.f32 %v845, 1.442695
  %v847 = vpow.pop %v846
  %v848 = vadd.f32 %v847, 1.0
  %v849 = vrcp.pop %v848
  %v850 = vmul.f32 1.0, %v849
  %852 = vrot.lane.b32.xlu0 %v844, 32
  %v853 = vpop.permute.xlu0 %852
  %v855 = vmul.f32 %v850, %v853
  %857 = vrot.lane.b32.xlu0 %v855, 64
  %v858 = vpop.permute.xlu0 %857
  %v860 = vadd.f32 %v844, %v858
  %v861 = vtanh.pop %v860
  %v862 = vsub.f32 1.0, %v850
  %864 = vrot.lane.b32.xlu0 %v861, 96
  %v865 = vpop.permute.xlu0 %864
  %v867 = vmul.f32 %v862, %v865
  %v868 = vmul.f32 %v850, %v460
  %v869 = vadd.f32 %v867, %v868
  %871 = vrot.lane.b32.xlu0 %v869, 96
  %v872 = vpop.permute.xlu0 %871
  %s874 = scalar_lea.vmem %s6, 4
  %875 = vst.msk [vmem:[%s874] sm:$0xf] %vm465, %v872
  %s876 = scalar_lea.vmem %s0, 8
  %v877 = vld [vmem:[%s876] sm:$0xf]
  %v879 = vsel %vm53, %v877, 0
  %881 = vmatprep.subr.mxu0 0.0
  %882 = vmatpush1.msra.mxu0 0.0
  %883 = vmatprep.subr.mxu0 0.0
  %884 = vmatpush1.msra.mxu0 0.0
  %885 = vmatprep.subr.mxu0 0.0
  %886 = vmatpush1.msra.mxu0 0.0
  %887 = vmatprep.subr.mxu0 0.0
  %888 = vmatpush1.msra.mxu0 0.0
  %889 = vmatprep.subr.mxu0 0.0
  %890 = vmatpush1.msra.mxu0 0.0
  %891 = vmatprep.subr.mxu0 0.0
  %892 = vmatpush1.msra.mxu0 0.0
  %893 = vmatprep.subr.mxu0 0.0
  %894 = vmatpush1.msra.mxu0 0.0
  %895 = vmatprep.subr.mxu0 0.0
  %896 = vmatpush1.msra.mxu0 0.0
  %897 = vmatprep.subr.mxu0 0.0
  %898 = vmatpush1.msra.mxu0 0.0
  %899 = vmatprep.subr.mxu0 0.0
  %900 = vmatpush1.msra.mxu0 0.0
  %901 = vmatprep.subr.mxu0 0.0
  %902 = vmatpush1.msra.mxu0 0.0
  %903 = vmatprep.subr.mxu0 0.0
  %904 = vmatpush1.msra.mxu0 0.0
  %905 = vmatprep.subr.mxu0 0.0
  %906 = vmatpush1.msra.mxu0 0.0
  %907 = vmatprep.subr.mxu0 0.0
  %908 = vmatpush1.msra.mxu0 0.0
  %909 = vmatprep.subr.mxu0 0.0
  %910 = vmatpush1.msra.mxu0 0.0
  %911 = vmatprep.subr.mxu0 0.0
  %912 = vmatpush1.msra.mxu0 %v23
  %913 = vmatprep.subr.mxu0 0.0
  %914 = vmatpush2.msra.mxu0 0.0
  %915 = vmatprep.subr.mxu0 0.0
  %916 = vmatpush2.msra.mxu0 0.0
  %917 = vmatprep.subr.mxu0 0.0
  %918 = vmatpush2.msra.mxu0 0.0
  %919 = vmatprep.subr.mxu0 0.0
  %920 = vmatpush2.msra.mxu0 0.0
  %921 = vmatprep.subr.mxu0 0.0
  %922 = vmatpush2.msra.mxu0 0.0
  %923 = vmatprep.subr.mxu0 0.0
  %924 = vmatpush2.msra.mxu0 0.0
  %925 = vmatprep.subr.mxu0 0.0
  %926 = vmatpush2.msra.mxu0 0.0
  %927 = vmatprep.subr.mxu0 0.0
  %928 = vmatpush2.msra.mxu0 0.0
  %929 = vmatprep.subr.mxu0 0.0
  %930 = vmatpush2.msra.mxu0 0.0
  %931 = vmatprep.subr.mxu0 0.0
  %932 = vmatpush2.msra.mxu0 0.0
  %933 = vmatprep.subr.mxu0 0.0
  %934 = vmatpush2.msra.mxu0 0.0
  %935 = vmatprep.subr.mxu0 0.0
  %936 = vmatpush2.msra.mxu0 0.0
  %937 = vmatprep.subr.mxu0 0.0
  %938 = vmatpush2.msra.mxu0 0.0
  %939 = vmatprep.subr.mxu0 0.0
  %940 = vmatpush2.msra.mxu0 0.0
  %941 = vmatprep.subr.mxu0 0.0
  %942 = vmatpush2.msra.mxu0 0.0
  %943 = vmatprep.subr.mxu0 0.0
  %944 = vmatpush2.msra.mxu0 0.0
  %945 = vmatprep.mubr.f32.mxu0 0.0
  %946 = vmatmul.mubr.f32.gmra.mxu0 %v879
  %v947 = vpop.f32.mrf.mxu0
  %v948 = vadd.f32 0.0, %v947
  %v949 = vpop.f32.mrf.mxu0
  %950 = vdwg.mxu0
  %v951 = vsel %vm127, %v872, 0
  %953 = vmatprep.subr.mxu0 0.0
  %954 = vmatpush1.msra.mxu0 0.0
  %955 = vmatprep.subr.mxu0 0.0
  %956 = vmatpush1.msra.mxu0 0.0
  %957 = vmatprep.subr.mxu0 0.0
  %958 = vmatpush1.msra.mxu0 0.0
  %959 = vmatprep.subr.mxu0 0.0
  %960 = vmatpush1.msra.mxu0 0.0
  %961 = vmatprep.subr.mxu0 0.0
  %962 = vmatpush1.msra.mxu0 0.0
  %963 = vmatprep.subr.mxu0 0.0
  %964 = vmatpush1.msra.mxu0 0.0
  %965 = vmatprep.subr.mxu0 0.0
  %966 = vmatpush1.msra.mxu0 0.0
  %967 = vmatprep.subr.mxu0 0.0
  %968 = vmatpush1.msra.mxu0 0.0
  %969 = vmatprep.subr.mxu0 0.0
  %970 = vmatpush1.msra.mxu0 0.0
  %971 = vmatprep.subr.mxu0 0.0
  %972 = vmatpush1.msra.mxu0 0.0
  %973 = vmatprep.subr.mxu0 0.0
  %974 = vmatpush1.msra.mxu0 0.0
  %975 = vmatprep.subr.mxu0 0.0
  %976 = vmatpush1.msra.mxu0 0.0
  %977 = vmatprep.subr.mxu0 0.0
  %978 = vmatpush1.msra.mxu0 %v28
  %979 = vmatprep.subr.mxu0 0.0
  %980 = vmatpush1.msra.mxu0 %v27
  %981 = vmatprep.subr.mxu0 0.0
  %982 = vmatpush1.msra.mxu0 %v26
  %983 = vmatprep.subr.mxu0 0.0
  %984 = vmatpush1.msra.mxu0 %v25
  %985 = vmatprep.subr.mxu0 0.0
  %986 = vmatpush2.msra.mxu0 0.0
  %987 = vmatprep.subr.mxu0 0.0
  %988 = vmatpush2.msra.mxu0 0.0
  %989 = vmatprep.subr.mxu0 0.0
  %990 = vmatpush2.msra.mxu0 0.0
  %991 = vmatprep.subr.mxu0 0.0
  %992 = vmatpush2.msra.mxu0 0.0
  %993 = vmatprep.subr.mxu0 0.0
  %994 = vmatpush2.msra.mxu0 0.0
  %995 = vmatprep.subr.mxu0 0.0
  %996 = vmatpush2.msra.mxu0 0.0
  %997 = vmatprep.subr.mxu0 0.0
  %998 = vmatpush2.msra.mxu0 0.0
  %999 = vmatprep.subr.mxu0 0.0
  %1000 = vmatpush2.msra.mxu0 0.0
  %1001 = vmatprep.subr.mxu0 0.0
  %1002 = vmatpush2.msra.mxu0 0.0
  %1003 = vmatprep.subr.mxu0 0.0
  %1004 = vmatpush2.msra.mxu0 0.0
  %1005 = vmatprep.subr.mxu0 0.0
  %1006 = vmatpush2.msra.mxu0 0.0
  %1007 = vmatprep.subr.mxu0 0.0
  %1008 = vmatpush2.msra.mxu0 0.0
  %1009 = vmatprep.subr.mxu0 0.0
  %1010 = vmatpush2.msra.mxu0 0.0
  %1011 = vmatprep.subr.mxu0 0.0
  %1012 = vmatpush2.msra.mxu0 0.0
  %1013 = vmatprep.subr.mxu0 0.0
  %1014 = vmatpush2.msra.mxu0 0.0
  %1015 = vmatprep.subr.mxu0 0.0
  %1016 = vmatpush2.msra.mxu0 0.0
  %1017 = vmatprep.mubr.f32.mxu0 0.0
  %1018 = vmatmul.mubr.f32.gmra.mxu0 %v951
  %v1019 = vpop.f32.mrf.mxu0
  %v1020 = vadd.f32 %v948, %v1019
  %v1021 = vpop.f32.mrf.mxu0
  %1022 = vdwg.mxu0
  %v1023 = vadd.f32 %v1020, %v33
  %v1024 = vtanh.pop %v1023
  %v1026 = vsel %vm53, %v1024, 0
  %1028 = vmatprep.subr.mxu0 0.0
  %1029 = vmatpush1.msra.mxu0 0.0
  %1030 = vmatprep.subr.mxu0 0.0
  %1031 = vmatpush1.msra.mxu0 0.0
  %1032 = vmatprep.subr.mxu0 0.0
  %1033 = vmatpush1.msra.mxu0 0.0
  %1034 = vmatprep.subr.mxu0 0.0
  %1035 = vmatpush1.msra.mxu0 0.0
  %1036 = vmatprep.subr.mxu0 0.0
  %1037 = vmatpush1.msra.mxu0 0.0
  %1038 = vmatprep.subr.mxu0 0.0
  %1039 = vmatpush1.msra.mxu0 0.0
  %1040 = vmatprep.subr.mxu0 0.0
  %1041 = vmatpush1.msra.mxu0 0.0
  %1042 = vmatprep.subr.mxu0 0.0
  %1043 = vmatpush1.msra.mxu0 0.0
  %1044 = vmatprep.subr.mxu0 0.0
  %1045 = vmatpush1.msra.mxu0 0.0
  %1046 = vmatprep.subr.mxu0 0.0
  %1047 = vmatpush1.msra.mxu0 0.0
  %1048 = vmatprep.subr.mxu0 0.0
  %1049 = vmatpush1.msra.mxu0 0.0
  %1050 = vmatprep.subr.mxu0 0.0
  %1051 = vmatpush1.msra.mxu0 0.0
  %1052 = vmatprep.subr.mxu0 0.0
  %1053 = vmatpush1.msra.mxu0 0.0
  %1054 = vmatprep.subr.mxu0 0.0
  %1055 = vmatpush1.msra.mxu0 0.0
  %1056 = vmatprep.subr.mxu0 0.0
  %1057 = vmatpush1.msra.mxu0 0.0
  %1058 = vmatprep.subr.mxu0 0.0
  %1059 = vmatpush1.msra.mxu0 %v24
  %1060 = vmatprep.subr.mxu0 0.0
  %1061 = vmatpush2.msra.mxu0 0.0
  %1062 = vmatprep.subr.mxu0 0.0
  %1063 = vmatpush2.msra.mxu0 0.0
  %1064 = vmatprep.subr.mxu0 0.0
  %1065 = vmatpush2.msra.mxu0 0.0
  %1066 = vmatprep.subr.mxu0 0.0
  %1067 = vmatpush2.msra.mxu0 0.0
  %1068 = vmatprep.subr.mxu0 0.0
  %1069 = vmatpush2.msra.mxu0 0.0
  %1070 = vmatprep.subr.mxu0 0.0
  %1071 = vmatpush2.msra.mxu0 0.0
  %1072 = vmatprep.subr.mxu0 0.0
  %1073 = vmatpush2.msra.mxu0 0.0
  %1074 = vmatprep.subr.mxu0 0.0
  %1075 = vmatpush2.msra.mxu0 0.0
  %1076 = vmatprep.subr.mxu0 0.0
  %1077 = vmatpush2.msra.mxu0 0.0
  %1078 = vmatprep.subr.mxu0 0.0
  %1079 = vmatpush2.msra.mxu0 0.0
  %1080 = vmatprep.subr.mxu0 0.0
  %1081 = vmatpush2.msra.mxu0 0.0
  %1082 = vmatprep.subr.mxu0 0.0
  %1083 = vmatpush2.msra.mxu0 0.0
  %1084 = vmatprep.subr.mxu0 0.0
  %1085 = vmatpush2.msra.mxu0 0.0
  %1086 = vmatprep.subr.mxu0 0.0
  %1087 = vmatpush2.msra.mxu0 0.0
  %1088 = vmatprep.subr.mxu0 0.0
  %1089 = vmatpush2.msra.mxu0 0.0
  %1090 = vmatprep.subr.mxu0 0.0
  %1091 = vmatpush2.msra.mxu0 0.0
  %1092 = vmatprep.mubr.f32.mxu0 0.0
  %1093 = vmatmul.mubr.f32.gmra.mxu0 %v1026
  %v1094 = vpop.f32.mrf.mxu0
  %v1095 = vadd.f32 %v38, %v1094
  %v1096 = vpop.f32.mrf.mxu0
  %1097 = vdwg.mxu0
  %v1098 = vsel %vm276, %v1095, -inf
  %1099 = vmax.xlane.f32.xlu0 %v1098
  %v1100 = vpop.xlane.xlu0 %1099
  %v1101 = vsub.f32 %v1095, %v1100
  %v1102 = vmul.f32 %v1101, 1.442695
  %v1103 = vpow.pop %v1102
  %v1104 = vsel %vm276, %v1103, 0.0
  %1105 = vadd.xlane.f32.xlu0 %v1104
  %v1106 = vpop.xlane.xlu0 %1105
  %v1107 = vrcp.pop %v1106
  %v1108 = vmul.f32 %v1103, %v1107
  %v1109 = vmul.f32 %v877, %v1108
  %1110 = vmatprep.subr.mxu0 0.0
  %1111 = vmatpush1.msra.mxu0 0.0
  %1112 = vmatprep.subr.mxu0 0.0
  %1113 = vmatpush1.msra.mxu0 0.0
  %1114 = vmatprep.subr.mxu0 0.0
  %1115 = vmatpush1.msra.mxu0 0.0
  %1116 = vmatprep.subr.mxu0 0.0
  %1117 = vmatpush1.msra.mxu0 0.0
  %1118 = vmatprep.subr.mxu0 0.0
  %1119 = vmatpush1.msra.mxu0 0.0
  %1120 = vmatprep.subr.mxu0 0.0
  %1121 = vmatpush1.msra.mxu0 0.0
  %1122 = vmatprep.subr.mxu0 0.0
  %1123 = vmatpush1.msra.mxu0 0.0
  %1124 = vmatprep.subr.mxu0 0.0
  %1125 = vmatpush1.msra.mxu0 0.0
  %1126 = vmatprep.subr.mxu0 0.0
  %1127 = vmatpush1.msra.mxu0 0.0
  %1128 = vmatprep.subr.mxu0 0.0
  %1129 = vmatpush1.msra.mxu0 0.0
  %1130 = vmatprep.subr.mxu0 0.0
  %1131 = vmatpush1.msra.mxu0 0.0
  %1132 = vmatprep.subr.mxu0 0.0
  %1133 = vmatpush1.msra.mxu0 0.0
  %1134 = vmatprep.subr.mxu0 0.0
  %1135 = vmatpush1.msra.mxu0 %v43
  %1136 = vmatprep.subr.mxu0 0.0
  %1137 = vmatpush1.msra.mxu0 %v42
  %1138 = vmatprep.subr.mxu0 0.0
  %1139 = vmatpush1.msra.mxu0 %v41
  %1140 = vmatprep.subr.mxu0 0.0
  %1141 = vmatpush1.msra.mxu0 %v40
  %1142 = vmatprep.subr.mxu0 0.0
  %1143 = vmatpush2.msra.mxu0 0.0
  %1144 = vmatprep.subr.mxu0 0.0
  %1145 = vmatpush2.msra.mxu0 0.0
  %1146 = vmatprep.subr.mxu0 0.0
  %1147 = vmatpush2.msra.mxu0 0.0
  %1148 = vmatprep.subr.mxu0 0.0
  %1149 = vmatpush2.msra.mxu0 0.0
  %1150 = vmatprep.subr.mxu0 0.0
  %1151 = vmatpush2.msra.mxu0 0.0
  %1152 = vmatprep.subr.mxu0 0.0
  %1153 = vmatpush2.msra.mxu0 0.0
  %1154 = vmatprep.subr.mxu0 0.0
  %1155 = vmatpush2.msra.mxu0 0.0
  %1156 = vmatprep.subr.mxu0 0.0
  %1157 = vmatpush2.msra.mxu0 0.0
  %1158 = vmatprep.subr.mxu0 0.0
  %1159 = vmatpush2.msra.mxu0 0.0
  %1160 = vmatprep.subr.mxu0 0.0
  %1161 = vmatpush2.msra.mxu0 0.0
  %1162 = vmatprep.subr.mxu0 0.0
  %1163 = vmatpush2.msra.mxu0 0.0
  %1164 = vmatprep.subr.mxu0 0.0
  %1165 = vmatpush2.msra.mxu0 0.0
  %1166 = vmatprep.subr.mxu0 0.0
  %1167 = vmatpush2.msra.mxu0 0.0
  %1168 = vmatprep.subr.mxu0 0.0
  %1169 = vmatpush2.msra.mxu0 0.0
  %1170 = vmatprep.subr.mxu0 0.0
  %1171 = vmatpush2.msra.mxu0 0.0
  %1172 = vmatprep.subr.mxu0 0.0
  %1173 = vmatpush2.msra.mxu0 0.0
  %1174 = vmatprep.mubr.f32.mxu0 0.0
  %1175 = vmatmul.mubr.f32.gmra.mxu0 %v951
  %v1176 = vpop.f32.mrf.mxu0
  %v1177 = vadd.f32 0.0, %v1176
  %v1178 = vpop.f32.mrf.mxu0
  %1179 = vdwg.mxu0
  %v1181 = vsel %vm53, %v1109, 0
  %1183 = vmatprep.subr.mxu0 0.0
  %1184 = vmatpush1.msra.mxu0 0.0
  %1185 = vmatprep.subr.mxu0 0.0
  %1186 = vmatpush1.msra.mxu0 0.0
  %1187 = vmatprep.subr.mxu0 0.0
  %1188 = vmatpush1.msra.mxu0 0.0
  %1189 = vmatprep.subr.mxu0 0.0
  %1190 = vmatpush1.msra.mxu0 0.0
  %1191 = vmatprep.subr.mxu0 0.0
  %1192 = vmatpush1.msra.mxu0 0.0
  %1193 = vmatprep.subr.mxu0 0.0
  %1194 = vmatpush1.msra.mxu0 0.0
  %1195 = vmatprep.subr.mxu0 0.0
  %1196 = vmatpush1.msra.mxu0 0.0
  %1197 = vmatprep.subr.mxu0 0.0
  %1198 = vmatpush1.msra.mxu0 0.0
  %1199 = vmatprep.subr.mxu0 0.0
  %1200 = vmatpush1.msra.mxu0 0.0
  %1201 = vmatprep.subr.mxu0 0.0
  %1202 = vmatpush1.msra.mxu0 0.0
  %1203 = vmatprep.subr.mxu0 0.0
  %1204 = vmatpush1.msra.mxu0 0.0
  %1205 = vmatprep.subr.mxu0 0.0
  %1206 = vmatpush1.msra.mxu0 0.0
  %1207 = vmatprep.subr.mxu0 0.0
  %1208 = vmatpush1.msra.mxu0 0.0
  %1209 = vmatprep.subr.mxu0 0.0
  %1210 = vmatpush1.msra.mxu0 0.0
  %1211 = vmatprep.subr.mxu0 0.0
  %1212 = vmatpush1.msra.mxu0 0.0
  %1213 = vmatprep.subr.mxu0 0.0
  %1214 = vmatpush1.msra.mxu0 %v39
  %1215 = vmatprep.subr.mxu0 0.0
  %1216 = vmatpush2.msra.mxu0 0.0
  %1217 = vmatprep.subr.mxu0 0.0
  %1218 = vmatpush2.msra.mxu0 0.0
  %1219 = vmatprep.subr.mxu0 0.0
  %1220 = vmatpush2.msra.mxu0 0.0
  %1221 = vmatprep.subr.mxu0 0.0
  %1222 = vmatpush2.msra.mxu0 0.0
  %1223 = vmatprep.subr.mxu0 0.0
  %1224 = vmatpush2.msra.mxu0 0.0
  %1225 = vmatprep.subr.mxu0 0.0
  %1226 = vmatpush2.msra.mxu0 0.0
  %1227 = vmatprep.subr.mxu0 0.0
  %1228 = vmatpush2.msra.mxu0 0.0
  %1229 = vmatprep.subr.mxu0 0.0
  %1230 = vmatpush2.msra.mxu0 0.0
  %1231 = vmatprep.subr.mxu0 0.0
  %1232 = vmatpush2.msra.mxu0 0.0
  %1233 = vmatprep.subr.mxu0 0.0
  %1234 = vmatpush2.msra.mxu0 0.0
  %1235 = vmatprep.subr.mxu0 0.0
  %1236 = vmatpush2.msra.mxu0 0.0
  %1237 = vmatprep.subr.mxu0 0.0
  %1238 = vmatpush2.msra.mxu0 0.0
  %1239 = vmatprep.subr.mxu0 0.0
  %1240 = vmatpush2.msra.mxu0 0.0
  %1241 = vmatprep.subr.mxu0 0.0
  %1242 = vmatpush2.msra.mxu0 0.0
  %1243 = vmatprep.subr.mxu0 0.0
  %1244 = vmatpush2.msra.mxu0 0.0
  %1245 = vmatprep.subr.mxu0 0.0
  %1246 = vmatpush2.msra.mxu0 0.0
  %1247 = vmatprep.mubr.f32.mxu0 0.0
  %1248 = vmatmul.mubr.f32.gmra.mxu0 %v1181
  %v1249 = vpop.f32.mrf.mxu0
  %v1250 = vadd.f32 %v1177, %v1249
  %v1251 = vpop.f32.mrf.mxu0
  %1252 = vdwg.mxu0
  %v1253 = vadd.f32 %v1250, %v49
  %v1254 = vxor.u32 %v1253, 2147483648
  %v1255 = vmul.f32 %v1254, 1.442695
  %v1256 = vpow.pop %v1255
  %v1257 = vadd.f32 %v1256, 1.0
  %v1258 = vrcp.pop %v1257
  %v1259 = vmul.f32 1.0, %v1258
  %1261 = vrot.lane.b32.xlu0 %v1253, 32
  %v1262 = vpop.permute.xlu0 %1261
  %v1264 = vmul.f32 %v1259, %v1262
  %1266 = vrot.lane.b32.xlu0 %v1264, 64
  %v1267 = vpop.permute.xlu0 %1266
  %v1269 = vadd.f32 %v1253, %v1267
  %v1270 = vtanh.pop %v1269
  %v1271 = vsub.f32 1.0, %v1259
  %1273 = vrot.lane.b32.xlu0 %v1270, 96
  %v1274 = vpop.permute.xlu0 %1273
  %v1276 = vmul.f32 %v1271, %v1274
  %v1277 = vmul.f32 %v1259, %v869
  %v1278 = vadd.f32 %v1276, %v1277
  %1280 = vrot.lane.b32.xlu0 %v1278, 96
  %v1281 = vpop.permute.xlu0 %1280
  %s1283 = scalar_lea.vmem %s6, 8
  %1284 = vst.msk [vmem:[%s1283] sm:$0xf] %vm465, %v1281
  %s1285 = scalar_lea.vmem %s0, 12
  %v1286 = vld [vmem:[%s1285] sm:$0xf]
  %v1288 = vsel %vm53, %v1286, 0
  %1290 = vmatprep.subr.mxu0 0.0
  %1291 = vmatpush1.msra.mxu0 0.0
  %1292 = vmatprep.subr.mxu0 0.0
  %1293 = vmatpush1.msra.mxu0 0.0
  %1294 = vmatprep.subr.mxu0 0.0
  %1295 = vmatpush1.msra.mxu0 0.0
  %1296 = vmatprep.subr.mxu0 0.0
  %1297 = vmatpush1.msra.mxu0 0.0
  %1298 = vmatprep.subr.mxu0 0.0
  %1299 = vmatpush1.msra.mxu0 0.0
  %1300 = vmatprep.subr.mxu0 0.0
  %1301 = vmatpush1.msra.mxu0 0.0
  %1302 = vmatprep.subr.mxu0 0.0
  %1303 = vmatpush1.msra.mxu0 0.0
  %1304 = vmatprep.subr.mxu0 0.0
  %1305 = vmatpush1.msra.mxu0 0.0
  %1306 = vmatprep.subr.mxu0 0.0
  %1307 = vmatpush1.msra.mxu0 0.0
  %1308 = vmatprep.subr.mxu0 0.0
  %1309 = vmatpush1.msra.mxu0 0.0
  %1310 = vmatprep.subr.mxu0 0.0
  %1311 = vmatpush1.msra.mxu0 0.0
  %1312 = vmatprep.subr.mxu0 0.0
  %1313 = vmatpush1.msra.mxu0 0.0
  %1314 = vmatprep.subr.mxu0 0.0
  %1315 = vmatpush1.msra.mxu0 0.0
  %1316 = vmatprep.subr.mxu0 0.0
  %1317 = vmatpush1.msra.mxu0 0.0
  %1318 = vmatprep.subr.mxu0 0.0
  %1319 = vmatpush1.msra.mxu0 0.0
  %1320 = vmatprep.subr.mxu0 0.0
  %1321 = vmatpush1.msra.mxu0 %v23
  %1322 = vmatprep.subr.mxu0 0.0
  %1323 = vmatpush2.msra.mxu0 0.0
  %1324 = vmatprep.subr.mxu0 0.0
  %1325 = vmatpush2.msra.mxu0 0.0
  %1326 = vmatprep.subr.mxu0 0.0
  %1327 = vmatpush2.msra.mxu0 0.0
  %1328 = vmatprep.subr.mxu0 0.0
  %1329 = vmatpush2.msra.mxu0 0.0
  %1330 = vmatprep.subr.mxu0 0.0
  %1331 = vmatpush2.msra.mxu0 0.0
  %1332 = vmatprep.subr.mxu0 0.0
  %1333 = vmatpush2.msra.mxu0 0.0
  %1334 = vmatprep.subr.mxu0 0.0
  %1335 = vmatpush2.msra.mxu0 0.0
  %1336 = vmatprep.subr.mxu0 0.0
  %1337 = vmatpush2.msra.mxu0 0.0
  %1338 = vmatprep.subr.mxu0 0.0
  %1339 = vmatpush2.msra.mxu0 0.0
  %1340 = vmatprep.subr.mxu0 0.0
  %1341 = vmatpush2.msra.mxu0 0.0
  %1342 = vmatprep.subr.mxu0 0.0
  %1343 = vmatpush2.msra.mxu0 0.0
  %1344 = vmatprep.subr.mxu0 0.0
  %1345 = vmatpush2.msra.mxu0 0.0
  %1346 = vmatprep.subr.mxu0 0.0
  %1347 = vmatpush2.msra.mxu0 0.0
  %1348 = vmatprep.subr.mxu0 0.0
  %1349 = vmatpush2.msra.mxu0 0.0
  %1350 = vmatprep.subr.mxu0 0.0
  %1351 = vmatpush2.msra.mxu0 0.0
  %1352 = vmatprep.subr.mxu0 0.0
  %1353 = vmatpush2.msra.mxu0 0.0
  %1354 = vmatprep.mubr.f32.mxu0 0.0
  %1355 = vmatmul.mubr.f32.gmra.mxu0 %v1288
  %v1356 = vpop.f32.mrf.mxu0
  %v1357 = vadd.f32 0.0, %v1356
  %v1358 = vpop.f32.mrf.mxu0
  %1359 = vdwg.mxu0
  %v1360 = vsel %vm127, %v1281, 0
  %1362 = vmatprep.subr.mxu0 0.0
  %1363 = vmatpush1.msra.mxu0 0.0
  %1364 = vmatprep.subr.mxu0 0.0
  %1365 = vmatpush1.msra.mxu0 0.0
  %1366 = vmatprep.subr.mxu0 0.0
  %1367 = vmatpush1.msra.mxu0 0.0
  %1368 = vmatprep.subr.mxu0 0.0
  %1369 = vmatpush1.msra.mxu0 0.0
  %1370 = vmatprep.subr.mxu0 0.0
  %1371 = vmatpush1.msra.mxu0 0.0
  %1372 = vmatprep.subr.mxu0 0.0
  %1373 = vmatpush1.msra.mxu0 0.0
  %1374 = vmatprep.subr.mxu0 0.0
  %1375 = vmatpush1.msra.mxu0 0.0
  %1376 = vmatprep.subr.mxu0 0.0
  %1377 = vmatpush1.msra.mxu0 0.0
  %1378 = vmatprep.subr.mxu0 0.0
  %1379 = vmatpush1.msra.mxu0 0.0
  %1380 = vmatprep.subr.mxu0 0.0
  %1381 = vmatpush1.msra.mxu0 0.0
  %1382 = vmatprep.subr.mxu0 0.0
  %1383 = vmatpush1.msra.mxu0 0.0
  %1384 = vmatprep.subr.mxu0 0.0
  %1385 = vmatpush1.msra.mxu0 0.0
  %1386 = vmatprep.subr.mxu0 0.0
  %1387 = vmatpush1.msra.mxu0 %v28
  %1388 = vmatprep.subr.mxu0 0.0
  %1389 = vmatpush1.msra.mxu0 %v27
  %1390 = vmatprep.subr.mxu0 0.0
  %1391 = vmatpush1.msra.mxu0 %v26
  %1392 = vmatprep.subr.mxu0 0.0
  %1393 = vmatpush1.msra.mxu0 %v25
  %1394 = vmatprep.subr.mxu0 0.0
  %1395 = vmatpush2.msra.mxu0 0.0
  %1396 = vmatprep.subr.mxu0 0.0
  %1397 = vmatpush2.msra.mxu0 0.0
  %1398 = vmatprep.subr.mxu0 0.0
  %1399 = vmatpush2.msra.mxu0 0.0
  %1400 = vmatprep.subr.mxu0 0.0
  %1401 = vmatpush2.msra.mxu0 0.0
  %1402 = vmatprep.subr.mxu0 0.0
  %1403 = vmatpush2.msra.mxu0 0.0
  %1404 = vmatprep.subr.mxu0 0.0
  %1405 = vmatpush2.msra.mxu0 0.0
  %1406 = vmatprep.subr.mxu0 0.0
  %1407 = vmatpush2.msra.mxu0 0.0
  %1408 = vmatprep.subr.mxu0 0.0
  %1409 = vmatpush2.msra.mxu0 0.0
  %1410 = vmatprep.subr.mxu0 0.0
  %1411 = vmatpush2.msra.mxu0 0.0
  %1412 = vmatprep.subr.mxu0 0.0
  %1413 = vmatpush2.msra.mxu0 0.0
  %1414 = vmatprep.subr.mxu0 0.0
  %1415 = vmatpush2.msra.mxu0 0.0
  %1416 = vmatprep.subr.mxu0 0.0
  %1417 = vmatpush2.msra.mxu0 0.0
  %1418 = vmatprep.subr.mxu0 0.0
  %1419 = vmatpush2.msra.mxu0 0.0
  %1420 = vmatprep.subr.mxu0 0.0
  %1421 = vmatpush2.msra.mxu0 0.0
  %1422 = vmatprep.subr.mxu0 0.0
  %1423 = vmatpush2.msra.mxu0 0.0
  %1424 = vmatprep.subr.mxu0 0.0
  %1425 = vmatpush2.msra.mxu0 0.0
  %1426 = vmatprep.mubr.f32.mxu0 0.0
  %1427 = vmatmul.mubr.f32.gmra.mxu0 %v1360
  %v1428 = vpop.f32.mrf.mxu0
  %v1429 = vadd.f32 %v1357, %v1428
  %v1430 = vpop.f32.mrf.mxu0
  %1431 = vdwg.mxu0
  %v1432 = vadd.f32 %v1429, %v33
  %v1433 = vtanh.pop %v1432
  %v1435 = vsel %vm53, %v1433, 0
  %1437 = vmatprep.subr.mxu0 0.0
  %1438 = vmatpush1.msra.mxu0 0.0
  %1439 = vmatprep.subr.mxu0 0.0
  %1440 = vmatpush1.msra.mxu0 0.0
  %1441 = vmatprep.subr.mxu0 0.0
  %1442 = vmatpush1.msra.mxu0 0.0
  %1443 = vmatprep.subr.mxu0 0.0
  %1444 = vmatpush1.msra.mxu0 0.0
  %1445 = vmatprep.subr.mxu0 0.0
  %1446 = vmatpush1.msra.mxu0 0.0
  %1447 = vmatprep.subr.mxu0 0.0
  %1448 = vmatpush1.msra.mxu0 0.0
  %1449 = vmatprep.subr.mxu0 0.0
  %1450 = vmatpush1.msra.mxu0 0.0
  %1451 = vmatprep.subr.mxu0 0.0
  %1452 = vmatpush1.msra.mxu0 0.0
  %1453 = vmatprep.subr.mxu0 0.0
  %1454 = vmatpush1.msra.mxu0 0.0
  %1455 = vmatprep.subr.mxu0 0.0
  %1456 = vmatpush1.msra.mxu0 0.0
  %1457 = vmatprep.subr.mxu0 0.0
  %1458 = vmatpush1.msra.mxu0 0.0
  %1459 = vmatprep.subr.mxu0 0.0
  %1460 = vmatpush1.msra.mxu0 0.0
  %1461 = vmatprep.subr.mxu0 0.0
  %1462 = vmatpush1.msra.mxu0 0.0
  %1463 = vmatprep.subr.mxu0 0.0
  %1464 = vmatpush1.msra.mxu0 0.0
  %1465 = vmatprep.subr.mxu0 0.0
  %1466 = vmatpush1.msra.mxu0 0.0
  %1467 = vmatprep.subr.mxu0 0.0
  %1468 = vmatpush1.msra.mxu0 %v24
  %1469 = vmatprep.subr.mxu0 0.0
  %1470 = vmatpush2.msra.mxu0 0.0
  %1471 = vmatprep.subr.mxu0 0.0
  %1472 = vmatpush2.msra.mxu0 0.0
  %1473 = vmatprep.subr.mxu0 0.0
  %1474 = vmatpush2.msra.mxu0 0.0
  %1475 = vmatprep.subr.mxu0 0.0
  %1476 = vmatpush2.msra.mxu0 0.0
  %1477 = vmatprep.subr.mxu0 0.0
  %1478 = vmatpush2.msra.mxu0 0.0
  %1479 = vmatprep.subr.mxu0 0.0
  %1480 = vmatpush2.msra.mxu0 0.0
  %1481 = vmatprep.subr.mxu0 0.0
  %1482 = vmatpush2.msra.mxu0 0.0
  %1483 = vmatprep.subr.mxu0 0.0
  %1484 = vmatpush2.msra.mxu0 0.0
  %1485 = vmatprep.subr.mxu0 0.0
  %1486 = vmatpush2.msra.mxu0 0.0
  %1487 = vmatprep.subr.mxu0 0.0
  %1488 = vmatpush2.msra.mxu0 0.0
  %1489 = vmatprep.subr.mxu0 0.0
  %1490 = vmatpush2.msra.mxu0 0.0
  %1491 = vmatprep.subr.mxu0 0.0
  %1492 = vmatpush2.msra.mxu0 0.0
  %1493 = vmatprep.subr.mxu0 0.0
  %1494 = vmatpush2.msra.mxu0 0.0
  %1495 = vmatprep.subr.mxu0 0.0
  %1496 = vmatpush2.msra.mxu0 0.0
  %1497 = vmatprep.subr.mxu0 0.0
  %1498 = vmatpush2.msra.mxu0 0.0
  %1499 = vmatprep.subr.mxu0 0.0
  %1500 = vmatpush2.msra.mxu0 0.0
  %1501 = vmatprep.mubr.f32.mxu0 0.0
  %1502 = vmatmul.mubr.f32.gmra.mxu0 %v1435
  %v1503 = vpop.f32.mrf.mxu0
  %v1504 = vadd.f32 %v38, %v1503
  %v1505 = vpop.f32.mrf.mxu0
  %1506 = vdwg.mxu0
  %v1507 = vsel %vm276, %v1504, -inf
  %1508 = vmax.xlane.f32.xlu0 %v1507
  %v1509 = vpop.xlane.xlu0 %1508
  %v1510 = vsub.f32 %v1504, %v1509
  %v1511 = vmul.f32 %v1510, 1.442695
  %v1512 = vpow.pop %v1511
  %v1513 = vsel %vm276, %v1512, 0.0
  %1514 = vadd.xlane.f32.xlu0 %v1513
  %v1515 = vpop.xlane.xlu0 %1514
  %v1516 = vrcp.pop %v1515
  %v1517 = vmul.f32 %v1512, %v1516
  %v1518 = vmul.f32 %v1286, %v1517
  %1519 = vmatprep.subr.mxu0 0.0
  %1520 = vmatpush1.msra.mxu0 0.0
  %1521 = vmatprep.subr.mxu0 0.0
  %1522 = vmatpush1.msra.mxu0 0.0
  %1523 = vmatprep.subr.mxu0 0.0
  %1524 = vmatpush1.msra.mxu0 0.0
  %1525 = vmatprep.subr.mxu0 0.0
  %1526 = vmatpush1.msra.mxu0 0.0
  %1527 = vmatprep.subr.mxu0 0.0
  %1528 = vmatpush1.msra.mxu0 0.0
  %1529 = vmatprep.subr.mxu0 0.0
  %1530 = vmatpush1.msra.mxu0 0.0
  %1531 = vmatprep.subr.mxu0 0.0
  %1532 = vmatpush1.msra.mxu0 0.0
  %1533 = vmatprep.subr.mxu0 0.0
  %1534 = vmatpush1.msra.mxu0 0.0
  %1535 = vmatprep.subr.mxu0 0.0
  %1536 = vmatpush1.msra.mxu0 0.0
  %1537 = vmatprep.subr.mxu0 0.0
  %1538 = vmatpush1.msra.mxu0 0.0
  %1539 = vmatprep.subr.mxu0 0.0
  %1540 = vmatpush1.msra.mxu0 0.0
  %1541 = vmatprep.subr.mxu0 0.0
  %1542 = vmatpush1.msra.mxu0 0.0
  %1543 = vmatprep.subr.mxu0 0.0
  %1544 = vmatpush1.msra.mxu0 %v43
  %1545 = vmatprep.subr.mxu0 0.0
  %1546 = vmatpush1.msra.mxu0 %v42
  %1547 = vmatprep.subr.mxu0 0.0
  %1548 = vmatpush1.msra.mxu0 %v41
  %1549 = vmatprep.subr.mxu0 0.0
  %1550 = vmatpush1.msra.mxu0 %v40
  %1551 = vmatprep.subr.mxu0 0.0
  %1552 = vmatpush2.msra.mxu0 0.0
  %1553 = vmatprep.subr.mxu0 0.0
  %1554 = vmatpush2.msra.mxu0 0.0
  %1555 = vmatprep.subr.mxu0 0.0
  %1556 = vmatpush2.msra.mxu0 0.0
  %1557 = vmatprep.subr.mxu0 0.0
  %1558 = vmatpush2.msra.mxu0 0.0
  %1559 = vmatprep.subr.mxu0 0.0
  %1560 = vmatpush2.msra.mxu0 0.0
  %1561 = vmatprep.subr.mxu0 0.0
  %1562 = vmatpush2.msra.mxu0 0.0
  %1563 = vmatprep.subr.mxu0 0.0
  %1564 = vmatpush2.msra.mxu0 0.0
  %1565 = vmatprep.subr.mxu0 0.0
  %1566 = vmatpush2.msra.mxu0 0.0
  %1567 = vmatprep.subr.mxu0 0.0
  %1568 = vmatpush2.msra.mxu0 0.0
  %1569 = vmatprep.subr.mxu0 0.0
  %1570 = vmatpush2.msra.mxu0 0.0
  %1571 = vmatprep.subr.mxu0 0.0
  %1572 = vmatpush2.msra.mxu0 0.0
  %1573 = vmatprep.subr.mxu0 0.0
  %1574 = vmatpush2.msra.mxu0 0.0
  %1575 = vmatprep.subr.mxu0 0.0
  %1576 = vmatpush2.msra.mxu0 0.0
  %1577 = vmatprep.subr.mxu0 0.0
  %1578 = vmatpush2.msra.mxu0 0.0
  %1579 = vmatprep.subr.mxu0 0.0
  %1580 = vmatpush2.msra.mxu0 0.0
  %1581 = vmatprep.subr.mxu0 0.0
  %1582 = vmatpush2.msra.mxu0 0.0
  %1583 = vmatprep.mubr.f32.mxu0 0.0
  %1584 = vmatmul.mubr.f32.gmra.mxu0 %v1360
  %v1585 = vpop.f32.mrf.mxu0
  %v1586 = vadd.f32 0.0, %v1585
  %v1587 = vpop.f32.mrf.mxu0
  %1588 = vdwg.mxu0
  %v1590 = vsel %vm53, %v1518, 0
  %1592 = vmatprep.subr.mxu0 0.0
  %1593 = vmatpush1.msra.mxu0 0.0
  %1594 = vmatprep.subr.mxu0 0.0
  %1595 = vmatpush1.msra.mxu0 0.0
  %1596 = vmatprep.subr.mxu0 0.0
  %1597 = vmatpush1.msra.mxu0 0.0
  %1598 = vmatprep.subr.mxu0 0.0
  %1599 = vmatpush1.msra.mxu0 0.0
  %1600 = vmatprep.subr.mxu0 0.0
  %1601 = vmatpush1.msra.mxu0 0.0
  %1602 = vmatprep.subr.mxu0 0.0
  %1603 = vmatpush1.msra.mxu0 0.0
  %1604 = vmatprep.subr.mxu0 0.0
  %1605 = vmatpush1.msra.mxu0 0.0
  %1606 = vmatprep.subr.mxu0 0.0
  %1607 = vmatpush1.msra.mxu0 0.0
  %1608 = vmatprep.subr.mxu0 0.0
  %1609 = vmatpush1.msra.mxu0 0.0
  %1610 = vmatprep.subr.mxu0 0.0
  %1611 = vmatpush1.msra.mxu0 0.0
  %1612 = vmatprep.subr.mxu0 0.0
  %1613 = vmatpush1.msra.mxu0 0.0
  %1614 = vmatprep.subr.mxu0 0.0
  %1615 = vmatpush1.msra.mxu0 0.0
  %1616 = vmatprep.subr.mxu0 0.0
  %1617 = vmatpush1.msra.mxu0 0.0
  %1618 = vmatprep.subr.mxu0 0.0
  %1619 = vmatpush1.msra.mxu0 0.0
  %1620 = vmatprep.subr.mxu0 0.0
  %1621 = vmatpush1.msra.mxu0 0.0
  %1622 = vmatprep.subr.mxu0 0.0
  %1623 = vmatpush1.msra.mxu0 %v39
  %1624 = vmatprep.subr.mxu0 0.0
  %1625 = vmatpush2.msra.mxu0 0.0
  %1626 = vmatprep.subr.mxu0 0.0
  %1627 = vmatpush2.msra.mxu0 0.0
  %1628 = vmatprep.subr.mxu0 0.0
  %1629 = vmatpush2.msra.mxu0 0.0
  %1630 = vmatprep.subr.mxu0 0.0
  %1631 = vmatpush2.msra.mxu0 0.0
  %1632 = vmatprep.subr.mxu0 0.0
  %1633 = vmatpush2.msra.mxu0 0.0
  %1634 = vmatprep.subr.mxu0 0.0
  %1635 = vmatpush2.msra.mxu0 0.0
  %1636 = vmatprep.subr.mxu0 0.0
  %1637 = vmatpush2.msra.mxu0 0.0
  %1638 = vmatprep.subr.mxu0 0.0
  %1639 = vmatpush2.msra.mxu0 0.0
  %1640 = vmatprep.subr.mxu0 0.0
  %1641 = vmatpush2.msra.mxu0 0.0
  %1642 = vmatprep.subr.mxu0 0.0
  %1643 = vmatpush2.msra.mxu0 0.0
  %1644 = vmatprep.subr.mxu0 0.0
  %1645 = vmatpush2.msra.mxu0 0.0
  %1646 = vmatprep.subr.mxu0 0.0
  %1647 = vmatpush2.msra.mxu0 0.0
  %1648 = vmatprep.subr.mxu0 0.0
  %1649 = vmatpush2.msra.mxu0 0.0
  %1650 = vmatprep.subr.mxu0 0.0
  %1651 = vmatpush2.msra.mxu0 0.0
  %1652 = vmatprep.subr.mxu0 0.0
  %1653 = vmatpush2.msra.mxu0 0.0
  %1654 = vmatprep.subr.mxu0 0.0
  %1655 = vmatpush2.msra.mxu0 0.0
  %1656 = vmatprep.mubr.f32.mxu0 0.0
  %1657 = vmatmul.mubr.f32.gmra.mxu0 %v1590
  %v1658 = vpop.f32.mrf.mxu0
  %v1659 = vadd.f32 %v1586, %v1658
  %v1660 = vpop.f32.mrf.mxu0
  %1661 = vdwg.mxu0
  %v1662 = vadd.f32 %v1659, %v49
  %v1663 = vxor.u32 %v1662, 2147483648
  %v1664 = vmul.f32 %v1663, 1.442695
  %v1665 = vpow.pop %v1664
  %v1666 = vadd.f32 %v1665, 1.0
  %v1667 = vrcp.pop %v1666
  %v1668 = vmul.f32 1.0, %v1667
  %1670 = vrot.lane.b32.xlu0 %v1662, 32
  %v1671 = vpop.permute.xlu0 %1670
  %v1673 = vmul.f32 %v1668, %v1671
  %1675 = vrot.lane.b32.xlu0 %v1673, 64
  %v1676 = vpop.permute.xlu0 %1675
  %v1678 = vadd.f32 %v1662, %v1676
  %v1679 = vtanh.pop %v1678
  %v1680 = vsub.f32 1.0, %v1668
  %1682 = vrot.lane.b32.xlu0 %v1679, 96
  %v1683 = vpop.permute.xlu0 %1682
  %v1685 = vmul.f32 %v1680, %v1683
  %v1686 = vmul.f32 %v1668, %v1278
  %v1687 = vadd.f32 %v1685, %v1686
  %1689 = vrot.lane.b32.xlu0 %v1687, 96
  %v1690 = vpop.permute.xlu0 %1689
  %s1692 = scalar_lea.vmem %s6, 12
  %1693 = vst.msk [vmem:[%s1692] sm:$0xf] %vm465, %v1690
  %s1694 = scalar_lea.vmem %s0, 16
  %v1695 = vld [vmem:[%s1694] sm:$0xf]
  %v1697 = vsel %vm53, %v1695, 0
  %1699 = vmatprep.subr.mxu0 0.0
  %1700 = vmatpush1.msra.mxu0 0.0
  %1701 = vmatprep.subr.mxu0 0.0
  %1702 = vmatpush1.msra.mxu0 0.0
  %1703 = vmatprep.subr.mxu0 0.0
  %1704 = vmatpush1.msra.mxu0 0.0
  %1705 = vmatprep.subr.mxu0 0.0
  %1706 = vmatpush1.msra.mxu0 0.0
  %1707 = vmatprep.subr.mxu0 0.0
  %1708 = vmatpush1.msra.mxu0 0.0
  %1709 = vmatprep.subr.mxu0 0.0
  %1710 = vmatpush1.msra.mxu0 0.0
  %1711 = vmatprep.subr.mxu0 0.0
  %1712 = vmatpush1.msra.mxu0 0.0
  %1713 = vmatprep.subr.mxu0 0.0
  %1714 = vmatpush1.msra.mxu0 0.0
  %1715 = vmatprep.subr.mxu0 0.0
  %1716 = vmatpush1.msra.mxu0 0.0
  %1717 = vmatprep.subr.mxu0 0.0
  %1718 = vmatpush1.msra.mxu0 0.0
  %1719 = vmatprep.subr.mxu0 0.0
  %1720 = vmatpush1.msra.mxu0 0.0
  %1721 = vmatprep.subr.mxu0 0.0
  %1722 = vmatpush1.msra.mxu0 0.0
  %1723 = vmatprep.subr.mxu0 0.0
  %1724 = vmatpush1.msra.mxu0 0.0
  %1725 = vmatprep.subr.mxu0 0.0
  %1726 = vmatpush1.msra.mxu0 0.0
  %1727 = vmatprep.subr.mxu0 0.0
  %1728 = vmatpush1.msra.mxu0 0.0
  %1729 = vmatprep.subr.mxu0 0.0
  %1730 = vmatpush1.msra.mxu0 %v23
  %1731 = vmatprep.subr.mxu0 0.0
  %1732 = vmatpush2.msra.mxu0 0.0
  %1733 = vmatprep.subr.mxu0 0.0
  %1734 = vmatpush2.msra.mxu0 0.0
  %1735 = vmatprep.subr.mxu0 0.0
  %1736 = vmatpush2.msra.mxu0 0.0
  %1737 = vmatprep.subr.mxu0 0.0
  %1738 = vmatpush2.msra.mxu0 0.0
  %1739 = vmatprep.subr.mxu0 0.0
  %1740 = vmatpush2.msra.mxu0 0.0
  %1741 = vmatprep.subr.mxu0 0.0
  %1742 = vmatpush2.msra.mxu0 0.0
  %1743 = vmatprep.subr.mxu0 0.0
  %1744 = vmatpush2.msra.mxu0 0.0
  %1745 = vmatprep.subr.mxu0 0.0
  %1746 = vmatpush2.msra.mxu0 0.0
  %1747 = vmatprep.subr.mxu0 0.0
  %1748 = vmatpush2.msra.mxu0 0.0
  %1749 = vmatprep.subr.mxu0 0.0
  %1750 = vmatpush2.msra.mxu0 0.0
  %1751 = vmatprep.subr.mxu0 0.0
  %1752 = vmatpush2.msra.mxu0 0.0
  %1753 = vmatprep.subr.mxu0 0.0
  %1754 = vmatpush2.msra.mxu0 0.0
  %1755 = vmatprep.subr.mxu0 0.0
  %1756 = vmatpush2.msra.mxu0 0.0
  %1757 = vmatprep.subr.mxu0 0.0
  %1758 = vmatpush2.msra.mxu0 0.0
  %1759 = vmatprep.subr.mxu0 0.0
  %1760 = vmatpush2.msra.mxu0 0.0
  %1761 = vmatprep.subr.mxu0 0.0
  %1762 = vmatpush2.msra.mxu0 0.0
  %1763 = vmatprep.mubr.f32.mxu0 0.0
  %1764 = vmatmul.mubr.f32.gmra.mxu0 %v1697
  %v1765 = vpop.f32.mrf.mxu0
  %v1766 = vadd.f32 0.0, %v1765
  %v1767 = vpop.f32.mrf.mxu0
  %1768 = vdwg.mxu0
  %v1769 = vsel %vm127, %v1690, 0
  %1771 = vmatprep.subr.mxu0 0.0
  %1772 = vmatpush1.msra.mxu0 0.0
  %1773 = vmatprep.subr.mxu0 0.0
  %1774 = vmatpush1.msra.mxu0 0.0
  %1775 = vmatprep.subr.mxu0 0.0
  %1776 = vmatpush1.msra.mxu0 0.0
  %1777 = vmatprep.subr.mxu0 0.0
  %1778 = vmatpush1.msra.mxu0 0.0
  %1779 = vmatprep.subr.mxu0 0.0
  %1780 = vmatpush1.msra.mxu0 0.0
  %1781 = vmatprep.subr.mxu0 0.0
  %1782 = vmatpush1.msra.mxu0 0.0
  %1783 = vmatprep.subr.mxu0 0.0
  %1784 = vmatpush1.msra.mxu0 0.0
  %1785 = vmatprep.subr.mxu0 0.0
  %1786 = vmatpush1.msra.mxu0 0.0
  %1787 = vmatprep.subr.mxu0 0.0
  %1788 = vmatpush1.msra.mxu0 0.0
  %1789 = vmatprep.subr.mxu0 0.0
  %1790 = vmatpush1.msra.mxu0 0.0
  %1791 = vmatprep.subr.mxu0 0.0
  %1792 = vmatpush1.msra.mxu0 0.0
  %1793 = vmatprep.subr.mxu0 0.0
  %1794 = vmatpush1.msra.mxu0 0.0
  %1795 = vmatprep.subr.mxu0 0.0
  %1796 = vmatpush1.msra.mxu0 %v28
  %1797 = vmatprep.subr.mxu0 0.0
  %1798 = vmatpush1.msra.mxu0 %v27
  %1799 = vmatprep.subr.mxu0 0.0
  %1800 = vmatpush1.msra.mxu0 %v26
  %1801 = vmatprep.subr.mxu0 0.0
  %1802 = vmatpush1.msra.mxu0 %v25
  %1803 = vmatprep.subr.mxu0 0.0
  %1804 = vmatpush2.msra.mxu0 0.0
  %1805 = vmatprep.subr.mxu0 0.0
  %1806 = vmatpush2.msra.mxu0 0.0
  %1807 = vmatprep.subr.mxu0 0.0
  %1808 = vmatpush2.msra.mxu0 0.0
  %1809 = vmatprep.subr.mxu0 0.0
  %1810 = vmatpush2.msra.mxu0 0.0
  %1811 = vmatprep.subr.mxu0 0.0
  %1812 = vmatpush2.msra.mxu0 0.0
  %1813 = vmatprep.subr.mxu0 0.0
  %1814 = vmatpush2.msra.mxu0 0.0
  %1815 = vmatprep.subr.mxu0 0.0
  %1816 = vmatpush2.msra.mxu0 0.0
  %1817 = vmatprep.subr.mxu0 0.0
  %1818 = vmatpush2.msra.mxu0 0.0
  %1819 = vmatprep.subr.mxu0 0.0
  %1820 = vmatpush2.msra.mxu0 0.0
  %1821 = vmatprep.subr.mxu0 0.0
  %1822 = vmatpush2.msra.mxu0 0.0
  %1823 = vmatprep.subr.mxu0 0.0
  %1824 = vmatpush2.msra.mxu0 0.0
  %1825 = vmatprep.subr.mxu0 0.0
  %1826 = vmatpush2.msra.mxu0 0.0
  %1827 = vmatprep.subr.mxu0 0.0
  %1828 = vmatpush2.msra.mxu0 0.0
  %1829 = vmatprep.subr.mxu0 0.0
  %1830 = vmatpush2.msra.mxu0 0.0
  %1831 = vmatprep.subr.mxu0 0.0
  %1832 = vmatpush2.msra.mxu0 0.0
  %1833 = vmatprep.subr.mxu0 0.0
  %1834 = vmatpush2.msra.mxu0 0.0
  %1835 = vmatprep.mubr.f32.mxu0 0.0
  %1836 = vmatmul.mubr.f32.gmra.mxu0 %v1769
  %v1837 = vpop.f32.mrf.mxu0
  %v1838 = vadd.f32 %v1766, %v1837
  %v1839 = vpop.f32.mrf.mxu0
  %1840 = vdwg.mxu0
  %v1841 = vadd.f32 %v1838, %v33
  %v1842 = vtanh.pop %v1841
  %v1844 = vsel %vm53, %v1842, 0
  %1846 = vmatprep.subr.mxu0 0.0
  %1847 = vmatpush1.msra.mxu0 0.0
  %1848 = vmatprep.subr.mxu0 0.0
  %1849 = vmatpush1.msra.mxu0 0.0
  %1850 = vmatprep.subr.mxu0 0.0
  %1851 = vmatpush1.msra.mxu0 0.0
  %1852 = vmatprep.subr.mxu0 0.0
  %1853 = vmatpush1.msra.mxu0 0.0
  %1854 = vmatprep.subr.mxu0 0.0
  %1855 = vmatpush1.msra.mxu0 0.0
  %1856 = vmatprep.subr.mxu0 0.0
  %1857 = vmatpush1.msra.mxu0 0.0
  %1858 = vmatprep.subr.mxu0 0.0
  %1859 = vmatpush1.msra.mxu0 0.0
  %1860 = vmatprep.subr.mxu0 0.0
  %1861 = vmatpush1.msra.mxu0 0.0
  %1862 = vmatprep.subr.mxu0 0.0
  %1863 = vmatpush1.msra.mxu0 0.0
  %1864 = vmatprep.subr.mxu0 0.0
  %1865 = vmatpush1.msra.mxu0 0.0
  %1866 = vmatprep.subr.mxu0 0.0
  %1867 = vmatpush1.msra.mxu0 0.0
  %1868 = vmatprep.subr.mxu0 0.0
  %1869 = vmatpush1.msra.mxu0 0.0
  %1870 = vmatprep.subr.mxu0 0.0
  %1871 = vmatpush1.msra.mxu0 0.0
  %1872 = vmatprep.subr.mxu0 0.0
  %1873 = vmatpush1.msra.mxu0 0.0
  %1874 = vmatprep.subr.mxu0 0.0
  %1875 = vmatpush1.msra.mxu0 0.0
  %1876 = vmatprep.subr.mxu0 0.0
  %1877 = vmatpush1.msra.mxu0 %v24
  %1878 = vmatprep.subr.mxu0 0.0
  %1879 = vmatpush2.msra.mxu0 0.0
  %1880 = vmatprep.subr.mxu0 0.0
  %1881 = vmatpush2.msra.mxu0 0.0
  %1882 = vmatprep.subr.mxu0 0.0
  %1883 = vmatpush2.msra.mxu0 0.0
  %1884 = vmatprep.subr.mxu0 0.0
  %1885 = vmatpush2.msra.mxu0 0.0
  %1886 = vmatprep.subr.mxu0 0.0
  %1887 = vmatpush2.msra.mxu0 0.0
  %1888 = vmatprep.subr.mxu0 0.0
  %1889 = vmatpush2.msra.mxu0 0.0
  %1890 = vmatprep.subr.mxu0 0.0
  %1891 = vmatpush2.msra.mxu0 0.0
  %1892 = vmatprep.subr.mxu0 0.0
  %1893 = vmatpush2.msra.mxu0 0.0
  %1894 = vmatprep.subr.mxu0 0.0
  %1895 = vmatpush2.msra.mxu0 0.0
  %1896 = vmatprep.subr.mxu0 0.0
  %1897 = vmatpush2.msra.mxu0 0.0
  %1898 = vmatprep.subr.mxu0 0.0
  %1899 = vmatpush2.msra.mxu0 0.0
  %1900 = vmatprep.subr.mxu0 0.0
  %1901 = vmatpush2.msra.mxu0 0.0
  %1902 = vmatprep.subr.mxu0 0.0
  %1903 = vmatpush2.msra.mxu0 0.0
  %1904 = vmatprep.subr.mxu0 0.0
  %1905 = vmatpush2.msra.mxu0 0.0
  %1906 = vmatprep.subr.mxu0 0.0
  %1907 = vmatpush2.msra.mxu0 0.0
  %1908 = vmatprep.subr.mxu0 0.0
  %1909 = vmatpush2.msra.mxu0 0.0
  %1910 = vmatprep.mubr.f32.mxu0 0.0
  %1911 = vmatmul.mubr.f32.gmra.mxu0 %v1844
  %v1912 = vpop.f32.mrf.mxu0
  %v1913 = vadd.f32 %v38, %v1912
  %v1914 = vpop.f32.mrf.mxu0
  %1915 = vdwg.mxu0
  %v1916 = vsel %vm276, %v1913, -inf
  %1917 = vmax.xlane.f32.xlu0 %v1916
  %v1918 = vpop.xlane.xlu0 %1917
  %v1919 = vsub.f32 %v1913, %v1918
  %v1920 = vmul.f32 %v1919, 1.442695
  %v1921 = vpow.pop %v1920
  %v1922 = vsel %vm276, %v1921, 0.0
  %1923 = vadd.xlane.f32.xlu0 %v1922
  %v1924 = vpop.xlane.xlu0 %1923
  %v1925 = vrcp.pop %v1924
  %v1926 = vmul.f32 %v1921, %v1925
  %v1927 = vmul.f32 %v1695, %v1926
  %1928 = vmatprep.subr.mxu0 0.0
  %1929 = vmatpush1.msra.mxu0 0.0
  %1930 = vmatprep.subr.mxu0 0.0
  %1931 = vmatpush1.msra.mxu0 0.0
  %1932 = vmatprep.subr.mxu0 0.0
  %1933 = vmatpush1.msra.mxu0 0.0
  %1934 = vmatprep.subr.mxu0 0.0
  %1935 = vmatpush1.msra.mxu0 0.0
  %1936 = vmatprep.subr.mxu0 0.0
  %1937 = vmatpush1.msra.mxu0 0.0
  %1938 = vmatprep.subr.mxu0 0.0
  %1939 = vmatpush1.msra.mxu0 0.0
  %1940 = vmatprep.subr.mxu0 0.0
  %1941 = vmatpush1.msra.mxu0 0.0
  %1942 = vmatprep.subr.mxu0 0.0
  %1943 = vmatpush1.msra.mxu0 0.0
  %1944 = vmatprep.subr.mxu0 0.0
  %1945 = vmatpush1.msra.mxu0 0.0
  %1946 = vmatprep.subr.mxu0 0.0
  %1947 = vmatpush1.msra.mxu0 0.0
  %1948 = vmatprep.subr.mxu0 0.0
  %1949 = vmatpush1.msra.mxu0 0.0
  %1950 = vmatprep.subr.mxu0 0.0
  %1951 = vmatpush1.msra.mxu0 0.0
  %1952 = vmatprep.subr.mxu0 0.0
  %1953 = vmatpush1.msra.mxu0 %v43
  %1954 = vmatprep.subr.mxu0 0.0
  %1955 = vmatpush1.msra.mxu0 %v42
  %1956 = vmatprep.subr.mxu0 0.0
  %1957 = vmatpush1.msra.mxu0 %v41
  %1958 = vmatprep.subr.mxu0 0.0
  %1959 = vmatpush1.msra.mxu0 %v40
  %1960 = vmatprep.subr.mxu0 0.0
  %1961 = vmatpush2.msra.mxu0 0.0
  %1962 = vmatprep.subr.mxu0 0.0
  %1963 = vmatpush2.msra.mxu0 0.0
  %1964 = vmatprep.subr.mxu0 0.0
  %1965 = vmatpush2.msra.mxu0 0.0
  %1966 = vmatprep.subr.mxu0 0.0
  %1967 = vmatpush2.msra.mxu0 0.0
  %1968 = vmatprep.subr.mxu0 0.0
  %1969 = vmatpush2.msra.mxu0 0.0
  %1970 = vmatprep.subr.mxu0 0.0
  %1971 = vmatpush2.msra.mxu0 0.0
  %1972 = vmatprep.subr.mxu0 0.0
  %1973 = vmatpush2.msra.mxu0 0.0
  %1974 = vmatprep.subr.mxu0 0.0
  %1975 = vmatpush2.msra.mxu0 0.0
  %1976 = vmatprep.subr.mxu0 0.0
  %1977 = vmatpush2.msra.mxu0 0.0
  %1978 = vmatprep.subr.mxu0 0.0
  %1979 = vmatpush2.msra.mxu0 0.0
  %1980 = vmatprep.subr.mxu0 0.0
  %1981 = vmatpush2.msra.mxu0 0.0
  %1982 = vmatprep.subr.mxu0 0.0
  %1983 = vmatpush2.msra.mxu0 0.0
  %1984 = vmatprep.subr.mxu0 0.0
  %1985 = vmatpush2.msra.mxu0 0.0
  %1986 = vmatprep.subr.mxu0 0.0
  %1987 = vmatpush2.msra.mxu0 0.0
  %1988 = vmatprep.subr.mxu0 0.0
  %1989 = vmatpush2.msra.mxu0 0.0
  %1990 = vmatprep.subr.mxu0 0.0
  %1991 = vmatpush2.msra.mxu0 0.0
  %1992 = vmatprep.mubr.f32.mxu0 0.0
  %1993 = vmatmul.mubr.f32.gmra.mxu0 %v1769
  %v1994 = vpop.f32.mrf.mxu0
  %v1995 = vadd.f32 0.0, %v1994
  %v1996 = vpop.f32.mrf.mxu0
  %1997 = vdwg.mxu0
  %v1999 = vsel %vm53, %v1927, 0
  %2001 = vmatprep.subr.mxu0 0.0
  %2002 = vmatpush1.msra.mxu0 0.0
  %2003 = vmatprep.subr.mxu0 0.0
  %2004 = vmatpush1.msra.mxu0 0.0
  %2005 = vmatprep.subr.mxu0 0.0
  %2006 = vmatpush1.msra.mxu0 0.0
  %2007 = vmatprep.subr.mxu0 0.0
  %2008 = vmatpush1.msra.mxu0 0.0
  %2009 = vmatprep.subr.mxu0 0.0
  %2010 = vmatpush1.msra.mxu0 0.0
  %2011 = vmatprep.subr.mxu0 0.0
  %2012 = vmatpush1.msra.mxu0 0.0
  %2013 = vmatprep.subr.mxu0 0.0
  %2014 = vmatpush1.msra.mxu0 0.0
  %2015 = vmatprep.subr.mxu0 0.0
  %2016 = vmatpush1.msra.mxu0 0.0
  %2017 = vmatprep.subr.mxu0 0.0
  %2018 = vmatpush1.msra.mxu0 0.0
  %2019 = vmatprep.subr.mxu0 0.0
  %2020 = vmatpush1.msra.mxu0 0.0
  %2021 = vmatprep.subr.mxu0 0.0
  %2022 = vmatpush1.msra.mxu0 0.0
  %2023 = vmatprep.subr.mxu0 0.0
  %2024 = vmatpush1.msra.mxu0 0.0
  %2025 = vmatprep.subr.mxu0 0.0
  %2026 = vmatpush1.msra.mxu0 0.0
  %2027 = vmatprep.subr.mxu0 0.0
  %2028 = vmatpush1.msra.mxu0 0.0
  %2029 = vmatprep.subr.mxu0 0.0
  %2030 = vmatpush1.msra.mxu0 0.0
  %2031 = vmatprep.subr.mxu0 0.0
  %2032 = vmatpush1.msra.mxu0 %v39
  %2033 = vmatprep.subr.mxu0 0.0
  %2034 = vmatpush2.msra.mxu0 0.0
  %2035 = vmatprep.subr.mxu0 0.0
  %2036 = vmatpush2.msra.mxu0 0.0
  %2037 = vmatprep.subr.mxu0 0.0
  %2038 = vmatpush2.msra.mxu0 0.0
  %2039 = vmatprep.subr.mxu0 0.0
  %2040 = vmatpush2.msra.mxu0 0.0
  %2041 = vmatprep.subr.mxu0 0.0
  %2042 = vmatpush2.msra.mxu0 0.0
  %2043 = vmatprep.subr.mxu0 0.0
  %2044 = vmatpush2.msra.mxu0 0.0
  %2045 = vmatprep.subr.mxu0 0.0
  %2046 = vmatpush2.msra.mxu0 0.0
  %2047 = vmatprep.subr.mxu0 0.0
  %2048 = vmatpush2.msra.mxu0 0.0
  %2049 = vmatprep.subr.mxu0 0.0
  %2050 = vmatpush2.msra.mxu0 0.0
  %2051 = vmatprep.subr.mxu0 0.0
  %2052 = vmatpush2.msra.mxu0 0.0
  %2053 = vmatprep.subr.mxu0 0.0
  %2054 = vmatpush2.msra.mxu0 0.0
  %2055 = vmatprep.subr.mxu0 0.0
  %2056 = vmatpush2.msra.mxu0 0.0
  %2057 = vmatprep.subr.mxu0 0.0
  %2058 = vmatpush2.msra.mxu0 0.0
  %2059 = vmatprep.subr.mxu0 0.0
  %2060 = vmatpush2.msra.mxu0 0.0
  %2061 = vmatprep.subr.mxu0 0.0
  %2062 = vmatpush2.msra.mxu0 0.0
  %2063 = vmatprep.subr.mxu0 0.0
  %2064 = vmatpush2.msra.mxu0 0.0
  %2065 = vmatprep.mubr.f32.mxu0 0.0
  %2066 = vmatmul.mubr.f32.gmra.mxu0 %v1999
  %v2067 = vpop.f32.mrf.mxu0
  %v2068 = vadd.f32 %v1995, %v2067
  %v2069 = vpop.f32.mrf.mxu0
  %2070 = vdwg.mxu0
  %v2071 = vadd.f32 %v2068, %v49
  %v2072 = vxor.u32 %v2071, 2147483648
  %v2073 = vmul.f32 %v2072, 1.442695
  %v2074 = vpow.pop %v2073
  %v2075 = vadd.f32 %v2074, 1.0
  %v2076 = vrcp.pop %v2075
  %v2077 = vmul.f32 1.0, %v2076
  %2079 = vrot.lane.b32.xlu0 %v2071, 32
  %v2080 = vpop.permute.xlu0 %2079
  %v2082 = vmul.f32 %v2077, %v2080
  %2084 = vrot.lane.b32.xlu0 %v2082, 64
  %v2085 = vpop.permute.xlu0 %2084
  %v2087 = vadd.f32 %v2071, %v2085
  %v2088 = vtanh.pop %v2087
  %v2089 = vsub.f32 1.0, %v2077
  %2091 = vrot.lane.b32.xlu0 %v2088, 96
  %v2092 = vpop.permute.xlu0 %2091
  %v2094 = vmul.f32 %v2089, %v2092
  %v2095 = vmul.f32 %v2077, %v1687
  %v2096 = vadd.f32 %v2094, %v2095
  %2098 = vrot.lane.b32.xlu0 %v2096, 96
  %v2099 = vpop.permute.xlu0 %2098
  %s2101 = scalar_lea.vmem %s6, 16
  %2102 = vst.msk [vmem:[%s2101] sm:$0xf] %vm465, %v2099
  %s2103 = scalar_lea.vmem %s0, 20
  %v2104 = vld [vmem:[%s2103] sm:$0xf]
  %v2106 = vsel %vm53, %v2104, 0
  %2108 = vmatprep.subr.mxu0 0.0
  %2109 = vmatpush1.msra.mxu0 0.0
  %2110 = vmatprep.subr.mxu0 0.0
  %2111 = vmatpush1.msra.mxu0 0.0
  %2112 = vmatprep.subr.mxu0 0.0
  %2113 = vmatpush1.msra.mxu0 0.0
  %2114 = vmatprep.subr.mxu0 0.0
  %2115 = vmatpush1.msra.mxu0 0.0
  %2116 = vmatprep.subr.mxu0 0.0
  %2117 = vmatpush1.msra.mxu0 0.0
  %2118 = vmatprep.subr.mxu0 0.0
  %2119 = vmatpush1.msra.mxu0 0.0
  %2120 = vmatprep.subr.mxu0 0.0
  %2121 = vmatpush1.msra.mxu0 0.0
  %2122 = vmatprep.subr.mxu0 0.0
  %2123 = vmatpush1.msra.mxu0 0.0
  %2124 = vmatprep.subr.mxu0 0.0
  %2125 = vmatpush1.msra.mxu0 0.0
  %2126 = vmatprep.subr.mxu0 0.0
  %2127 = vmatpush1.msra.mxu0 0.0
  %2128 = vmatprep.subr.mxu0 0.0
  %2129 = vmatpush1.msra.mxu0 0.0
  %2130 = vmatprep.subr.mxu0 0.0
  %2131 = vmatpush1.msra.mxu0 0.0
  %2132 = vmatprep.subr.mxu0 0.0
  %2133 = vmatpush1.msra.mxu0 0.0
  %2134 = vmatprep.subr.mxu0 0.0
  %2135 = vmatpush1.msra.mxu0 0.0
  %2136 = vmatprep.subr.mxu0 0.0
  %2137 = vmatpush1.msra.mxu0 0.0
  %2138 = vmatprep.subr.mxu0 0.0
  %2139 = vmatpush1.msra.mxu0 %v23
  %2140 = vmatprep.subr.mxu0 0.0
  %2141 = vmatpush2.msra.mxu0 0.0
  %2142 = vmatprep.subr.mxu0 0.0
  %2143 = vmatpush2.msra.mxu0 0.0
  %2144 = vmatprep.subr.mxu0 0.0
  %2145 = vmatpush2.msra.mxu0 0.0
  %2146 = vmatprep.subr.mxu0 0.0
  %2147 = vmatpush2.msra.mxu0 0.0
  %2148 = vmatprep.subr.mxu0 0.0
  %2149 = vmatpush2.msra.mxu0 0.0
  %2150 = vmatprep.subr.mxu0 0.0
  %2151 = vmatpush2.msra.mxu0 0.0
  %2152 = vmatprep.subr.mxu0 0.0
  %2153 = vmatpush2.msra.mxu0 0.0
  %2154 = vmatprep.subr.mxu0 0.0
  %2155 = vmatpush2.msra.mxu0 0.0
  %2156 = vmatprep.subr.mxu0 0.0
  %2157 = vmatpush2.msra.mxu0 0.0
  %2158 = vmatprep.subr.mxu0 0.0
  %2159 = vmatpush2.msra.mxu0 0.0
  %2160 = vmatprep.subr.mxu0 0.0
  %2161 = vmatpush2.msra.mxu0 0.0
  %2162 = vmatprep.subr.mxu0 0.0
  %2163 = vmatpush2.msra.mxu0 0.0
  %2164 = vmatprep.subr.mxu0 0.0
  %2165 = vmatpush2.msra.mxu0 0.0
  %2166 = vmatprep.subr.mxu0 0.0
  %2167 = vmatpush2.msra.mxu0 0.0
  %2168 = vmatprep.subr.mxu0 0.0
  %2169 = vmatpush2.msra.mxu0 0.0
  %2170 = vmatprep.subr.mxu0 0.0
  %2171 = vmatpush2.msra.mxu0 0.0
  %2172 = vmatprep.mubr.f32.mxu0 0.0
  %2173 = vmatmul.mubr.f32.gmra.mxu0 %v2106
  %v2174 = vpop.f32.mrf.mxu0
  %v2175 = vadd.f32 0.0, %v2174
  %v2176 = vpop.f32.mrf.mxu0
  %2177 = vdwg.mxu0
  %v2178 = vsel %vm127, %v2099, 0
  %2180 = vmatprep.subr.mxu0 0.0
  %2181 = vmatpush1.msra.mxu0 0.0
  %2182 = vmatprep.subr.mxu0 0.0
  %2183 = vmatpush1.msra.mxu0 0.0
  %2184 = vmatprep.subr.mxu0 0.0
  %2185 = vmatpush1.msra.mxu0 0.0
  %2186 = vmatprep.subr.mxu0 0.0
  %2187 = vmatpush1.msra.mxu0 0.0
  %2188 = vmatprep.subr.mxu0 0.0
  %2189 = vmatpush1.msra.mxu0 0.0
  %2190 = vmatprep.subr.mxu0 0.0
  %2191 = vmatpush1.msra.mxu0 0.0
  %2192 = vmatprep.subr.mxu0 0.0
  %2193 = vmatpush1.msra.mxu0 0.0
  %2194 = vmatprep.subr.mxu0 0.0
  %2195 = vmatpush1.msra.mxu0 0.0
  %2196 = vmatprep.subr.mxu0 0.0
  %2197 = vmatpush1.msra.mxu0 0.0
  %2198 = vmatprep.subr.mxu0 0.0
  %2199 = vmatpush1.msra.mxu0 0.0
  %2200 = vmatprep.subr.mxu0 0.0
  %2201 = vmatpush1.msra.mxu0 0.0
  %2202 = vmatprep.subr.mxu0 0.0
  %2203 = vmatpush1.msra.mxu0 0.0
  %2204 = vmatprep.subr.mxu0 0.0
  %2205 = vmatpush1.msra.mxu0 %v28
  %2206 = vmatprep.subr.mxu0 0.0
  %2207 = vmatpush1.msra.mxu0 %v27
  %2208 = vmatprep.subr.mxu0 0.0
  %2209 = vmatpush1.msra.mxu0 %v26
  %2210 = vmatprep.subr.mxu0 0.0
  %2211 = vmatpush1.msra.mxu0 %v25
  %2212 = vmatprep.subr.mxu0 0.0
  %2213 = vmatpush2.msra.mxu0 0.0
  %2214 = vmatprep.subr.mxu0 0.0
  %2215 = vmatpush2.msra.mxu0 0.0
  %2216 = vmatprep.subr.mxu0 0.0
  %2217 = vmatpush2.msra.mxu0 0.0
  %2218 = vmatprep.subr.mxu0 0.0
  %2219 = vmatpush2.msra.mxu0 0.0
  %2220 = vmatprep.subr.mxu0 0.0
  %2221 = vmatpush2.msra.mxu0 0.0
  %2222 = vmatprep.subr.mxu0 0.0
  %2223 = vmatpush2.msra.mxu0 0.0
  %2224 = vmatprep.subr.mxu0 0.0
  %2225 = vmatpush2.msra.mxu0 0.0
  %2226 = vmatprep.subr.mxu0 0.0
  %2227 = vmatpush2.msra.mxu0 0.0
  %2228 = vmatprep.subr.mxu0 0.0
  %2229 = vmatpush2.msra.mxu0 0.0
  %2230 = vmatprep.subr.mxu0 0.0
  %2231 = vmatpush2.msra.mxu0 0.0
  %2232 = vmatprep.subr.mxu0 0.0
  %2233 = vmatpush2.msra.mxu0 0.0
  %2234 = vmatprep.subr.mxu0 0.0
  %2235 = vmatpush2.msra.mxu0 0.0
  %2236 = vmatprep.subr.mxu0 0.0
  %2237 = vmatpush2.msra.mxu0 0.0
  %2238 = vmatprep.subr.mxu0 0.0
  %2239 = vmatpush2.msra.mxu0 0.0
  %2240 = vmatprep.subr.mxu0 0.0
  %2241 = vmatpush2.msra.mxu0 0.0
  %2242 = vmatprep.subr.mxu0 0.0
  %2243 = vmatpush2.msra.mxu0 0.0
  %2244 = vmatprep.mubr.f32.mxu0 0.0
  %2245 = vmatmul.mubr.f32.gmra.mxu0 %v2178
  %v2246 = vpop.f32.mrf.mxu0
  %v2247 = vadd.f32 %v2175, %v2246
  %v2248 = vpop.f32.mrf.mxu0
  %2249 = vdwg.mxu0
  %v2250 = vadd.f32 %v2247, %v33
  %v2251 = vtanh.pop %v2250
  %v2253 = vsel %vm53, %v2251, 0
  %2255 = vmatprep.subr.mxu0 0.0
  %2256 = vmatpush1.msra.mxu0 0.0
  %2257 = vmatprep.subr.mxu0 0.0
  %2258 = vmatpush1.msra.mxu0 0.0
  %2259 = vmatprep.subr.mxu0 0.0
  %2260 = vmatpush1.msra.mxu0 0.0
  %2261 = vmatprep.subr.mxu0 0.0
  %2262 = vmatpush1.msra.mxu0 0.0
  %2263 = vmatprep.subr.mxu0 0.0
  %2264 = vmatpush1.msra.mxu0 0.0
  %2265 = vmatprep.subr.mxu0 0.0
  %2266 = vmatpush1.msra.mxu0 0.0
  %2267 = vmatprep.subr.mxu0 0.0
  %2268 = vmatpush1.msra.mxu0 0.0
  %2269 = vmatprep.subr.mxu0 0.0
  %2270 = vmatpush1.msra.mxu0 0.0
  %2271 = vmatprep.subr.mxu0 0.0
  %2272 = vmatpush1.msra.mxu0 0.0
  %2273 = vmatprep.subr.mxu0 0.0
  %2274 = vmatpush1.msra.mxu0 0.0
  %2275 = vmatprep.subr.mxu0 0.0
  %2276 = vmatpush1.msra.mxu0 0.0
  %2277 = vmatprep.subr.mxu0 0.0
  %2278 = vmatpush1.msra.mxu0 0.0
  %2279 = vmatprep.subr.mxu0 0.0
  %2280 = vmatpush1.msra.mxu0 0.0
  %2281 = vmatprep.subr.mxu0 0.0
  %2282 = vmatpush1.msra.mxu0 0.0
  %2283 = vmatprep.subr.mxu0 0.0
  %2284 = vmatpush1.msra.mxu0 0.0
  %2285 = vmatprep.subr.mxu0 0.0
  %2286 = vmatpush1.msra.mxu0 %v24
  %2287 = vmatprep.subr.mxu0 0.0
  %2288 = vmatpush2.msra.mxu0 0.0
  %2289 = vmatprep.subr.mxu0 0.0
  %2290 = vmatpush2.msra.mxu0 0.0
  %2291 = vmatprep.subr.mxu0 0.0
  %2292 = vmatpush2.msra.mxu0 0.0
  %2293 = vmatprep.subr.mxu0 0.0
  %2294 = vmatpush2.msra.mxu0 0.0
  %2295 = vmatprep.subr.mxu0 0.0
  %2296 = vmatpush2.msra.mxu0 0.0
  %2297 = vmatprep.subr.mxu0 0.0
  %2298 = vmatpush2.msra.mxu0 0.0
  %2299 = vmatprep.subr.mxu0 0.0
  %2300 = vmatpush2.msra.mxu0 0.0
  %2301 = vmatprep.subr.mxu0 0.0
  %2302 = vmatpush2.msra.mxu0 0.0
  %2303 = vmatprep.subr.mxu0 0.0
  %2304 = vmatpush2.msra.mxu0 0.0
  %2305 = vmatprep.subr.mxu0 0.0
  %2306 = vmatpush2.msra.mxu0 0.0
  %2307 = vmatprep.subr.mxu0 0.0
  %2308 = vmatpush2.msra.mxu0 0.0
  %2309 = vmatprep.subr.mxu0 0.0
  %2310 = vmatpush2.msra.mxu0 0.0
  %2311 = vmatprep.subr.mxu0 0.0
  %2312 = vmatpush2.msra.mxu0 0.0
  %2313 = vmatprep.subr.mxu0 0.0
  %2314 = vmatpush2.msra.mxu0 0.0
  %2315 = vmatprep.subr.mxu0 0.0
  %2316 = vmatpush2.msra.mxu0 0.0
  %2317 = vmatprep.subr.mxu0 0.0
  %2318 = vmatpush2.msra.mxu0 0.0
  %2319 = vmatprep.mubr.f32.mxu0 0.0
  %2320 = vmatmul.mubr.f32.gmra.mxu0 %v2253
  %v2321 = vpop.f32.mrf.mxu0
  %v2322 = vadd.f32 %v38, %v2321
  %v2323 = vpop.f32.mrf.mxu0
  %2324 = vdwg.mxu0
  %v2325 = vsel %vm276, %v2322, -inf
  %2326 = vmax.xlane.f32.xlu0 %v2325
  %v2327 = vpop.xlane.xlu0 %2326
  %v2328 = vsub.f32 %v2322, %v2327
  %v2329 = vmul.f32 %v2328, 1.442695
  %v2330 = vpow.pop %v2329
  %v2331 = vsel %vm276, %v2330, 0.0
  %2332 = vadd.xlane.f32.xlu0 %v2331
  %v2333 = vpop.xlane.xlu0 %2332
  %v2334 = vrcp.pop %v2333
  %v2335 = vmul.f32 %v2330, %v2334
  %v2336 = vmul.f32 %v2104, %v2335
  %2337 = vmatprep.subr.mxu0 0.0
  %2338 = vmatpush1.msra.mxu0 0.0
  %2339 = vmatprep.subr.mxu0 0.0
  %2340 = vmatpush1.msra.mxu0 0.0
  %2341 = vmatprep.subr.mxu0 0.0
  %2342 = vmatpush1.msra.mxu0 0.0
  %2343 = vmatprep.subr.mxu0 0.0
  %2344 = vmatpush1.msra.mxu0 0.0
  %2345 = vmatprep.subr.mxu0 0.0
  %2346 = vmatpush1.msra.mxu0 0.0
  %2347 = vmatprep.subr.mxu0 0.0
  %2348 = vmatpush1.msra.mxu0 0.0
  %2349 = vmatprep.subr.mxu0 0.0
  %2350 = vmatpush1.msra.mxu0 0.0
  %2351 = vmatprep.subr.mxu0 0.0
  %2352 = vmatpush1.msra.mxu0 0.0
  %2353 = vmatprep.subr.mxu0 0.0
  %2354 = vmatpush1.msra.mxu0 0.0
  %2355 = vmatprep.subr.mxu0 0.0
  %2356 = vmatpush1.msra.mxu0 0.0
  %2357 = vmatprep.subr.mxu0 0.0
  %2358 = vmatpush1.msra.mxu0 0.0
  %2359 = vmatprep.subr.mxu0 0.0
  %2360 = vmatpush1.msra.mxu0 0.0
  %2361 = vmatprep.subr.mxu0 0.0
  %2362 = vmatpush1.msra.mxu0 %v43
  %2363 = vmatprep.subr.mxu0 0.0
  %2364 = vmatpush1.msra.mxu0 %v42
  %2365 = vmatprep.subr.mxu0 0.0
  %2366 = vmatpush1.msra.mxu0 %v41
  %2367 = vmatprep.subr.mxu0 0.0
  %2368 = vmatpush1.msra.mxu0 %v40
  %2369 = vmatprep.subr.mxu0 0.0
  %2370 = vmatpush2.msra.mxu0 0.0
  %2371 = vmatprep.subr.mxu0 0.0
  %2372 = vmatpush2.msra.mxu0 0.0
  %2373 = vmatprep.subr.mxu0 0.0
  %2374 = vmatpush2.msra.mxu0 0.0
  %2375 = vmatprep.subr.mxu0 0.0
  %2376 = vmatpush2.msra.mxu0 0.0
  %2377 = vmatprep.subr.mxu0 0.0
  %2378 = vmatpush2.msra.mxu0 0.0
  %2379 = vmatprep.subr.mxu0 0.0
  %2380 = vmatpush2.msra.mxu0 0.0
  %2381 = vmatprep.subr.mxu0 0.0
  %2382 = vmatpush2.msra.mxu0 0.0
  %2383 = vmatprep.subr.mxu0 0.0
  %2384 = vmatpush2.msra.mxu0 0.0
  %2385 = vmatprep.subr.mxu0 0.0
  %2386 = vmatpush2.msra.mxu0 0.0
  %2387 = vmatprep.subr.mxu0 0.0
  %2388 = vmatpush2.msra.mxu0 0.0
  %2389 = vmatprep.subr.mxu0 0.0
  %2390 = vmatpush2.msra.mxu0 0.0
  %2391 = vmatprep.subr.mxu0 0.0
  %2392 = vmatpush2.msra.mxu0 0.0
  %2393 = vmatprep.subr.mxu0 0.0
  %2394 = vmatpush2.msra.mxu0 0.0
  %2395 = vmatprep.subr.mxu0 0.0
  %2396 = vmatpush2.msra.mxu0 0.0
  %2397 = vmatprep.subr.mxu0 0.0
  %2398 = vmatpush2.msra.mxu0 0.0
  %2399 = vmatprep.subr.mxu0 0.0
  %2400 = vmatpush2.msra.mxu0 0.0
  %2401 = vmatprep.mubr.f32.mxu0 0.0
  %2402 = vmatmul.mubr.f32.gmra.mxu0 %v2178
  %v2403 = vpop.f32.mrf.mxu0
  %v2404 = vadd.f32 0.0, %v2403
  %v2405 = vpop.f32.mrf.mxu0
  %2406 = vdwg.mxu0
  %v2408 = vsel %vm53, %v2336, 0
  %2410 = vmatprep.subr.mxu0 0.0
  %2411 = vmatpush1.msra.mxu0 0.0
  %2412 = vmatprep.subr.mxu0 0.0
  %2413 = vmatpush1.msra.mxu0 0.0
  %2414 = vmatprep.subr.mxu0 0.0
  %2415 = vmatpush1.msra.mxu0 0.0
  %2416 = vmatprep.subr.mxu0 0.0
  %2417 = vmatpush1.msra.mxu0 0.0
  %2418 = vmatprep.subr.mxu0 0.0
  %2419 = vmatpush1.msra.mxu0 0.0
  %2420 = vmatprep.subr.mxu0 0.0
  %2421 = vmatpush1.msra.mxu0 0.0
  %2422 = vmatprep.subr.mxu0 0.0
  %2423 = vmatpush1.msra.mxu0 0.0
  %2424 = vmatprep.subr.mxu0 0.0
  %2425 = vmatpush1.msra.mxu0 0.0
  %2426 = vmatprep.subr.mxu0 0.0
  %2427 = vmatpush1.msra.mxu0 0.0
  %2428 = vmatprep.subr.mxu0 0.0
  %2429 = vmatpush1.msra.mxu0 0.0
  %2430 = vmatprep.subr.mxu0 0.0
  %2431 = vmatpush1.msra.mxu0 0.0
  %2432 = vmatprep.subr.mxu0 0.0
  %2433 = vmatpush1.msra.mxu0 0.0
  %2434 = vmatprep.subr.mxu0 0.0
  %2435 = vmatpush1.msra.mxu0 0.0
  %2436 = vmatprep.subr.mxu0 0.0
  %2437 = vmatpush1.msra.mxu0 0.0
  %2438 = vmatprep.subr.mxu0 0.0
  %2439 = vmatpush1.msra.mxu0 0.0
  %2440 = vmatprep.subr.mxu0 0.0
  %2441 = vmatpush1.msra.mxu0 %v39
  %2442 = vmatprep.subr.mxu0 0.0
  %2443 = vmatpush2.msra.mxu0 0.0
  %2444 = vmatprep.subr.mxu0 0.0
  %2445 = vmatpush2.msra.mxu0 0.0
  %2446 = vmatprep.subr.mxu0 0.0
  %2447 = vmatpush2.msra.mxu0 0.0
  %2448 = vmatprep.subr.mxu0 0.0
  %2449 = vmatpush2.msra.mxu0 0.0
  %2450 = vmatprep.subr.mxu0 0.0
  %2451 = vmatpush2.msra.mxu0 0.0
  %2452 = vmatprep.subr.mxu0 0.0
  %2453 = vmatpush2.msra.mxu0 0.0
  %2454 = vmatprep.subr.mxu0 0.0
  %2455 = vmatpush2.msra.mxu0 0.0
  %2456 = vmatprep.subr.mxu0 0.0
  %2457 = vmatpush2.msra.mxu0 0.0
  %2458 = vmatprep.subr.mxu0 0.0
  %2459 = vmatpush2.msra.mxu0 0.0
  %2460 = vmatprep.subr.mxu0 0.0
  %2461 = vmatpush2.msra.mxu0 0.0
  %2462 = vmatprep.subr.mxu0 0.0
  %2463 = vmatpush2.msra.mxu0 0.0
  %2464 = vmatprep.subr.mxu0 0.0
  %2465 = vmatpush2.msra.mxu0 0.0
  %2466 = vmatprep.subr.mxu0 0.0
  %2467 = vmatpush2.msra.mxu0 0.0
  %2468 = vmatprep.subr.mxu0 0.0
  %2469 = vmatpush2.msra.mxu0 0.0
  %2470 = vmatprep.subr.mxu0 0.0
  %2471 = vmatpush2.msra.mxu0 0.0
  %2472 = vmatprep.subr.mxu0 0.0
  %2473 = vmatpush2.msra.mxu0 0.0
  %2474 = vmatprep.mubr.f32.mxu0 0.0
  %2475 = vmatmul.mubr.f32.gmra.mxu0 %v2408
  %v2476 = vpop.f32.mrf.mxu0
  %v2477 = vadd.f32 %v2404, %v2476
  %v2478 = vpop.f32.mrf.mxu0
  %2479 = vdwg.mxu0
  %v2480 = vadd.f32 %v2477, %v49
  %v2481 = vxor.u32 %v2480, 2147483648
  %v2482 = vmul.f32 %v2481, 1.442695
  %v2483 = vpow.pop %v2482
  %v2484 = vadd.f32 %v2483, 1.0
  %v2485 = vrcp.pop %v2484
  %v2486 = vmul.f32 1.0, %v2485
  %2488 = vrot.lane.b32.xlu0 %v2480, 32
  %v2489 = vpop.permute.xlu0 %2488
  %v2491 = vmul.f32 %v2486, %v2489
  %2493 = vrot.lane.b32.xlu0 %v2491, 64
  %v2494 = vpop.permute.xlu0 %2493
  %v2496 = vadd.f32 %v2480, %v2494
  %v2497 = vtanh.pop %v2496
  %v2498 = vsub.f32 1.0, %v2486
  %2500 = vrot.lane.b32.xlu0 %v2497, 96
  %v2501 = vpop.permute.xlu0 %2500
  %v2503 = vmul.f32 %v2498, %v2501
  %v2504 = vmul.f32 %v2486, %v2096
  %v2505 = vadd.f32 %v2503, %v2504
  %2507 = vrot.lane.b32.xlu0 %v2505, 96
  %v2508 = vpop.permute.xlu0 %2507
  %s2510 = scalar_lea.vmem %s6, 20
  %2511 = vst.msk [vmem:[%s2510] sm:$0xf] %vm465, %v2508
  %s2512 = scalar_lea.vmem %s0, 24
  %v2513 = vld [vmem:[%s2512] sm:$0xf]
  %v2515 = vsel %vm53, %v2513, 0
  %2517 = vmatprep.subr.mxu0 0.0
  %2518 = vmatpush1.msra.mxu0 0.0
  %2519 = vmatprep.subr.mxu0 0.0
  %2520 = vmatpush1.msra.mxu0 0.0
  %2521 = vmatprep.subr.mxu0 0.0
  %2522 = vmatpush1.msra.mxu0 0.0
  %2523 = vmatprep.subr.mxu0 0.0
  %2524 = vmatpush1.msra.mxu0 0.0
  %2525 = vmatprep.subr.mxu0 0.0
  %2526 = vmatpush1.msra.mxu0 0.0
  %2527 = vmatprep.subr.mxu0 0.0
  %2528 = vmatpush1.msra.mxu0 0.0
  %2529 = vmatprep.subr.mxu0 0.0
  %2530 = vmatpush1.msra.mxu0 0.0
  %2531 = vmatprep.subr.mxu0 0.0
  %2532 = vmatpush1.msra.mxu0 0.0
  %2533 = vmatprep.subr.mxu0 0.0
  %2534 = vmatpush1.msra.mxu0 0.0
  %2535 = vmatprep.subr.mxu0 0.0
  %2536 = vmatpush1.msra.mxu0 0.0
  %2537 = vmatprep.subr.mxu0 0.0
  %2538 = vmatpush1.msra.mxu0 0.0
  %2539 = vmatprep.subr.mxu0 0.0
  %2540 = vmatpush1.msra.mxu0 0.0
  %2541 = vmatprep.subr.mxu0 0.0
  %2542 = vmatpush1.msra.mxu0 0.0
  %2543 = vmatprep.subr.mxu0 0.0
  %2544 = vmatpush1.msra.mxu0 0.0
  %2545 = vmatprep.subr.mxu0 0.0
  %2546 = vmatpush1.msra.mxu0 0.0
  %2547 = vmatprep.subr.mxu0 0.0
  %2548 = vmatpush1.msra.mxu0 %v23
  %2549 = vmatprep.subr.mxu0 0.0
  %2550 = vmatpush2.msra.mxu0 0.0
  %2551 = vmatprep.subr.mxu0 0.0
  %2552 = vmatpush2.msra.mxu0 0.0
  %2553 = vmatprep.subr.mxu0 0.0
  %2554 = vmatpush2.msra.mxu0 0.0
  %2555 = vmatprep.subr.mxu0 0.0
  %2556 = vmatpush2.msra.mxu0 0.0
  %2557 = vmatprep.subr.mxu0 0.0
  %2558 = vmatpush2.msra.mxu0 0.0
  %2559 = vmatprep.subr.mxu0 0.0
  %2560 = vmatpush2.msra.mxu0 0.0
  %2561 = vmatprep.subr.mxu0 0.0
  %2562 = vmatpush2.msra.mxu0 0.0
  %2563 = vmatprep.subr.mxu0 0.0
  %2564 = vmatpush2.msra.mxu0 0.0
  %2565 = vmatprep.subr.mxu0 0.0
  %2566 = vmatpush2.msra.mxu0 0.0
  %2567 = vmatprep.subr.mxu0 0.0
  %2568 = vmatpush2.msra.mxu0 0.0
  %2569 = vmatprep.subr.mxu0 0.0
  %2570 = vmatpush2.msra.mxu0 0.0
  %2571 = vmatprep.subr.mxu0 0.0
  %2572 = vmatpush2.msra.mxu0 0.0
  %2573 = vmatprep.subr.mxu0 0.0
  %2574 = vmatpush2.msra.mxu0 0.0
  %2575 = vmatprep.subr.mxu0 0.0
  %2576 = vmatpush2.msra.mxu0 0.0
  %2577 = vmatprep.subr.mxu0 0.0
  %2578 = vmatpush2.msra.mxu0 0.0
  %2579 = vmatprep.subr.mxu0 0.0
  %2580 = vmatpush2.msra.mxu0 0.0
  %2581 = vmatprep.mubr.f32.mxu0 0.0
  %2582 = vmatmul.mubr.f32.gmra.mxu0 %v2515
  %v2583 = vpop.f32.mrf.mxu0
  %v2584 = vadd.f32 0.0, %v2583
  %v2585 = vpop.f32.mrf.mxu0
  %2586 = vdwg.mxu0
  %v2587 = vsel %vm127, %v2508, 0
  %2589 = vmatprep.subr.mxu0 0.0
  %2590 = vmatpush1.msra.mxu0 0.0
  %2591 = vmatprep.subr.mxu0 0.0
  %2592 = vmatpush1.msra.mxu0 0.0
  %2593 = vmatprep.subr.mxu0 0.0
  %2594 = vmatpush1.msra.mxu0 0.0
  %2595 = vmatprep.subr.mxu0 0.0
  %2596 = vmatpush1.msra.mxu0 0.0
  %2597 = vmatprep.subr.mxu0 0.0
  %2598 = vmatpush1.msra.mxu0 0.0
  %2599 = vmatprep.subr.mxu0 0.0
  %2600 = vmatpush1.msra.mxu0 0.0
  %2601 = vmatprep.subr.mxu0 0.0
  %2602 = vmatpush1.msra.mxu0 0.0
  %2603 = vmatprep.subr.mxu0 0.0
  %2604 = vmatpush1.msra.mxu0 0.0
  %2605 = vmatprep.subr.mxu0 0.0
  %2606 = vmatpush1.msra.mxu0 0.0
  %2607 = vmatprep.subr.mxu0 0.0
  %2608 = vmatpush1.msra.mxu0 0.0
  %2609 = vmatprep.subr.mxu0 0.0
  %2610 = vmatpush1.msra.mxu0 0.0
  %2611 = vmatprep.subr.mxu0 0.0
  %2612 = vmatpush1.msra.mxu0 0.0
  %2613 = vmatprep.subr.mxu0 0.0
  %2614 = vmatpush1.msra.mxu0 %v28
  %2615 = vmatprep.subr.mxu0 0.0
  %2616 = vmatpush1.msra.mxu0 %v27
  %2617 = vmatprep.subr.mxu0 0.0
  %2618 = vmatpush1.msra.mxu0 %v26
  %2619 = vmatprep.subr.mxu0 0.0
  %2620 = vmatpush1.msra.mxu0 %v25
  %2621 = vmatprep.subr.mxu0 0.0
  %2622 = vmatpush2.msra.mxu0 0.0
  %2623 = vmatprep.subr.mxu0 0.0
  %2624 = vmatpush2.msra.mxu0 0.0
  %2625 = vmatprep.subr.mxu0 0.0
  %2626 = vmatpush2.msra.mxu0 0.0
  %2627 = vmatprep.subr.mxu0 0.0
  %2628 = vmatpush2.msra.mxu0 0.0
  %2629 = vmatprep.subr.mxu0 0.0
  %2630 = vmatpush2.msra.mxu0 0.0
  %2631 = vmatprep.subr.mxu0 0.0
  %2632 = vmatpush2.msra.mxu0 0.0
  %2633 = vmatprep.subr.mxu0 0.0
  %2634 = vmatpush2.msra.mxu0 0.0
  %2635 = vmatprep.subr.mxu0 0.0
  %2636 = vmatpush2.msra.mxu0 0.0
  %2637 = vmatprep.subr.mxu0 0.0
  %2638 = vmatpush2.msra.mxu0 0.0
  %2639 = vmatprep.subr.mxu0 0.0
  %2640 = vmatpush2.msra.mxu0 0.0
  %2641 = vmatprep.subr.mxu0 0.0
  %2642 = vmatpush2.msra.mxu0 0.0
  %2643 = vmatprep.subr.mxu0 0.0
  %2644 = vmatpush2.msra.mxu0 0.0
  %2645 = vmatprep.subr.mxu0 0.0
  %2646 = vmatpush2.msra.mxu0 0.0
  %2647 = vmatprep.subr.mxu0 0.0
  %2648 = vmatpush2.msra.mxu0 0.0
  %2649 = vmatprep.subr.mxu0 0.0
  %2650 = vmatpush2.msra.mxu0 0.0
  %2651 = vmatprep.subr.mxu0 0.0
  %2652 = vmatpush2.msra.mxu0 0.0
  %2653 = vmatprep.mubr.f32.mxu0 0.0
  %2654 = vmatmul.mubr.f32.gmra.mxu0 %v2587
  %v2655 = vpop.f32.mrf.mxu0
  %v2656 = vadd.f32 %v2584, %v2655
  %v2657 = vpop.f32.mrf.mxu0
  %2658 = vdwg.mxu0
  %v2659 = vadd.f32 %v2656, %v33
  %v2660 = vtanh.pop %v2659
  %v2662 = vsel %vm53, %v2660, 0
  %2664 = vmatprep.subr.mxu0 0.0
  %2665 = vmatpush1.msra.mxu0 0.0
  %2666 = vmatprep.subr.mxu0 0.0
  %2667 = vmatpush1.msra.mxu0 0.0
  %2668 = vmatprep.subr.mxu0 0.0
  %2669 = vmatpush1.msra.mxu0 0.0
  %2670 = vmatprep.subr.mxu0 0.0
  %2671 = vmatpush1.msra.mxu0 0.0
  %2672 = vmatprep.subr.mxu0 0.0
  %2673 = vmatpush1.msra.mxu0 0.0
  %2674 = vmatprep.subr.mxu0 0.0
  %2675 = vmatpush1.msra.mxu0 0.0
  %2676 = vmatprep.subr.mxu0 0.0
  %2677 = vmatpush1.msra.mxu0 0.0
  %2678 = vmatprep.subr.mxu0 0.0
  %2679 = vmatpush1.msra.mxu0 0.0
  %2680 = vmatprep.subr.mxu0 0.0
  %2681 = vmatpush1.msra.mxu0 0.0
  %2682 = vmatprep.subr.mxu0 0.0
  %2683 = vmatpush1.msra.mxu0 0.0
  %2684 = vmatprep.subr.mxu0 0.0
  %2685 = vmatpush1.msra.mxu0 0.0
  %2686 = vmatprep.subr.mxu0 0.0
  %2687 = vmatpush1.msra.mxu0 0.0
  %2688 = vmatprep.subr.mxu0 0.0
  %2689 = vmatpush1.msra.mxu0 0.0
  %2690 = vmatprep.subr.mxu0 0.0
  %2691 = vmatpush1.msra.mxu0 0.0
  %2692 = vmatprep.subr.mxu0 0.0
  %2693 = vmatpush1.msra.mxu0 0.0
  %2694 = vmatprep.subr.mxu0 0.0
  %2695 = vmatpush1.msra.mxu0 %v24
  %2696 = vmatprep.subr.mxu0 0.0
  %2697 = vmatpush2.msra.mxu0 0.0
  %2698 = vmatprep.subr.mxu0 0.0
  %2699 = vmatpush2.msra.mxu0 0.0
  %2700 = vmatprep.subr.mxu0 0.0
  %2701 = vmatpush2.msra.mxu0 0.0
  %2702 = vmatprep.subr.mxu0 0.0
  %2703 = vmatpush2.msra.mxu0 0.0
  %2704 = vmatprep.subr.mxu0 0.0
  %2705 = vmatpush2.msra.mxu0 0.0
  %2706 = vmatprep.subr.mxu0 0.0
  %2707 = vmatpush2.msra.mxu0 0.0
  %2708 = vmatprep.subr.mxu0 0.0
  %2709 = vmatpush2.msra.mxu0 0.0
  %2710 = vmatprep.subr.mxu0 0.0
  %2711 = vmatpush2.msra.mxu0 0.0
  %2712 = vmatprep.subr.mxu0 0.0
  %2713 = vmatpush2.msra.mxu0 0.0
  %2714 = vmatprep.subr.mxu0 0.0
  %2715 = vmatpush2.msra.mxu0 0.0
  %2716 = vmatprep.subr.mxu0 0.0
  %2717 = vmatpush2.msra.mxu0 0.0
  %2718 = vmatprep.subr.mxu0 0.0
  %2719 = vmatpush2.msra.mxu0 0.0
  %2720 = vmatprep.subr.mxu0 0.0
  %2721 = vmatpush2.msra.mxu0 0.0
  %2722 = vmatprep.subr.mxu0 0.0
  %2723 = vmatpush2.msra.mxu0 0.0
  %2724 = vmatprep.subr.mxu0 0.0
  %2725 = vmatpush2.msra.mxu0 0.0
  %2726 = vmatprep.subr.mxu0 0.0
  %2727 = vmatpush2.msra.mxu0 0.0
  %2728 = vmatprep.mubr.f32.mxu0 0.0
  %2729 = vmatmul.mubr.f32.gmra.mxu0 %v2662
  %v2730 = vpop.f32.mrf.mxu0
  %v2731 = vadd.f32 %v38, %v2730
  %v2732 = vpop.f32.mrf.mxu0
  %2733 = vdwg.mxu0
  %v2734 = vsel %vm276, %v2731, -inf
  %2735 = vmax.xlane.f32.xlu0 %v2734
  %v2736 = vpop.xlane.xlu0 %2735
  %v2737 = vsub.f32 %v2731, %v2736
  %v2738 = vmul.f32 %v2737, 1.442695
  %v2739 = vpow.pop %v2738
  %v2740 = vsel %vm276, %v2739, 0.0
  %2741 = vadd.xlane.f32.xlu0 %v2740
  %v2742 = vpop.xlane.xlu0 %2741
  %v2743 = vrcp.pop %v2742
  %v2744 = vmul.f32 %v2739, %v2743
  %v2745 = vmul.f32 %v2513, %v2744
  %2746 = vmatprep.subr.mxu0 0.0
  %2747 = vmatpush1.msra.mxu0 0.0
  %2748 = vmatprep.subr.mxu0 0.0
  %2749 = vmatpush1.msra.mxu0 0.0
  %2750 = vmatprep.subr.mxu0 0.0
  %2751 = vmatpush1.msra.mxu0 0.0
  %2752 = vmatprep.subr.mxu0 0.0
  %2753 = vmatpush1.msra.mxu0 0.0
  %2754 = vmatprep.subr.mxu0 0.0
  %2755 = vmatpush1.msra.mxu0 0.0
  %2756 = vmatprep.subr.mxu0 0.0
  %2757 = vmatpush1.msra.mxu0 0.0
  %2758 = vmatprep.subr.mxu0 0.0
  %2759 = vmatpush1.msra.mxu0 0.0
  %2760 = vmatprep.subr.mxu0 0.0
  %2761 = vmatpush1.msra.mxu0 0.0
  %2762 = vmatprep.subr.mxu0 0.0
  %2763 = vmatpush1.msra.mxu0 0.0
  %2764 = vmatprep.subr.mxu0 0.0
  %2765 = vmatpush1.msra.mxu0 0.0
  %2766 = vmatprep.subr.mxu0 0.0
  %2767 = vmatpush1.msra.mxu0 0.0
  %2768 = vmatprep.subr.mxu0 0.0
  %2769 = vmatpush1.msra.mxu0 0.0
  %2770 = vmatprep.subr.mxu0 0.0
  %2771 = vmatpush1.msra.mxu0 %v43
  %2772 = vmatprep.subr.mxu0 0.0
  %2773 = vmatpush1.msra.mxu0 %v42
  %2774 = vmatprep.subr.mxu0 0.0
  %2775 = vmatpush1.msra.mxu0 %v41
  %2776 = vmatprep.subr.mxu0 0.0
  %2777 = vmatpush1.msra.mxu0 %v40
  %2778 = vmatprep.subr.mxu0 0.0
  %2779 = vmatpush2.msra.mxu0 0.0
  %2780 = vmatprep.subr.mxu0 0.0
  %2781 = vmatpush2.msra.mxu0 0.0
  %2782 = vmatprep.subr.mxu0 0.0
  %2783 = vmatpush2.msra.mxu0 0.0
  %2784 = vmatprep.subr.mxu0 0.0
  %2785 = vmatpush2.msra.mxu0 0.0
  %2786 = vmatprep.subr.mxu0 0.0
  %2787 = vmatpush2.msra.mxu0 0.0
  %2788 = vmatprep.subr.mxu0 0.0
  %2789 = vmatpush2.msra.mxu0 0.0
  %2790 = vmatprep.subr.mxu0 0.0
  %2791 = vmatpush2.msra.mxu0 0.0
  %2792 = vmatprep.subr.mxu0 0.0
  %2793 = vmatpush2.msra.mxu0 0.0
  %2794 = vmatprep.subr.mxu0 0.0
  %2795 = vmatpush2.msra.mxu0 0.0
  %2796 = vmatprep.subr.mxu0 0.0
  %2797 = vmatpush2.msra.mxu0 0.0
  %2798 = vmatprep.subr.mxu0 0.0
  %2799 = vmatpush2.msra.mxu0 0.0
  %2800 = vmatprep.subr.mxu0 0.0
  %2801 = vmatpush2.msra.mxu0 0.0
  %2802 = vmatprep.subr.mxu0 0.0
  %2803 = vmatpush2.msra.mxu0 0.0
  %2804 = vmatprep.subr.mxu0 0.0
  %2805 = vmatpush2.msra.mxu0 0.0
  %2806 = vmatprep.subr.mxu0 0.0
  %2807 = vmatpush2.msra.mxu0 0.0
  %2808 = vmatprep.subr.mxu0 0.0
  %2809 = vmatpush2.msra.mxu0 0.0
  %2810 = vmatprep.mubr.f32.mxu0 0.0
  %2811 = vmatmul.mubr.f32.gmra.mxu0 %v2587
  %v2812 = vpop.f32.mrf.mxu0
  %v2813 = vadd.f32 0.0, %v2812
  %v2814 = vpop.f32.mrf.mxu0
  %2815 = vdwg.mxu0
  %v2817 = vsel %vm53, %v2745, 0
  %2819 = vmatprep.subr.mxu0 0.0
  %2820 = vmatpush1.msra.mxu0 0.0
  %2821 = vmatprep.subr.mxu0 0.0
  %2822 = vmatpush1.msra.mxu0 0.0
  %2823 = vmatprep.subr.mxu0 0.0
  %2824 = vmatpush1.msra.mxu0 0.0
  %2825 = vmatprep.subr.mxu0 0.0
  %2826 = vmatpush1.msra.mxu0 0.0
  %2827 = vmatprep.subr.mxu0 0.0
  %2828 = vmatpush1.msra.mxu0 0.0
  %2829 = vmatprep.subr.mxu0 0.0
  %2830 = vmatpush1.msra.mxu0 0.0
  %2831 = vmatprep.subr.mxu0 0.0
  %2832 = vmatpush1.msra.mxu0 0.0
  %2833 = vmatprep.subr.mxu0 0.0
  %2834 = vmatpush1.msra.mxu0 0.0
  %2835 = vmatprep.subr.mxu0 0.0
  %2836 = vmatpush1.msra.mxu0 0.0
  %2837 = vmatprep.subr.mxu0 0.0
  %2838 = vmatpush1.msra.mxu0 0.0
  %2839 = vmatprep.subr.mxu0 0.0
  %2840 = vmatpush1.msra.mxu0 0.0
  %2841 = vmatprep.subr.mxu0 0.0
  %2842 = vmatpush1.msra.mxu0 0.0
  %2843 = vmatprep.subr.mxu0 0.0
  %2844 = vmatpush1.msra.mxu0 0.0
  %2845 = vmatprep.subr.mxu0 0.0
  %2846 = vmatpush1.msra.mxu0 0.0
  %2847 = vmatprep.subr.mxu0 0.0
  %2848 = vmatpush1.msra.mxu0 0.0
  %2849 = vmatprep.subr.mxu0 0.0
  %2850 = vmatpush1.msra.mxu0 %v39
  %2851 = vmatprep.subr.mxu0 0.0
  %2852 = vmatpush2.msra.mxu0 0.0
  %2853 = vmatprep.subr.mxu0 0.0
  %2854 = vmatpush2.msra.mxu0 0.0
  %2855 = vmatprep.subr.mxu0 0.0
  %2856 = vmatpush2.msra.mxu0 0.0
  %2857 = vmatprep.subr.mxu0 0.0
  %2858 = vmatpush2.msra.mxu0 0.0
  %2859 = vmatprep.subr.mxu0 0.0
  %2860 = vmatpush2.msra.mxu0 0.0
  %2861 = vmatprep.subr.mxu0 0.0
  %2862 = vmatpush2.msra.mxu0 0.0
  %2863 = vmatprep.subr.mxu0 0.0
  %2864 = vmatpush2.msra.mxu0 0.0
  %2865 = vmatprep.subr.mxu0 0.0
  %2866 = vmatpush2.msra.mxu0 0.0
  %2867 = vmatprep.subr.mxu0 0.0
  %2868 = vmatpush2.msra.mxu0 0.0
  %2869 = vmatprep.subr.mxu0 0.0
  %2870 = vmatpush2.msra.mxu0 0.0
  %2871 = vmatprep.subr.mxu0 0.0
  %2872 = vmatpush2.msra.mxu0 0.0
  %2873 = vmatprep.subr.mxu0 0.0
  %2874 = vmatpush2.msra.mxu0 0.0
  %2875 = vmatprep.subr.mxu0 0.0
  %2876 = vmatpush2.msra.mxu0 0.0
  %2877 = vmatprep.subr.mxu0 0.0
  %2878 = vmatpush2.msra.mxu0 0.0
  %2879 = vmatprep.subr.mxu0 0.0
  %2880 = vmatpush2.msra.mxu0 0.0
  %2881 = vmatprep.subr.mxu0 0.0
  %2882 = vmatpush2.msra.mxu0 0.0
  %2883 = vmatprep.mubr.f32.mxu0 0.0
  %2884 = vmatmul.mubr.f32.gmra.mxu0 %v2817
  %v2885 = vpop.f32.mrf.mxu0
  %v2886 = vadd.f32 %v2813, %v2885
  %v2887 = vpop.f32.mrf.mxu0
  %2888 = vdwg.mxu0
  %v2889 = vadd.f32 %v2886, %v49
  %v2890 = vxor.u32 %v2889, 2147483648
  %v2891 = vmul.f32 %v2890, 1.442695
  %v2892 = vpow.pop %v2891
  %v2893 = vadd.f32 %v2892, 1.0
  %v2894 = vrcp.pop %v2893
  %v2895 = vmul.f32 1.0, %v2894
  %2897 = vrot.lane.b32.xlu0 %v2889, 32
  %v2898 = vpop.permute.xlu0 %2897
  %v2900 = vmul.f32 %v2895, %v2898
  %2902 = vrot.lane.b32.xlu0 %v2900, 64
  %v2903 = vpop.permute.xlu0 %2902
  %v2905 = vadd.f32 %v2889, %v2903
  %v2906 = vtanh.pop %v2905
  %v2907 = vsub.f32 1.0, %v2895
  %2909 = vrot.lane.b32.xlu0 %v2906, 96
  %v2910 = vpop.permute.xlu0 %2909
  %v2912 = vmul.f32 %v2907, %v2910
  %v2913 = vmul.f32 %v2895, %v2505
  %v2914 = vadd.f32 %v2912, %v2913
  %2916 = vrot.lane.b32.xlu0 %v2914, 96
  %v2917 = vpop.permute.xlu0 %2916
  %s2919 = scalar_lea.vmem %s6, 24
  %2920 = vst.msk [vmem:[%s2919] sm:$0xf] %vm465, %v2917
  %s2921 = scalar_lea.vmem %s0, 28
  %v2922 = vld [vmem:[%s2921] sm:$0xf]
  %v2924 = vsel %vm53, %v2922, 0
  %2926 = vmatprep.subr.mxu0 0.0
  %2927 = vmatpush1.msra.mxu0 0.0
  %2928 = vmatprep.subr.mxu0 0.0
  %2929 = vmatpush1.msra.mxu0 0.0
  %2930 = vmatprep.subr.mxu0 0.0
  %2931 = vmatpush1.msra.mxu0 0.0
  %2932 = vmatprep.subr.mxu0 0.0
  %2933 = vmatpush1.msra.mxu0 0.0
  %2934 = vmatprep.subr.mxu0 0.0
  %2935 = vmatpush1.msra.mxu0 0.0
  %2936 = vmatprep.subr.mxu0 0.0
  %2937 = vmatpush1.msra.mxu0 0.0
  %2938 = vmatprep.subr.mxu0 0.0
  %2939 = vmatpush1.msra.mxu0 0.0
  %2940 = vmatprep.subr.mxu0 0.0
  %2941 = vmatpush1.msra.mxu0 0.0
  %2942 = vmatprep.subr.mxu0 0.0
  %2943 = vmatpush1.msra.mxu0 0.0
  %2944 = vmatprep.subr.mxu0 0.0
  %2945 = vmatpush1.msra.mxu0 0.0
  %2946 = vmatprep.subr.mxu0 0.0
  %2947 = vmatpush1.msra.mxu0 0.0
  %2948 = vmatprep.subr.mxu0 0.0
  %2949 = vmatpush1.msra.mxu0 0.0
  %2950 = vmatprep.subr.mxu0 0.0
  %2951 = vmatpush1.msra.mxu0 0.0
  %2952 = vmatprep.subr.mxu0 0.0
  %2953 = vmatpush1.msra.mxu0 0.0
  %2954 = vmatprep.subr.mxu0 0.0
  %2955 = vmatpush1.msra.mxu0 0.0
  %2956 = vmatprep.subr.mxu0 0.0
  %2957 = vmatpush1.msra.mxu0 %v23
  %2958 = vmatprep.subr.mxu0 0.0
  %2959 = vmatpush2.msra.mxu0 0.0
  %2960 = vmatprep.subr.mxu0 0.0
  %2961 = vmatpush2.msra.mxu0 0.0
  %2962 = vmatprep.subr.mxu0 0.0
  %2963 = vmatpush2.msra.mxu0 0.0
  %2964 = vmatprep.subr.mxu0 0.0
  %2965 = vmatpush2.msra.mxu0 0.0
  %2966 = vmatprep.subr.mxu0 0.0
  %2967 = vmatpush2.msra.mxu0 0.0
  %2968 = vmatprep.subr.mxu0 0.0
  %2969 = vmatpush2.msra.mxu0 0.0
  %2970 = vmatprep.subr.mxu0 0.0
  %2971 = vmatpush2.msra.mxu0 0.0
  %2972 = vmatprep.subr.mxu0 0.0
  %2973 = vmatpush2.msra.mxu0 0.0
  %2974 = vmatprep.subr.mxu0 0.0
  %2975 = vmatpush2.msra.mxu0 0.0
  %2976 = vmatprep.subr.mxu0 0.0
  %2977 = vmatpush2.msra.mxu0 0.0
  %2978 = vmatprep.subr.mxu0 0.0
  %2979 = vmatpush2.msra.mxu0 0.0
  %2980 = vmatprep.subr.mxu0 0.0
  %2981 = vmatpush2.msra.mxu0 0.0
  %2982 = vmatprep.subr.mxu0 0.0
  %2983 = vmatpush2.msra.mxu0 0.0
  %2984 = vmatprep.subr.mxu0 0.0
  %2985 = vmatpush2.msra.mxu0 0.0
  %2986 = vmatprep.subr.mxu0 0.0
  %2987 = vmatpush2.msra.mxu0 0.0
  %2988 = vmatprep.subr.mxu0 0.0
  %2989 = vmatpush2.msra.mxu0 0.0
  %2990 = vmatprep.mubr.f32.mxu0 0.0
  %2991 = vmatmul.mubr.f32.gmra.mxu0 %v2924
  %v2992 = vpop.f32.mrf.mxu0
  %v2993 = vadd.f32 0.0, %v2992
  %v2994 = vpop.f32.mrf.mxu0
  %2995 = vdwg.mxu0
  %v2996 = vsel %vm127, %v2917, 0
  %2998 = vmatprep.subr.mxu0 0.0
  %2999 = vmatpush1.msra.mxu0 0.0
  %3000 = vmatprep.subr.mxu0 0.0
  %3001 = vmatpush1.msra.mxu0 0.0
  %3002 = vmatprep.subr.mxu0 0.0
  %3003 = vmatpush1.msra.mxu0 0.0
  %3004 = vmatprep.subr.mxu0 0.0
  %3005 = vmatpush1.msra.mxu0 0.0
  %3006 = vmatprep.subr.mxu0 0.0
  %3007 = vmatpush1.msra.mxu0 0.0
  %3008 = vmatprep.subr.mxu0 0.0
  %3009 = vmatpush1.msra.mxu0 0.0
  %3010 = vmatprep.subr.mxu0 0.0
  %3011 = vmatpush1.msra.mxu0 0.0
  %3012 = vmatprep.subr.mxu0 0.0
  %3013 = vmatpush1.msra.mxu0 0.0
  %3014 = vmatprep.subr.mxu0 0.0
  %3015 = vmatpush1.msra.mxu0 0.0
  %3016 = vmatprep.subr.mxu0 0.0
  %3017 = vmatpush1.msra.mxu0 0.0
  %3018 = vmatprep.subr.mxu0 0.0
  %3019 = vmatpush1.msra.mxu0 0.0
  %3020 = vmatprep.subr.mxu0 0.0
  %3021 = vmatpush1.msra.mxu0 0.0
  %3022 = vmatprep.subr.mxu0 0.0
  %3023 = vmatpush1.msra.mxu0 %v28
  %3024 = vmatprep.subr.mxu0 0.0
  %3025 = vmatpush1.msra.mxu0 %v27
  %3026 = vmatprep.subr.mxu0 0.0
  %3027 = vmatpush1.msra.mxu0 %v26
  %3028 = vmatprep.subr.mxu0 0.0
  %3029 = vmatpush1.msra.mxu0 %v25
  %3030 = vmatprep.subr.mxu0 0.0
  %3031 = vmatpush2.msra.mxu0 0.0
  %3032 = vmatprep.subr.mxu0 0.0
  %3033 = vmatpush2.msra.mxu0 0.0
  %3034 = vmatprep.subr.mxu0 0.0
  %3035 = vmatpush2.msra.mxu0 0.0
  %3036 = vmatprep.subr.mxu0 0.0
  %3037 = vmatpush2.msra.mxu0 0.0
  %3038 = vmatprep.subr.mxu0 0.0
  %3039 = vmatpush2.msra.mxu0 0.0
  %3040 = vmatprep.subr.mxu0 0.0
  %3041 = vmatpush2.msra.mxu0 0.0
  %3042 = vmatprep.subr.mxu0 0.0
  %3043 = vmatpush2.msra.mxu0 0.0
  %3044 = vmatprep.subr.mxu0 0.0
  %3045 = vmatpush2.msra.mxu0 0.0
  %3046 = vmatprep.subr.mxu0 0.0
  %3047 = vmatpush2.msra.mxu0 0.0
  %3048 = vmatprep.subr.mxu0 0.0
  %3049 = vmatpush2.msra.mxu0 0.0
  %3050 = vmatprep.subr.mxu0 0.0
  %3051 = vmatpush2.msra.mxu0 0.0
  %3052 = vmatprep.subr.mxu0 0.0
  %3053 = vmatpush2.msra.mxu0 0.0
  %3054 = vmatprep.subr.mxu0 0.0
  %3055 = vmatpush2.msra.mxu0 0.0
  %3056 = vmatprep.subr.mxu0 0.0
  %3057 = vmatpush2.msra.mxu0 0.0
  %3058 = vmatprep.subr.mxu0 0.0
  %3059 = vmatpush2.msra.mxu0 0.0
  %3060 = vmatprep.subr.mxu0 0.0
  %3061 = vmatpush2.msra.mxu0 0.0
  %3062 = vmatprep.mubr.f32.mxu0 0.0
  %3063 = vmatmul.mubr.f32.gmra.mxu0 %v2996
  %v3064 = vpop.f32.mrf.mxu0
  %v3065 = vadd.f32 %v2993, %v3064
  %v3066 = vpop.f32.mrf.mxu0
  %3067 = vdwg.mxu0
  %v3068 = vadd.f32 %v3065, %v33
  %v3069 = vtanh.pop %v3068
  %v3071 = vsel %vm53, %v3069, 0
  %3073 = vmatprep.subr.mxu0 0.0
  %3074 = vmatpush1.msra.mxu0 0.0
  %3075 = vmatprep.subr.mxu0 0.0
  %3076 = vmatpush1.msra.mxu0 0.0
  %3077 = vmatprep.subr.mxu0 0.0
  %3078 = vmatpush1.msra.mxu0 0.0
  %3079 = vmatprep.subr.mxu0 0.0
  %3080 = vmatpush1.msra.mxu0 0.0
  %3081 = vmatprep.subr.mxu0 0.0
  %3082 = vmatpush1.msra.mxu0 0.0
  %3083 = vmatprep.subr.mxu0 0.0
  %3084 = vmatpush1.msra.mxu0 0.0
  %3085 = vmatprep.subr.mxu0 0.0
  %3086 = vmatpush1.msra.mxu0 0.0
  %3087 = vmatprep.subr.mxu0 0.0
  %3088 = vmatpush1.msra.mxu0 0.0
  %3089 = vmatprep.subr.mxu0 0.0
  %3090 = vmatpush1.msra.mxu0 0.0
  %3091 = vmatprep.subr.mxu0 0.0
  %3092 = vmatpush1.msra.mxu0 0.0
  %3093 = vmatprep.subr.mxu0 0.0
  %3094 = vmatpush1.msra.mxu0 0.0
  %3095 = vmatprep.subr.mxu0 0.0
  %3096 = vmatpush1.msra.mxu0 0.0
  %3097 = vmatprep.subr.mxu0 0.0
  %3098 = vmatpush1.msra.mxu0 0.0
  %3099 = vmatprep.subr.mxu0 0.0
  %3100 = vmatpush1.msra.mxu0 0.0
  %3101 = vmatprep.subr.mxu0 0.0
  %3102 = vmatpush1.msra.mxu0 0.0
  %3103 = vmatprep.subr.mxu0 0.0
  %3104 = vmatpush1.msra.mxu0 %v24
  %3105 = vmatprep.subr.mxu0 0.0
  %3106 = vmatpush2.msra.mxu0 0.0
  %3107 = vmatprep.subr.mxu0 0.0
  %3108 = vmatpush2.msra.mxu0 0.0
  %3109 = vmatprep.subr.mxu0 0.0
  %3110 = vmatpush2.msra.mxu0 0.0
  %3111 = vmatprep.subr.mxu0 0.0
  %3112 = vmatpush2.msra.mxu0 0.0
  %3113 = vmatprep.subr.mxu0 0.0
  %3114 = vmatpush2.msra.mxu0 0.0
  %3115 = vmatprep.subr.mxu0 0.0
  %3116 = vmatpush2.msra.mxu0 0.0
  %3117 = vmatprep.subr.mxu0 0.0
  %3118 = vmatpush2.msra.mxu0 0.0
  %3119 = vmatprep.subr.mxu0 0.0
  %3120 = vmatpush2.msra.mxu0 0.0
  %3121 = vmatprep.subr.mxu0 0.0
  %3122 = vmatpush2.msra.mxu0 0.0
  %3123 = vmatprep.subr.mxu0 0.0
  %3124 = vmatpush2.msra.mxu0 0.0
  %3125 = vmatprep.subr.mxu0 0.0
  %3126 = vmatpush2.msra.mxu0 0.0
  %3127 = vmatprep.subr.mxu0 0.0
  %3128 = vmatpush2.msra.mxu0 0.0
  %3129 = vmatprep.subr.mxu0 0.0
  %3130 = vmatpush2.msra.mxu0 0.0
  %3131 = vmatprep.subr.mxu0 0.0
  %3132 = vmatpush2.msra.mxu0 0.0
  %3133 = vmatprep.subr.mxu0 0.0
  %3134 = vmatpush2.msra.mxu0 0.0
  %3135 = vmatprep.subr.mxu0 0.0
  %3136 = vmatpush2.msra.mxu0 0.0
  %3137 = vmatprep.mubr.f32.mxu0 0.0
  %3138 = vmatmul.mubr.f32.gmra.mxu0 %v3071
  %v3139 = vpop.f32.mrf.mxu0
  %v3140 = vadd.f32 %v38, %v3139
  %v3141 = vpop.f32.mrf.mxu0
  %3142 = vdwg.mxu0
  %v3143 = vsel %vm276, %v3140, -inf
  %3144 = vmax.xlane.f32.xlu0 %v3143
  %v3145 = vpop.xlane.xlu0 %3144
  %v3146 = vsub.f32 %v3140, %v3145
  %v3147 = vmul.f32 %v3146, 1.442695
  %v3148 = vpow.pop %v3147
  %v3149 = vsel %vm276, %v3148, 0.0
  %3150 = vadd.xlane.f32.xlu0 %v3149
  %v3151 = vpop.xlane.xlu0 %3150
  %v3152 = vrcp.pop %v3151
  %v3153 = vmul.f32 %v3148, %v3152
  %v3154 = vmul.f32 %v2922, %v3153
  %3155 = vmatprep.subr.mxu0 0.0
  %3156 = vmatpush1.msra.mxu0 0.0
  %3157 = vmatprep.subr.mxu0 0.0
  %3158 = vmatpush1.msra.mxu0 0.0
  %3159 = vmatprep.subr.mxu0 0.0
  %3160 = vmatpush1.msra.mxu0 0.0
  %3161 = vmatprep.subr.mxu0 0.0
  %3162 = vmatpush1.msra.mxu0 0.0
  %3163 = vmatprep.subr.mxu0 0.0
  %3164 = vmatpush1.msra.mxu0 0.0
  %3165 = vmatprep.subr.mxu0 0.0
  %3166 = vmatpush1.msra.mxu0 0.0
  %3167 = vmatprep.subr.mxu0 0.0
  %3168 = vmatpush1.msra.mxu0 0.0
  %3169 = vmatprep.subr.mxu0 0.0
  %3170 = vmatpush1.msra.mxu0 0.0
  %3171 = vmatprep.subr.mxu0 0.0
  %3172 = vmatpush1.msra.mxu0 0.0
  %3173 = vmatprep.subr.mxu0 0.0
  %3174 = vmatpush1.msra.mxu0 0.0
  %3175 = vmatprep.subr.mxu0 0.0
  %3176 = vmatpush1.msra.mxu0 0.0
  %3177 = vmatprep.subr.mxu0 0.0
  %3178 = vmatpush1.msra.mxu0 0.0
  %3179 = vmatprep.subr.mxu0 0.0
  %3180 = vmatpush1.msra.mxu0 %v43
  %3181 = vmatprep.subr.mxu0 0.0
  %3182 = vmatpush1.msra.mxu0 %v42
  %3183 = vmatprep.subr.mxu0 0.0
  %3184 = vmatpush1.msra.mxu0 %v41
  %3185 = vmatprep.subr.mxu0 0.0
  %3186 = vmatpush1.msra.mxu0 %v40
  %3187 = vmatprep.subr.mxu0 0.0
  %3188 = vmatpush2.msra.mxu0 0.0
  %3189 = vmatprep.subr.mxu0 0.0
  %3190 = vmatpush2.msra.mxu0 0.0
  %3191 = vmatprep.subr.mxu0 0.0
  %3192 = vmatpush2.msra.mxu0 0.0
  %3193 = vmatprep.subr.mxu0 0.0
  %3194 = vmatpush2.msra.mxu0 0.0
  %3195 = vmatprep.subr.mxu0 0.0
  %3196 = vmatpush2.msra.mxu0 0.0
  %3197 = vmatprep.subr.mxu0 0.0
  %3198 = vmatpush2.msra.mxu0 0.0
  %3199 = vmatprep.subr.mxu0 0.0
  %3200 = vmatpush2.msra.mxu0 0.0
  %3201 = vmatprep.subr.mxu0 0.0
  %3202 = vmatpush2.msra.mxu0 0.0
  %3203 = vmatprep.subr.mxu0 0.0
  %3204 = vmatpush2.msra.mxu0 0.0
  %3205 = vmatprep.subr.mxu0 0.0
  %3206 = vmatpush2.msra.mxu0 0.0
  %3207 = vmatprep.subr.mxu0 0.0
  %3208 = vmatpush2.msra.mxu0 0.0
  %3209 = vmatprep.subr.mxu0 0.0
  %3210 = vmatpush2.msra.mxu0 0.0
  %3211 = vmatprep.subr.mxu0 0.0
  %3212 = vmatpush2.msra.mxu0 0.0
  %3213 = vmatprep.subr.mxu0 0.0
  %3214 = vmatpush2.msra.mxu0 0.0
  %3215 = vmatprep.subr.mxu0 0.0
  %3216 = vmatpush2.msra.mxu0 0.0
  %3217 = vmatprep.subr.mxu0 0.0
  %3218 = vmatpush2.msra.mxu0 0.0
  %3219 = vmatprep.mubr.f32.mxu0 0.0
  %3220 = vmatmul.mubr.f32.gmra.mxu0 %v2996
  %v3221 = vpop.f32.mrf.mxu0
  %v3222 = vadd.f32 0.0, %v3221
  %v3223 = vpop.f32.mrf.mxu0
  %3224 = vdwg.mxu0
  %v3226 = vsel %vm53, %v3154, 0
  %3228 = vmatprep.subr.mxu0 0.0
  %3229 = vmatpush1.msra.mxu0 0.0
  %3230 = vmatprep.subr.mxu0 0.0
  %3231 = vmatpush1.msra.mxu0 0.0
  %3232 = vmatprep.subr.mxu0 0.0
  %3233 = vmatpush1.msra.mxu0 0.0
  %3234 = vmatprep.subr.mxu0 0.0
  %3235 = vmatpush1.msra.mxu0 0.0
  %3236 = vmatprep.subr.mxu0 0.0
  %3237 = vmatpush1.msra.mxu0 0.0
  %3238 = vmatprep.subr.mxu0 0.0
  %3239 = vmatpush1.msra.mxu0 0.0
  %3240 = vmatprep.subr.mxu0 0.0
  %3241 = vmatpush1.msra.mxu0 0.0
  %3242 = vmatprep.subr.mxu0 0.0
  %3243 = vmatpush1.msra.mxu0 0.0
  %3244 = vmatprep.subr.mxu0 0.0
  %3245 = vmatpush1.msra.mxu0 0.0
  %3246 = vmatprep.subr.mxu0 0.0
  %3247 = vmatpush1.msra.mxu0 0.0
  %3248 = vmatprep.subr.mxu0 0.0
  %3249 = vmatpush1.msra.mxu0 0.0
  %3250 = vmatprep.subr.mxu0 0.0
  %3251 = vmatpush1.msra.mxu0 0.0
  %3252 = vmatprep.subr.mxu0 0.0
  %3253 = vmatpush1.msra.mxu0 0.0
  %3254 = vmatprep.subr.mxu0 0.0
  %3255 = vmatpush1.msra.mxu0 0.0
  %3256 = vmatprep.subr.mxu0 0.0
  %3257 = vmatpush1.msra.mxu0 0.0
  %3258 = vmatprep.subr.mxu0 0.0
  %3259 = vmatpush1.msra.mxu0 %v39
  %3260 = vmatprep.subr.mxu0 0.0
  %3261 = vmatpush2.msra.mxu0 0.0
  %3262 = vmatprep.subr.mxu0 0.0
  %3263 = vmatpush2.msra.mxu0 0.0
  %3264 = vmatprep.subr.mxu0 0.0
  %3265 = vmatpush2.msra.mxu0 0.0
  %3266 = vmatprep.subr.mxu0 0.0
  %3267 = vmatpush2.msra.mxu0 0.0
  %3268 = vmatprep.subr.mxu0 0.0
  %3269 = vmatpush2.msra.mxu0 0.0
  %3270 = vmatprep.subr.mxu0 0.0
  %3271 = vmatpush2.msra.mxu0 0.0
  %3272 = vmatprep.subr.mxu0 0.0
  %3273 = vmatpush2.msra.mxu0 0.0
  %3274 = vmatprep.subr.mxu0 0.0
  %3275 = vmatpush2.msra.mxu0 0.0
  %3276 = vmatprep.subr.mxu0 0.0
  %3277 = vmatpush2.msra.mxu0 0.0
  %3278 = vmatprep.subr.mxu0 0.0
  %3279 = vmatpush2.msra.mxu0 0.0
  %3280 = vmatprep.subr.mxu0 0.0
  %3281 = vmatpush2.msra.mxu0 0.0
  %3282 = vmatprep.subr.mxu0 0.0
  %3283 = vmatpush2.msra.mxu0 0.0
  %3284 = vmatprep.subr.mxu0 0.0
  %3285 = vmatpush2.msra.mxu0 0.0
  %3286 = vmatprep.subr.mxu0 0.0
  %3287 = vmatpush2.msra.mxu0 0.0
  %3288 = vmatprep.subr.mxu0 0.0
  %3289 = vmatpush2.msra.mxu0 0.0
  %3290 = vmatprep.subr.mxu0 0.0
  %3291 = vmatpush2.msra.mxu0 0.0
  %3292 = vmatprep.mubr.f32.mxu0 0.0
  %3293 = vmatmul.mubr.f32.gmra.mxu0 %v3226
  %v3294 = vpop.f32.mrf.mxu0
  %v3295 = vadd.f32 %v3222, %v3294
  %v3296 = vpop.f32.mrf.mxu0
  %3297 = vdwg.mxu0
  %v3298 = vadd.f32 %v3295, %v49
  %v3299 = vxor.u32 %v3298, 2147483648
  %v3300 = vmul.f32 %v3299, 1.442695
  %v3301 = vpow.pop %v3300
  %v3302 = vadd.f32 %v3301, 1.0
  %v3303 = vrcp.pop %v3302
  %v3304 = vmul.f32 1.0, %v3303
  %3306 = vrot.lane.b32.xlu0 %v3298, 32
  %v3307 = vpop.permute.xlu0 %3306
  %v3309 = vmul.f32 %v3304, %v3307
  %3311 = vrot.lane.b32.xlu0 %v3309, 64
  %v3312 = vpop.permute.xlu0 %3311
  %v3314 = vadd.f32 %v3298, %v3312
  %v3315 = vtanh.pop %v3314
  %v3316 = vsub.f32 1.0, %v3304
  %3318 = vrot.lane.b32.xlu0 %v3315, 96
  %v3319 = vpop.permute.xlu0 %3318
  %v3321 = vmul.f32 %v3316, %v3319
  %v3322 = vmul.f32 %v3304, %v2914
  %v3323 = vadd.f32 %v3321, %v3322
  %3325 = vrot.lane.b32.xlu0 %v3323, 96
  %v3326 = vpop.permute.xlu0 %3325
  %s3328 = scalar_lea.vmem %s6, 28
  %3329 = vst.msk [vmem:[%s3328] sm:$0xf] %vm465, %v3326
  // Predicated region
  $region26: #{encoder_forward.1} parent=0 // pred_check
    _
  $region27: #{encoder_forward.1} parent=0 // pred_check_branch
    %3331 = sbr.rel (0) target = $region29
  $region28: #{encoder_forward.1} parent=0 // pred_region
    _
  $region29: #{encoder_forward.1} parent=0 // pred_fallthru
    _
  // Predicated region
  $region30: #{encoder_forward.1} parent=0 // pred_check
    _
  $region31: #{encoder_forward.1} parent=0 // pred_check_branch
    %3333 = sbr.rel (0) target = $region33
  $region32: #{encoder_forward.1} parent=0 // pred_region
    _
  $region33: #{encoder_forward.1} parent=0 // pred_fallthru
    _

</llo_original>
